<compile_context>
chip_gen: v6e
topology: v6e:2x2x1
jax: 0.10.0
libtpu: 0.0.40
codegen_flags: <defaults>
</compile_context>

<pallas_src>
import functools

import numpy as np
import jax
import jax.numpy as jnp
from jax.experimental import pallas as pl
from jax.experimental.pallas import tpu as pltpu

F32 = jnp.float32
LANES = 128


def _round8(n):
    return -(-n // 8) * 8


# ------------------------------ slab layouts ---------------------------------

def make_param_layout(in_dim, edge_feat_dim, hidden_dim, heads, num_actions):
    """Row layout (row_start, nrows, ncols) of every parameter inside the single
    lane-dense (rows, 128) parameter slab.  Every entry starts on an 8-row
    (sublane) boundary so all in-kernel static slices are aligned."""
    del num_actions  # final heads are stored pre-padded to LANES columns
    D2 = in_dim * in_dim
    HC = heads * hidden_dim
    entries = [
        # weight matrices
        ("ee_w1", edge_feat_dim, 32),
        ("ee_w2", 32, D2),
        ("nn_root", in_dim, in_dim),
        ("nn_expand", in_dim, D2),
        ("nn_sel", D2, in_dim),
        ("s1_wlr", 2 * in_dim, hidden_dim),
        ("s2_wlr", 2 * hidden_dim, hidden_dim),
        ("g1_w", hidden_dim, HC),
        ("g2_w", hidden_dim, HC),
        ("nh_w", hidden_dim, LANES),
        ("ah_w1", hidden_dim, hidden_dim),
        ("ah_w2", hidden_dim, LANES),
        # bias rows / LN params / head-masked GAT attention blocks
        ("ee_b1", 1, 32), ("ee_b2", 1, D2), ("nn_bias", 1, in_dim),
        ("s1_bl", 1, hidden_dim), ("s2_bl", 1, hidden_dim),
        ("ln1_g", 1, hidden_dim), ("ln1_b", 1, hidden_dim),
        ("ln2_g", 1, hidden_dim), ("ln2_b", 1, hidden_dim),
        ("g1_as", heads, HC), ("g1_ad", heads, HC), ("g1_b", 1, hidden_dim),
        ("g2_as", heads, HC), ("g2_ad", heads, HC), ("g2_b", 1, hidden_dim),
        ("nh_b", 1, LANES),
        ("ah_b1", 1, hidden_dim), ("ah_g", 1, hidden_dim), ("ah_be", 1, hidden_dim),
        ("ah_b2", 1, LANES),
    ]
    layout, r = {}, 0
    for name, nrows, ncols in entries:
        assert ncols <= LANES, (name, ncols)
        layout[name] = (r, nrows, ncols)
        r += _round8(nrows)
    return layout, _round8(r)


def make_graph_layout(num_nodes, num_edges, g_pad):
    """Row layout of the dense graph-helper slab (one DMA instead of five)."""
    entries = [
        ("gsrc", num_edges, num_nodes),   # x_src = gsrc @ x
        ("snorm", num_nodes, num_edges),  # mean scatter edge -> dst
        ("anorm", num_nodes, num_nodes),  # SAGE mean-neighbour matrix
        ("maskb", num_nodes, num_nodes),  # GAT additive mask bias (0 / -1e30)
        ("pool", g_pad, num_nodes),       # global_mean_pool matrix
    ]
    layout, r = {}, 0
    for name, nrows, ncols in entries:
        assert ncols <= LANES, (name, ncols)
        layout[name] = (r, nrows, ncols)
        r += _round8(nrows)
    return layout, _round8(r)


# ------------------------------ fused kernel ---------------------------------

def _fused_gsgat_kernel(x_ref, ea_ref, gslab_ref, pslab_ref, out_ref, *,
                        hidden_dim, heads, num_nodes, g_pad,
                        p_layout, g_layout):
    N = num_nodes

    def P(name):  # static, sublane-aligned view into the parameter slab
        r, nr, nc = p_layout[name]
        return pslab_ref[r:r + nr, :nc]

    def G(name):  # static view into the graph-helper slab
        r, nr, nc = g_layout[name]
        return gslab_ref[r:r + nr, :nc]

    def mm(a, b):
        return jnp.dot(a, b, preferred_element_type=F32)

    def layernorm(v, g, b, eps=1e-5):
        mu = jnp.mean(v, axis=-1, keepdims=True)
        var = jnp.mean((v - mu) ** 2, axis=-1, keepdims=True)
        return (v - mu) * jax.lax.rsqrt(var + eps) * g + b

    x = x_ref[...]                       # (N, in_dim)
    anorm = G("anorm")                   # (N, N) mean neighbourhood matrix
    mask_bias = G("maskb")               # (N, N) additive attention mask (hoisted)

    # ---- edge encoder MLP (per-edge weight matrices, flat (E, D*D)) ----
    ew = jnp.maximum(mm(ea_ref[...], P("ee_w1")) + P("ee_b1"), 0.0)
    wedge = mm(ew, P("ee_w2")) + P("ee_b2")              # (E, in_dim*in_dim)

    # ---- NNConv(aggr='mean') + root weight + bias + ReLU ----
    # msg[e, o] = sum_d x_src[e, d] * wedge[e, d*D + o] expressed as
    # ((x_src @ expand) * wedge) @ sel : 2 small MXU matmuls + 1 lane-dense mul.
    x_src = mm(G("gsrc"), x)                             # (E, in_dim) == x[src]
    x_exp = mm(x_src, P("nn_expand"))                    # (E, D*D): x_src[e, k//D]
    msgs = mm(x_exp * wedge, P("nn_sel"))                # (E, in_dim)
    x0 = mm(G("snorm"), msgs) + mm(x, P("nn_root")) + P("nn_bias")
    x0 = jnp.maximum(x0, 0.0)

    # ---- SAGEConv(mean): one fused matmul  [mean_agg(x), x] @ [Wl; Wr] ----
    def sage(v, wlr, bl, res=None):
        agg = mm(anorm, v)
        out = mm(jnp.concatenate([agg, v], axis=1), wlr) + bl
        if res is not None:
            out = out + res
        return jnp.maximum(out, 0.0)

    x1 = layernorm(sage(x0, P("s1_wlr"), P("s1_bl")), P("ln1_g"), P("ln1_b"))
    x2 = layernorm(sage(x1, P("s2_wlr"), P("s2_bl"), res=x1),
                   P("ln2_g"), P("ln2_b"))

    # ---- GATConv(concat=False, self loops) + (residual) + ReLU ----
    # gas_hm / gad_hm are (heads, heads*hidden) "head-masked" attention vectors
    # (row h non-zero only on head-h lanes), so all per-head scores come from
    # two lane-dense matmuls instead of 2*heads reductions.
    def gat(v, gw, gas_hm, gad_hm, gb, res=None, neg_slope=0.2):
        xw = mm(v, gw)                                           # (N, heads*hidden)
        a_dst = jnp.einsum("nk,hk->nh", xw, gad_hm,
                           preferred_element_type=F32)           # (N, H)
        a_src = jnp.einsum("hk,nk->hn", gas_hm, xw,
                           preferred_element_type=F32)           # (H, N)
        acc = None
        for h in range(heads):
            lo, hi = h * hidden_dim, (h + 1) * hidden_dim
            logits = a_dst[:, h:h + 1] + a_src[h:h + 1, :]       # (N, N)
            logits = jnp.where(logits >= 0, logits, neg_slope * logits)  # leaky relu
            masked = logits + mask_bias
            m = jnp.max(masked, axis=-1, keepdims=True)
            p = jnp.exp(masked - m)
            attn = p * pl.reciprocal(jnp.sum(p, axis=-1, keepdims=True), approx=True)
            out_h = mm(attn, xw[:, lo:hi])
            acc = out_h if acc is None else acc + out_h
        out = acc * (1.0 / heads) + gb
        if res is not None:
            out = out + res
        return jnp.maximum(out, 0.0)

    x3 = gat(x2, P("g1_w"), P("g1_as"), P("g1_ad"), P("g1_b"))
    x4 = gat(x3, P("g2_w"), P("g2_as"), P("g2_ad"), P("g2_b"), res=x3)

    # ---- wire / terminal heads: lane-dense rows [0, N) of the output slab ----
    out_ref[0:N, :] = mm(x4, P("nh_w")) + P("nh_b")

    # ---- global_mean_pool + action MLP: rows [N, N+g_pad) ----
    pooled = mm(G("pool"), x4)                           # (g_pad, hidden)
    hdn = mm(pooled, P("ah_w1")) + P("ah_b1")
    hdn = jnp.maximum(layernorm(hdn, P("ah_g"), P("ah_be")), 0.0)
    out_ref[N:N + g_pad, :] = mm(hdn, P("ah_w2")) + P("ah_b2")


# ------------------------------ parameters -----------------------------------

def init_params(key, in_dim, edge_feat_dim, hidden_dim, num_actions, heads):
    """Logical (PyTorch-layout) parameters."""
    keys = iter(jax.random.split(key, 32))

    def w(shape, scale=0.1):
        return scale * jax.random.normal(next(keys), shape, F32)

    p = {}
    p["ee_w1"], p["ee_b1"] = w((edge_feat_dim, 32)), w((1, 32))
    p["ee_w2"], p["ee_b2"] = w((32, in_dim * in_dim)), w((1, in_dim * in_dim))
    p["nn_root"], p["nn_bias"] = w((in_dim, in_dim)), w((1, in_dim))
    p["s1_wl"], p["s1_bl"], p["s1_wr"] = (w((in_dim, hidden_dim)), w((1, hidden_dim)),
                                          w((in_dim, hidden_dim)))
    p["s2_wl"], p["s2_bl"], p["s2_wr"] = (w((hidden_dim, hidden_dim)), w((1, hidden_dim)),
                                          w((hidden_dim, hidden_dim)))
    p["ln1_g"], p["ln1_b"] = jnp.ones((1, hidden_dim), F32), jnp.zeros((1, hidden_dim), F32)
    p["ln2_g"], p["ln2_b"] = jnp.ones((1, hidden_dim), F32), jnp.zeros((1, hidden_dim), F32)
    p["g1_w"], p["g1_as"], p["g1_ad"], p["g1_b"] = (
        w((hidden_dim, heads * hidden_dim)), w((1, heads, hidden_dim)),
        w((1, heads, hidden_dim)), w((1, hidden_dim)))
    p["g2_w"], p["g2_as"], p["g2_ad"], p["g2_b"] = (
        w((hidden_dim, heads * hidden_dim)), w((1, heads, hidden_dim)),
        w((1, heads, hidden_dim)), w((1, hidden_dim)))
    p["wire_w"], p["wire_b"] = w((1, hidden_dim)), w((1, 1))
    p["term_w"], p["term_b"] = w((1, hidden_dim)), w((1, 1))
    p["ah_w1"], p["ah_b1"] = w((hidden_dim, hidden_dim)), w((1, hidden_dim))
    p["ah_g"], p["ah_be"] = jnp.ones((1, hidden_dim), F32), jnp.zeros((1, hidden_dim), F32)
    p["ah_w2"], p["ah_b2"] = w((hidden_dim, num_actions)), w((1, num_actions))
    return p


def pack_params(p, *, in_dim, edge_feat_dim, hidden_dim, num_actions, heads):
    """One-time packing of every parameter into a single lane-dense slab."""
    layout, total_rows = make_param_layout(in_dim, edge_feat_dim, hidden_dim,
                                           heads, num_actions)
    D, D2, HC = in_dim, in_dim * in_dim, heads * hidden_dim
    slab = np.zeros((total_rows, LANES), np.float32)

    def put(name, mat):
        mat = np.asarray(mat, np.float32)
        r, nr, nc = layout[name]
        assert mat.shape == (nr, nc), (name, mat.shape, (nr, nc))
        slab[r:r + nr, :nc] = mat

    # NNConv expand/select indicator matrices (constants of in_dim).
    k = np.arange(D2)
    expand = (k[None, :] // D == np.arange(D)[:, None]).astype(np.float32)  # (D, D2)
    sel = (k[:, None] % D == np.arange(D)[None, :]).astype(np.float32)      # (D2, D)

    def head_mask(att):  # (1, H, C) -> (H, H*C) block rows for lane-dense scores
        hm = np.zeros((heads, HC), np.float32)
        a = np.asarray(att, np.float32)
        for h in range(heads):
            hm[h, h * hidden_dim:(h + 1) * hidden_dim] = a[0, h]
        return hm

    put("ee_w1", p["ee_w1"]); put("ee_b1", p["ee_b1"])
    put("ee_w2", p["ee_w2"]); put("ee_b2", p["ee_b2"])
    put("nn_root", p["nn_root"]); put("nn_bias", p["nn_bias"])
    put("nn_expand", expand); put("nn_sel", sel)
    put("s1_wlr", np.concatenate([np.asarray(p["s1_wl"]), np.asarray(p["s1_wr"])], axis=0))
    put("s1_bl", p["s1_bl"])
    put("s2_wlr", np.concatenate([np.asarray(p["s2_wl"]), np.asarray(p["s2_wr"])], axis=0))
    put("s2_bl", p["s2_bl"])
    put("ln1_g", p["ln1_g"]); put("ln1_b", p["ln1_b"])
    put("ln2_g", p["ln2_g"]); put("ln2_b", p["ln2_b"])
    put("g1_w", p["g1_w"]); put("g1_as", head_mask(p["g1_as"]))
    put("g1_ad", head_mask(p["g1_ad"])); put("g1_b", p["g1_b"])
    put("g2_w", p["g2_w"]); put("g2_as", head_mask(p["g2_as"]))
    put("g2_ad", head_mask(p["g2_ad"])); put("g2_b", p["g2_b"])
    # wire (lane 0) + terminal (lane 1) heads -> one lane-dense (hidden, 128) matrix
    nh_w = np.zeros((hidden_dim, LANES), np.float32)
    nh_w[:, 0] = np.asarray(p["wire_w"])[0]
    nh_w[:, 1] = np.asarray(p["term_w"])[0]
    nh_b = np.zeros((1, LANES), np.float32)
    nh_b[0, 0] = float(np.asarray(p["wire_b"])[0, 0])
    nh_b[0, 1] = float(np.asarray(p["term_b"])[0, 0])
    put("nh_w", nh_w); put("nh_b", nh_b)
    put("ah_w1", p["ah_w1"]); put("ah_b1", p["ah_b1"])
    put("ah_g", p["ah_g"]); put("ah_be", p["ah_be"])
    ah_w2 = np.zeros((hidden_dim, LANES), np.float32)
    ah_w2[:, :num_actions] = np.asarray(p["ah_w2"])
    ah_b2 = np.zeros((1, LANES), np.float32)
    ah_b2[0, :num_actions] = np.asarray(p["ah_b2"])[0]
    put("ah_w2", ah_w2); put("ah_b2", ah_b2)
    return jax.device_put(jnp.asarray(slab))


# ------------------------ static graph precompute -----------------------------

def precompute_graph(edge_index, num_nodes, batch, num_graphs):
    """Host-side, once per graph: all dense helper matrices in ONE slab."""
    src, dst = edge_index
    E, N = src.shape[0], num_nodes
    gsrc = np.zeros((E, N), np.float32)
    gsrc[np.arange(E), src] = 1.0
    snorm = np.zeros((N, E), np.float32)
    snorm[dst, np.arange(E)] = 1.0
    deg = np.maximum(snorm.sum(axis=1, keepdims=True), 1.0)
    snorm = snorm / deg
    A = np.zeros((N, N), np.float32)
    np.add.at(A, (dst, src), 1.0)
    a_deg = np.maximum(A.sum(axis=1, keepdims=True), 1.0)
    anorm = A / a_deg
    adj = (A > 0).astype(np.float32)
    np.fill_diagonal(adj, 1.0)                           # GATConv add_self_loops=True
    maskb = np.where(adj > 0, 0.0, -1e30).astype(np.float32)
    g_pad = _round8(max(num_graphs, 1))
    pool = np.zeros((g_pad, N), np.float32)
    for g in range(num_graphs):
        members = batch == g
        pool[g, members] = 1.0 / max(int(members.sum()), 1)

    layout, rows = make_graph_layout(N, E, g_pad)
    gslab = np.zeros((rows, LANES), np.float32)
    for name, mat in (("gsrc", gsrc), ("snorm", snorm), ("anorm", anorm),
                      ("maskb", maskb), ("pool", pool)):
        r, nr, nc = layout[name]
        gslab[r:r + nr, :nc] = mat
    return jax.device_put(jnp.asarray(gslab))


# --------------------------------- forward ------------------------------------

@functools.partial(jax.jit, static_argnames=("in_dim", "hidden_dim",
                                              "num_actions", "heads",
                                              "num_graphs"))
def multihead_gsgat_forward(pslab, gslab, x, edge_attr, wire_idx, terminal_idx,
                            *, in_dim, hidden_dim, num_actions, heads,
                            num_graphs):
    N, E = x.shape[0], edge_attr.shape[0]
    edge_feat_dim = edge_attr.shape[1]
    g_pad = _round8(max(num_graphs, 1))
    p_layout, _ = make_param_layout(in_dim, edge_feat_dim, hidden_dim, heads,
                                    num_actions)
    g_layout, _ = make_graph_layout(N, E, g_pad)

    kernel = functools.partial(_fused_gsgat_kernel,
                               hidden_dim=hidden_dim, heads=heads,
                               num_nodes=N, g_pad=g_pad,
                               p_layout=p_layout, g_layout=g_layout)

    D, H, D2, HC = in_dim, hidden_dim, in_dim * in_dim, heads * hidden_dim
    flops = 2 * (
        E * edge_feat_dim * 32 + E * 32 * D2             # edge encoder MLP
        + E * N * D + E * D * D2 + E * D2 * D            # NNConv gather/expand/select
        + N * E * D + N * D * D                          # mean scatter + root
        + N * N * D + N * (2 * D) * H                    # SAGE1 (fused)
        + N * N * H + N * (2 * H) * H                    # SAGE2 (fused)
        + 2 * (N * H * HC + 2 * N * HC * heads
               + heads * (N * N + N * N * H))            # 2x GAT
        + N * H * LANES                                  # node heads
        + g_pad * N * H + g_pad * H * H + g_pad * H * LANES)  # pool + action MLP
    ce = pl.CostEstimate(
        flops=int(flops),
        transcendentals=int(2 * heads * N * N + 8 * N),
        bytes_accessed=int(4 * (x.size + edge_attr.size + pslab.size + gslab.size
                                + (N + g_pad) * LANES)))

    out = pl.pallas_call(
        kernel,
        out_shape=jax.ShapeDtypeStruct((N + g_pad, LANES), F32),
        in_specs=[pl.BlockSpec(memory_space=pltpu.MemorySpace.VMEM)] * 4,
        out_specs=pl.BlockSpec(memory_space=pltpu.MemorySpace.VMEM),
        compiler_params=pltpu.CompilerParams(vmem_limit_bytes=32 * 1024 * 1024),
        cost_estimate=ce,
    )(x, edge_attr, gslab, pslab)

    p_wire = out[wire_idx, 0]
    p_terminal = out[terminal_idx, 1]
    p_action = out[N:N + num_graphs, :num_actions]
    return p_wire, p_terminal, p_action


# ----------------------------------- main --------------------------------------

if __name__ == "__main__":
    N, in_dim, edge_feat_dim, hidden_dim, num_actions, heads = 16, 8, 4, 32, 6, 4

    key = jax.random.PRNGKey(0)
    kx, ke, kp = jax.random.split(key, 3)

    # Two graphs of 8 nodes each, directed ring edges in both directions.
    src, dst = [], []
    for g in range(2):
        base = g * 8
        for i in range(8):
            a, b = base + i, base + (i + 1) % 8
            src += [a, b]
            dst += [b, a]
    src = np.array(src, np.int32)
    dst = np.array(dst, np.int32)
    E = src.shape[0]
    num_graphs = 2

    x = jax.random.normal(kx, (N, in_dim), F32)
    edge_attr = jax.random.normal(ke, (E, edge_feat_dim), F32)

    batch = np.repeat(np.arange(num_graphs), 8)
    wire_idx = jnp.asarray(np.nonzero(np.arange(N) % 2 == 0)[0], jnp.int32)
    terminal_idx = jnp.asarray(np.nonzero(np.arange(N) % 4 == 0)[0], jnp.int32)

    # One-time host precompute + parameter packing (hoisted out of the forward).
    gslab = precompute_graph((src, dst), N, batch, num_graphs)
    params = init_params(kp, in_dim, edge_feat_dim, hidden_dim, num_actions, heads)
    pslab = pack_params(params, in_dim=in_dim, edge_feat_dim=edge_feat_dim,
                        hidden_dim=hidden_dim, num_actions=num_actions, heads=heads)

    p_wire, p_terminal, p_action = multihead_gsgat_forward(
        pslab, gslab, x, edge_attr, wire_idx, terminal_idx,
        in_dim=in_dim, hidden_dim=hidden_dim, num_actions=num_actions,
        heads=heads, num_graphs=num_graphs)

    jax.block_until_ready((p_wire, p_terminal, p_action))
    assert p_wire.shape == (wire_idx.shape[0],)
    assert p_terminal.shape == (terminal_idx.shape[0],)
    assert p_action.shape == (num_graphs, num_actions)
    assert bool(jnp.all(jnp.isfinite(p_wire)))
    assert bool(jnp.all(jnp.isfinite(p_terminal)))
    assert bool(jnp.all(jnp.isfinite(p_action)))
    print("KERNEL_OK")
</pallas_src>

<mosaic_0001>
module attributes {stable_mosaic.version = 11 : i64} {
  func.func @_fused_gsgat_kernel(%arg0: memref<16x8xf32, #tpu.memory_space<vmem>>, %arg1: memref<32x4xf32, #tpu.memory_space<vmem>>, %arg2: memref<88x128xf32, #tpu.memory_space<vmem>>, %arg3: memref<520x128xf32, #tpu.memory_space<vmem>>, %arg4: memref<24x128xf32, #tpu.memory_space<vmem>>) attributes {dimension_semantics = [], scalar_prefetch = 0 : i64, scratch_operands = 0 : i64, tpu.core_type = #tpu.core_type<tc>} {
    %c0 = arith.constant 0 : index
    %c0_0 = arith.constant 0 : index
    %0 = vector.load %arg0[%c0, %c0_0] : memref<16x8xf32, #tpu.memory_space<vmem>>, vector<16x8xf32>
    %c48 = arith.constant 48 : index
    %c0_1 = arith.constant 0 : index
    %1 = vector.load %arg2[%c48, %c0_1] : memref<88x128xf32, #tpu.memory_space<vmem>>, vector<16x16xf32>
    %c64 = arith.constant 64 : index
    %c0_2 = arith.constant 0 : index
    %2 = vector.load %arg2[%c64, %c0_2] : memref<88x128xf32, #tpu.memory_space<vmem>>, vector<16x16xf32>
    %c0_3 = arith.constant 0 : index
    %c0_4 = arith.constant 0 : index
    %3 = vector.load %arg1[%c0_3, %c0_4] : memref<32x4xf32, #tpu.memory_space<vmem>>, vector<32x4xf32>
    %c0_5 = arith.constant 0 : index
    %c0_6 = arith.constant 0 : index
    %4 = vector.load %arg3[%c0_5, %c0_6] : memref<520x128xf32, #tpu.memory_space<vmem>>, vector<4x32xf32>
    %cst = arith.constant dense<0.000000e+00> : vector<32x32xf32>
    %5 = tpu.matmul %3, %4, %cst {dimension_numbers = #tpu.dot_dimension_numbers<[1], [0], [0], [1], [0, 0, 1, 1], [], []>} : vector<32x4xf32>, vector<4x32xf32>, vector<32x32xf32> -> vector<32x32xf32>
    %c360 = arith.constant 360 : index
    %c0_7 = arith.constant 0 : index
    %6 = vector.load %arg3[%c360, %c0_7] : memref<520x128xf32, #tpu.memory_space<vmem>>, vector<1x32xf32>
    %7 = vector.broadcast %6 : vector<1x32xf32> to vector<32x32xf32>
    %8 = arith.addf %5, %7 : vector<32x32xf32>
    %cst_8 = arith.constant 0.000000e+00 : f32
    %9 = vector.broadcast %cst_8 : f32 to vector<32x32xf32>
    %10 = arith.maximumf %8, %9 : vector<32x32xf32>
    %c8 = arith.constant 8 : index
    %c0_9 = arith.constant 0 : index
    %11 = vector.load %arg3[%c8, %c0_9] : memref<520x128xf32, #tpu.memory_space<vmem>>, vector<32x64xf32>
    %cst_10 = arith.constant dense<0.000000e+00> : vector<32x64xf32>
    %12 = tpu.matmul %10, %11, %cst_10 {dimension_numbers = #tpu.dot_dimension_numbers<[1], [0], [0], [1], [0, 0, 1, 1], [], []>} : vector<32x32xf32>, vector<32x64xf32>, vector<32x64xf32> -> vector<32x64xf32>
    %c368 = arith.constant 368 : index
    %c0_11 = arith.constant 0 : index
    %13 = vector.load %arg3[%c368, %c0_11] : memref<520x128xf32, #tpu.memory_space<vmem>>, vector<1x64xf32>
    %14 = vector.broadcast %13 : vector<1x64xf32> to vector<32x64xf32>
    %15 = arith.addf %12, %14 : vector<32x64xf32>
    %c0_12 = arith.constant 0 : index
    %c0_13 = arith.constant 0 : index
    %16 = vector.load %arg2[%c0_12, %c0_13] : memref<88x128xf32, #tpu.memory_space<vmem>>, vector<32x16xf32>
    %cst_14 = arith.constant dense<0.000000e+00> : vector<32x8xf32>
    %17 = tpu.matmul %16, %0, %cst_14 {dimension_numbers = #tpu.dot_dimension_numbers<[1], [0], [0], [1], [0, 0, 1, 1], [], []>} : vector<32x16xf32>, vector<16x8xf32>, vector<32x8xf32> -> vector<32x8xf32>
    %c48_15 = arith.constant 48 : index
    %c0_16 = arith.constant 0 : index
    %18 = vector.load %arg3[%c48_15, %c0_16] : memref<520x128xf32, #tpu.memory_space<vmem>>, vector<8x64xf32>
    %cst_17 = arith.constant dense<0.000000e+00> : vector<32x64xf32>
    %19 = tpu.matmul %17, %18, %cst_17 {dimension_numbers = #tpu.dot_dimension_numbers<[1], [0], [0], [1], [0, 0, 1, 1], [], []>} : vector<32x8xf32>, vector<8x64xf32>, vector<32x64xf32> -> vector<32x64xf32>
    %20 = arith.mulf %19, %15 : vector<32x64xf32>
    %c56 = arith.constant 56 : index
    %c0_18 = arith.constant 0 : index
    %21 = vector.load %arg3[%c56, %c0_18] : memref<520x128xf32, #tpu.memory_space<vmem>>, vector<64x8xf32>
    %cst_19 = arith.constant dense<0.000000e+00> : vector<32x8xf32>
    %22 = tpu.matmul %20, %21, %cst_19 {dimension_numbers = #tpu.dot_dimension_numbers<[1], [0], [0], [1], [0, 0, 1, 1], [], []>} : vector<32x64xf32>, vector<64x8xf32>, vector<32x8xf32> -> vector<32x8xf32>
    %c32 = arith.constant 32 : index
    %c0_20 = arith.constant 0 : index
    %23 = vector.load %arg2[%c32, %c0_20] : memref<88x128xf32, #tpu.memory_space<vmem>>, vector<16x32xf32>
    %cst_21 = arith.constant dense<0.000000e+00> : vector<16x8xf32>
    %24 = tpu.matmul %23, %22, %cst_21 {dimension_numbers = #tpu.dot_dimension_numbers<[1], [0], [0], [1], [0, 0, 1, 1], [], []>} : vector<16x32xf32>, vector<32x8xf32>, vector<16x8xf32> -> vector<16x8xf32>
    %c40 = arith.constant 40 : index
    %c0_22 = arith.constant 0 : index
    %25 = vector.load %arg3[%c40, %c0_22] : memref<520x128xf32, #tpu.memory_space<vmem>>, vector<8x8xf32>
    %cst_23 = arith.constant dense<0.000000e+00> : vector<16x8xf32>
    %26 = tpu.matmul %0, %25, %cst_23 {dimension_numbers = #tpu.dot_dimension_numbers<[1], [0], [0], [1], [0, 0, 1, 1], [], []>} : vector<16x8xf32>, vector<8x8xf32>, vector<16x8xf32> -> vector<16x8xf32>
    %27 = arith.addf %24, %26 : vector<16x8xf32>
    %c376 = arith.constant 376 : index
    %c0_24 = arith.constant 0 : index
    %28 = vector.load %arg3[%c376, %c0_24] : memref<520x128xf32, #tpu.memory_space<vmem>>, vector<1x8xf32>
    %29 = vector.broadcast %28 : vector<1x8xf32> to vector<16x8xf32>
    %30 = arith.addf %27, %29 : vector<16x8xf32>
    %cst_25 = arith.constant 0.000000e+00 : f32
    %31 = vector.broadcast %cst_25 : f32 to vector<16x8xf32>
    %32 = arith.maximumf %30, %31 : vector<16x8xf32>
    %c120 = arith.constant 120 : index
    %c0_26 = arith.constant 0 : index
    %33 = vector.load %arg3[%c120, %c0_26] : memref<520x128xf32, #tpu.memory_space<vmem>>, vector<16x32xf32>
    %c384 = arith.constant 384 : index
    %c0_27 = arith.constant 0 : index
    %34 = vector.load %arg3[%c384, %c0_27] : memref<520x128xf32, #tpu.memory_space<vmem>>, vector<1x32xf32>
    %cst_28 = arith.constant dense<0.000000e+00> : vector<16x8xf32>
    %35 = tpu.matmul %1, %32, %cst_28 {dimension_numbers = #tpu.dot_dimension_numbers<[1], [0], [0], [1], [0, 0, 1, 1], [], []>} : vector<16x16xf32>, vector<16x8xf32>, vector<16x8xf32> -> vector<16x8xf32>
    %36 = tpu.concatenate %35, %32 in 1 : vector<16x8xf32>, vector<16x8xf32> -> vector<16x16xf32>
    %cst_29 = arith.constant dense<0.000000e+00> : vector<16x32xf32>
    %37 = tpu.matmul %36, %33, %cst_29 {dimension_numbers = #tpu.dot_dimension_numbers<[1], [0], [0], [1], [0, 0, 1, 1], [], []>} : vector<16x16xf32>, vector<16x32xf32>, vector<16x32xf32> -> vector<16x32xf32>
    %38 = vector.broadcast %34 : vector<1x32xf32> to vector<16x32xf32>
    %39 = arith.addf %37, %38 : vector<16x32xf32>
    %cst_30 = arith.constant 0.000000e+00 : f32
    %40 = vector.broadcast %cst_30 : f32 to vector<16x32xf32>
    %41 = arith.maximumf %39, %40 : vector<16x32xf32>
    %c400 = arith.constant 400 : index
    %c0_31 = arith.constant 0 : index
    %42 = vector.load %arg3[%c400, %c0_31] : memref<520x128xf32, #tpu.memory_space<vmem>>, vector<1x32xf32>
    %c408 = arith.constant 408 : index
    %c0_32 = arith.constant 0 : index
    %43 = vector.load %arg3[%c408, %c0_32] : memref<520x128xf32, #tpu.memory_space<vmem>>, vector<1x32xf32>
    %cst_33 = arith.constant dense<0.000000e+00> : vector<16xf32>
    %44 = vector.multi_reduction <add>, %41, %cst_33 [1] : vector<16x32xf32> to vector<16xf32>
    %45 = vector.shape_cast %44 : vector<16xf32> to vector<16x1xf32>
    %cst_34 = arith.constant 3.200000e+01 : f32
    %46 = vector.broadcast %cst_34 : f32 to vector<16x1xf32>
    %47 = arith.divf %45, %46 : vector<16x1xf32>
    %48 = vector.broadcast %47 : vector<16x1xf32> to vector<16x32xf32>
    %49 = arith.subf %41, %48 : vector<16x32xf32>
    %50 = arith.mulf %49, %49 : vector<16x32xf32>
    %cst_35 = arith.constant dense<0.000000e+00> : vector<16xf32>
    %51 = vector.multi_reduction <add>, %50, %cst_35 [1] : vector<16x32xf32> to vector<16xf32>
    %52 = vector.shape_cast %51 : vector<16xf32> to vector<16x1xf32>
    %cst_36 = arith.constant 3.200000e+01 : f32
    %53 = vector.broadcast %cst_36 : f32 to vector<16x1xf32>
    %54 = arith.divf %52, %53 : vector<16x1xf32>
    %55 = vector.broadcast %47 : vector<16x1xf32> to vector<16x32xf32>
    %56 = arith.subf %41, %55 : vector<16x32xf32>
    %cst_37 = arith.constant 9.99999974E-6 : f32
    %57 = vector.broadcast %cst_37 : f32 to vector<16x1xf32>
    %58 = arith.addf %54, %57 : vector<16x1xf32>
    %59 = math.rsqrt %58 : vector<16x1xf32>
    %60 = vector.broadcast %59 : vector<16x1xf32> to vector<16x32xf32>
    %61 = arith.mulf %56, %60 : vector<16x32xf32>
    %62 = vector.broadcast %42 : vector<1x32xf32> to vector<16x32xf32>
    %63 = arith.mulf %61, %62 : vector<16x32xf32>
    %64 = vector.broadcast %43 : vector<1x32xf32> to vector<16x32xf32>
    %65 = arith.addf %63, %64 : vector<16x32xf32>
    %c136 = arith.constant 136 : index
    %c0_38 = arith.constant 0 : index
    %66 = vector.load %arg3[%c136, %c0_38] : memref<520x128xf32, #tpu.memory_space<vmem>>, vector<64x32xf32>
    %c392 = arith.constant 392 : index
    %c0_39 = arith.constant 0 : index
    %67 = vector.load %arg3[%c392, %c0_39] : memref<520x128xf32, #tpu.memory_space<vmem>>, vector<1x32xf32>
    %cst_40 = arith.constant dense<0.000000e+00> : vector<16x32xf32>
    %68 = tpu.matmul %1, %65, %cst_40 {dimension_numbers = #tpu.dot_dimension_numbers<[1], [0], [0], [1], [0, 0, 1, 1], [], []>} : vector<16x16xf32>, vector<16x32xf32>, vector<16x32xf32> -> vector<16x32xf32>
    %69 = tpu.concatenate %68, %65 in 1 : vector<16x32xf32>, vector<16x32xf32> -> vector<16x64xf32>
    %cst_41 = arith.constant dense<0.000000e+00> : vector<16x32xf32>
    %70 = tpu.matmul %69, %66, %cst_41 {dimension_numbers = #tpu.dot_dimension_numbers<[1], [0], [0], [1], [0, 0, 1, 1], [], []>} : vector<16x64xf32>, vector<64x32xf32>, vector<16x32xf32> -> vector<16x32xf32>
    %71 = vector.broadcast %67 : vector<1x32xf32> to vector<16x32xf32>
    %72 = arith.addf %70, %71 : vector<16x32xf32>
    %73 = arith.addf %72, %65 : vector<16x32xf32>
    %cst_42 = arith.constant 0.000000e+00 : f32
    %74 = vector.broadcast %cst_42 : f32 to vector<16x32xf32>
    %75 = arith.maximumf %73, %74 : vector<16x32xf32>
    %c416 = arith.constant 416 : index
    %c0_43 = arith.constant 0 : index
    %76 = vector.load %arg3[%c416, %c0_43] : memref<520x128xf32, #tpu.memory_space<vmem>>, vector<1x32xf32>
    %c424 = arith.constant 424 : index
    %c0_44 = arith.constant 0 : index
    %77 = vector.load %arg3[%c424, %c0_44] : memref<520x128xf32, #tpu.memory_space<vmem>>, vector<1x32xf32>
    %cst_45 = arith.constant dense<0.000000e+00> : vector<16xf32>
    %78 = vector.multi_reduction <add>, %75, %cst_45 [1] : vector<16x32xf32> to vector<16xf32>
    %79 = vector.shape_cast %78 : vector<16xf32> to vector<16x1xf32>
    %cst_46 = arith.constant 3.200000e+01 : f32
    %80 = vector.broadcast %cst_46 : f32 to vector<16x1xf32>
    %81 = arith.divf %79, %80 : vector<16x1xf32>
    %82 = vector.broadcast %81 : vector<16x1xf32> to vector<16x32xf32>
    %83 = arith.subf %75, %82 : vector<16x32xf32>
    %84 = arith.mulf %83, %83 : vector<16x32xf32>
    %cst_47 = arith.constant dense<0.000000e+00> : vector<16xf32>
    %85 = vector.multi_reduction <add>, %84, %cst_47 [1] : vector<16x32xf32> to vector<16xf32>
    %86 = vector.shape_cast %85 : vector<16xf32> to vector<16x1xf32>
    %cst_48 = arith.constant 3.200000e+01 : f32
    %87 = vector.broadcast %cst_48 : f32 to vector<16x1xf32>
    %88 = arith.divf %86, %87 : vector<16x1xf32>
    %89 = vector.broadcast %81 : vector<16x1xf32> to vector<16x32xf32>
    %90 = arith.subf %75, %89 : vector<16x32xf32>
    %cst_49 = arith.constant 9.99999974E-6 : f32
    %91 = vector.broadcast %cst_49 : f32 to vector<16x1xf32>
    %92 = arith.addf %88, %91 : vector<16x1xf32>
    %93 = math.rsqrt %92 : vector<16x1xf32>
    %94 = vector.broadcast %93 : vector<16x1xf32> to vector<16x32xf32>
    %95 = arith.mulf %90, %94 : vector<16x32xf32>
    %96 = vector.broadcast %76 : vector<1x32xf32> to vector<16x32xf32>
    %97 = arith.mulf %95, %96 : vector<16x32xf32>
    %98 = vector.broadcast %77 : vector<1x32xf32> to vector<16x32xf32>
    %99 = arith.addf %97, %98 : vector<16x32xf32>
    %c200 = arith.constant 200 : index
    %c0_50 = arith.constant 0 : index
    %100 = vector.load %arg3[%c200, %c0_50] : memref<520x128xf32, #tpu.memory_space<vmem>>, vector<32x128xf32>
    %c432 = arith.constant 432 : index
    %c0_51 = arith.constant 0 : index
    %101 = vector.load %arg3[%c432, %c0_51] : memref<520x128xf32, #tpu.memory_space<vmem>>, vector<4x128xf32>
    %c440 = arith.constant 440 : index
    %c0_52 = arith.constant 0 : index
    %102 = vector.load %arg3[%c440, %c0_52] : memref<520x128xf32, #tpu.memory_space<vmem>>, vector<4x128xf32>
    %c448 = arith.constant 448 : index
    %c0_53 = arith.constant 0 : index
    %103 = vector.load %arg3[%c448, %c0_53] : memref<520x128xf32, #tpu.memory_space<vmem>>, vector<1x32xf32>
    %cst_54 = arith.constant dense<0.000000e+00> : vector<16x128xf32>
    %104 = tpu.matmul %99, %100, %cst_54 {dimension_numbers = #tpu.dot_dimension_numbers<[1], [0], [0], [1], [0, 0, 1, 1], [], []>} : vector<16x32xf32>, vector<32x128xf32>, vector<16x128xf32> -> vector<16x128xf32>
    "tpu.trace_start"() <{level = 10 : i32, message = "nk,hk->nh"}> : () -> ()
    %cst_55 = arith.constant dense<0.000000e+00> : vector<16x4xf32>
    %105 = tpu.matmul %104, %102, %cst_55 {dimension_numbers = #tpu.dot_dimension_numbers<[1], [1], [0], [0], [0, 0, 1, 0], [], []>} : vector<16x128xf32>, vector<4x128xf32>, vector<16x4xf32> -> vector<16x4xf32>
    "tpu.trace_stop"() : () -> ()
    "tpu.trace_start"() <{level = 10 : i32, message = "hk,nk->hn"}> : () -> ()
    %cst_56 = arith.constant dense<0.000000e+00> : vector<4x16xf32>
    %106 = tpu.matmul %101, %104, %cst_56 {dimension_numbers = #tpu.dot_dimension_numbers<[1], [1], [0], [0], [0, 0, 1, 0], [], []>} : vector<4x128xf32>, vector<16x128xf32>, vector<4x16xf32> -> vector<4x16xf32>
    "tpu.trace_stop"() : () -> ()
    %107 = vector.extract_strided_slice %105 {offsets = [0, 0], sizes = [16, 1], strides = [1, 1]} : vector<16x4xf32> to vector<16x1xf32>
    %108 = vector.extract_strided_slice %106 {offsets = [0, 0], sizes = [1, 16], strides = [1, 1]} : vector<4x16xf32> to vector<1x16xf32>
    %109 = vector.broadcast %107 : vector<16x1xf32> to vector<16x16xf32>
    %110 = vector.broadcast %108 : vector<1x16xf32> to vector<16x16xf32>
    %111 = arith.addf %109, %110 : vector<16x16xf32>
    %cst_57 = arith.constant 0.000000e+00 : f32
    %112 = vector.broadcast %cst_57 : f32 to vector<16x16xf32>
    %113 = arith.cmpf oge, %111, %112 : vector<16x16xf32>
    %cst_58 = arith.constant 2.000000e-01 : f32
    %114 = vector.broadcast %cst_58 : f32 to vector<16x16xf32>
    %115 = arith.mulf %114, %111 : vector<16x16xf32>
    %116 = arith.select %113, %111, %115 : vector<16x16xi1>, vector<16x16xf32>
    %117 = arith.addf %116, %2 : vector<16x16xf32>
    %cst_59 = arith.constant dense<0xFF800000> : vector<16xf32>
    %118 = vector.multi_reduction <maximumf>, %117, %cst_59 [1] : vector<16x16xf32> to vector<16xf32>
    %119 = vector.shape_cast %118 : vector<16xf32> to vector<16x1xf32>
    %120 = vector.broadcast %119 : vector<16x1xf32> to vector<16x16xf32>
    %121 = arith.subf %117, %120 : vector<16x16xf32>
    %122 = math.exp %121 : vector<16x16xf32>
    %cst_60 = arith.constant dense<0.000000e+00> : vector<16xf32>
    %123 = vector.multi_reduction <add>, %122, %cst_60 [1] : vector<16x16xf32> to vector<16xf32>
    %124 = vector.shape_cast %123 : vector<16xf32> to vector<16x1xf32>
    %125 = tpu.reciprocal %124 {approx = true} : vector<16x1xf32> -> vector<16x1xf32>
    %126 = vector.broadcast %125 : vector<16x1xf32> to vector<16x16xf32>
    %127 = arith.mulf %122, %126 : vector<16x16xf32>
    %128 = vector.extract_strided_slice %104 {offsets = [0, 0], sizes = [16, 32], strides = [1, 1]} : vector<16x128xf32> to vector<16x32xf32>
    %cst_61 = arith.constant dense<0.000000e+00> : vector<16x32xf32>
    %129 = tpu.matmul %127, %128, %cst_61 {dimension_numbers = #tpu.dot_dimension_numbers<[1], [0], [0], [1], [0, 0, 1, 1], [], []>} : vector<16x16xf32>, vector<16x32xf32>, vector<16x32xf32> -> vector<16x32xf32>
    %130 = vector.extract_strided_slice %105 {offsets = [0, 1], sizes = [16, 1], strides = [1, 1]} : vector<16x4xf32> to vector<16x1xf32>
    %131 = vector.extract_strided_slice %106 {offsets = [1, 0], sizes = [1, 16], strides = [1, 1]} : vector<4x16xf32> to vector<1x16xf32>
    %132 = vector.broadcast %130 : vector<16x1xf32> to vector<16x16xf32>
    %133 = vector.broadcast %131 : vector<1x16xf32> to vector<16x16xf32>
    %134 = arith.addf %132, %133 : vector<16x16xf32>
    %cst_62 = arith.constant 0.000000e+00 : f32
    %135 = vector.broadcast %cst_62 : f32 to vector<16x16xf32>
    %136 = arith.cmpf oge, %134, %135 : vector<16x16xf32>
    %cst_63 = arith.constant 2.000000e-01 : f32
    %137 = vector.broadcast %cst_63 : f32 to vector<16x16xf32>
    %138 = arith.mulf %137, %134 : vector<16x16xf32>
    %139 = arith.select %136, %134, %138 : vector<16x16xi1>, vector<16x16xf32>
    %140 = arith.addf %139, %2 : vector<16x16xf32>
    %cst_64 = arith.constant dense<0xFF800000> : vector<16xf32>
    %141 = vector.multi_reduction <maximumf>, %140, %cst_64 [1] : vector<16x16xf32> to vector<16xf32>
    %142 = vector.shape_cast %141 : vector<16xf32> to vector<16x1xf32>
    %143 = vector.broadcast %142 : vector<16x1xf32> to vector<16x16xf32>
    %144 = arith.subf %140, %143 : vector<16x16xf32>
    %145 = math.exp %144 : vector<16x16xf32>
    %cst_65 = arith.constant dense<0.000000e+00> : vector<16xf32>
    %146 = vector.multi_reduction <add>, %145, %cst_65 [1] : vector<16x16xf32> to vector<16xf32>
    %147 = vector.shape_cast %146 : vector<16xf32> to vector<16x1xf32>
    %148 = tpu.reciprocal %147 {approx = true} : vector<16x1xf32> -> vector<16x1xf32>
    %149 = vector.broadcast %148 : vector<16x1xf32> to vector<16x16xf32>
    %150 = arith.mulf %145, %149 : vector<16x16xf32>
    %151 = vector.extract_strided_slice %104 {offsets = [0, 32], sizes = [16, 32], strides = [1, 1]} : vector<16x128xf32> to vector<16x32xf32>
    %cst_66 = arith.constant dense<0.000000e+00> : vector<16x32xf32>
    %152 = tpu.matmul %150, %151, %cst_66 {dimension_numbers = #tpu.dot_dimension_numbers<[1], [0], [0], [1], [0, 0, 1, 1], [], []>} : vector<16x16xf32>, vector<16x32xf32>, vector<16x32xf32> -> vector<16x32xf32>
    %153 = arith.addf %129, %152 : vector<16x32xf32>
    %154 = vector.extract_strided_slice %105 {offsets = [0, 2], sizes = [16, 1], strides = [1, 1]} : vector<16x4xf32> to vector<16x1xf32>
    %155 = vector.extract_strided_slice %106 {offsets = [2, 0], sizes = [1, 16], strides = [1, 1]} : vector<4x16xf32> to vector<1x16xf32>
    %156 = vector.broadcast %154 : vector<16x1xf32> to vector<16x16xf32>
    %157 = vector.broadcast %155 : vector<1x16xf32> to vector<16x16xf32>
    %158 = arith.addf %156, %157 : vector<16x16xf32>
    %cst_67 = arith.constant 0.000000e+00 : f32
    %159 = vector.broadcast %cst_67 : f32 to vector<16x16xf32>
    %160 = arith.cmpf oge, %158, %159 : vector<16x16xf32>
    %cst_68 = arith.constant 2.000000e-01 : f32
    %161 = vector.broadcast %cst_68 : f32 to vector<16x16xf32>
    %162 = arith.mulf %161, %158 : vector<16x16xf32>
    %163 = arith.select %160, %158, %162 : vector<16x16xi1>, vector<16x16xf32>
    %164 = arith.addf %163, %2 : vector<16x16xf32>
    %cst_69 = arith.constant dense<0xFF800000> : vector<16xf32>
    %165 = vector.multi_reduction <maximumf>, %164, %cst_69 [1] : vector<16x16xf32> to vector<16xf32>
    %166 = vector.shape_cast %165 : vector<16xf32> to vector<16x1xf32>
    %167 = vector.broadcast %166 : vector<16x1xf32> to vector<16x16xf32>
    %168 = arith.subf %164, %167 : vector<16x16xf32>
    %169 = math.exp %168 : vector<16x16xf32>
    %cst_70 = arith.constant dense<0.000000e+00> : vector<16xf32>
    %170 = vector.multi_reduction <add>, %169, %cst_70 [1] : vector<16x16xf32> to vector<16xf32>
    %171 = vector.shape_cast %170 : vector<16xf32> to vector<16x1xf32>
    %172 = tpu.reciprocal %171 {approx = true} : vector<16x1xf32> -> vector<16x1xf32>
    %173 = vector.broadcast %172 : vector<16x1xf32> to vector<16x16xf32>
    %174 = arith.mulf %169, %173 : vector<16x16xf32>
    %175 = vector.extract_strided_slice %104 {offsets = [0, 64], sizes = [16, 32], strides = [1, 1]} : vector<16x128xf32> to vector<16x32xf32>
    %cst_71 = arith.constant dense<0.000000e+00> : vector<16x32xf32>
    %176 = tpu.matmul %174, %175, %cst_71 {dimension_numbers = #tpu.dot_dimension_numbers<[1], [0], [0], [1], [0, 0, 1, 1], [], []>} : vector<16x16xf32>, vector<16x32xf32>, vector<16x32xf32> -> vector<16x32xf32>
    %177 = arith.addf %153, %176 : vector<16x32xf32>
    %178 = vector.extract_strided_slice %105 {offsets = [0, 3], sizes = [16, 1], strides = [1, 1]} : vector<16x4xf32> to vector<16x1xf32>
    %179 = vector.extract_strided_slice %106 {offsets = [3, 0], sizes = [1, 16], strides = [1, 1]} : vector<4x16xf32> to vector<1x16xf32>
    %180 = vector.broadcast %178 : vector<16x1xf32> to vector<16x16xf32>
    %181 = vector.broadcast %179 : vector<1x16xf32> to vector<16x16xf32>
    %182 = arith.addf %180, %181 : vector<16x16xf32>
    %cst_72 = arith.constant 0.000000e+00 : f32
    %183 = vector.broadcast %cst_72 : f32 to vector<16x16xf32>
    %184 = arith.cmpf oge, %182, %183 : vector<16x16xf32>
    %cst_73 = arith.constant 2.000000e-01 : f32
    %185 = vector.broadcast %cst_73 : f32 to vector<16x16xf32>
    %186 = arith.mulf %185, %182 : vector<16x16xf32>
    %187 = arith.select %184, %182, %186 : vector<16x16xi1>, vector<16x16xf32>
    %188 = arith.addf %187, %2 : vector<16x16xf32>
    %cst_74 = arith.constant dense<0xFF800000> : vector<16xf32>
    %189 = vector.multi_reduction <maximumf>, %188, %cst_74 [1] : vector<16x16xf32> to vector<16xf32>
    %190 = vector.shape_cast %189 : vector<16xf32> to vector<16x1xf32>
    %191 = vector.broadcast %190 : vector<16x1xf32> to vector<16x16xf32>
    %192 = arith.subf %188, %191 : vector<16x16xf32>
    %193 = math.exp %192 : vector<16x16xf32>
    %cst_75 = arith.constant dense<0.000000e+00> : vector<16xf32>
    %194 = vector.multi_reduction <add>, %193, %cst_75 [1] : vector<16x16xf32> to vector<16xf32>
    %195 = vector.shape_cast %194 : vector<16xf32> to vector<16x1xf32>
    %196 = tpu.reciprocal %195 {approx = true} : vector<16x1xf32> -> vector<16x1xf32>
    %197 = vector.broadcast %196 : vector<16x1xf32> to vector<16x16xf32>
    %198 = arith.mulf %193, %197 : vector<16x16xf32>
    %199 = vector.extract_strided_slice %104 {offsets = [0, 96], sizes = [16, 32], strides = [1, 1]} : vector<16x128xf32> to vector<16x32xf32>
    %cst_76 = arith.constant dense<0.000000e+00> : vector<16x32xf32>
    %200 = tpu.matmul %198, %199, %cst_76 {dimension_numbers = #tpu.dot_dimension_numbers<[1], [0], [0], [1], [0, 0, 1, 1], [], []>} : vector<16x16xf32>, vector<16x32xf32>, vector<16x32xf32> -> vector<16x32xf32>
    %201 = arith.addf %177, %200 : vector<16x32xf32>
    %cst_77 = arith.constant 2.500000e-01 : f32
    %202 = vector.broadcast %cst_77 : f32 to vector<16x32xf32>
    %203 = arith.mulf %201, %202 : vector<16x32xf32>
    %204 = vector.broadcast %103 : vector<1x32xf32> to vector<16x32xf32>
    %205 = arith.addf %203, %204 : vector<16x32xf32>
    %cst_78 = arith.constant 0.000000e+00 : f32
    %206 = vector.broadcast %cst_78 : f32 to vector<16x32xf32>
    %207 = arith.maximumf %205, %206 : vector<16x32xf32>
    %c232 = arith.constant 232 : index
    %c0_79 = arith.constant 0 : index
    %208 = vector.load %arg3[%c232, %c0_79] : memref<520x128xf32, #tpu.memory_space<vmem>>, vector<32x128xf32>
    %c456 = arith.constant 456 : index
    %c0_80 = arith.constant 0 : index
    %209 = vector.load %arg3[%c456, %c0_80] : memref<520x128xf32, #tpu.memory_space<vmem>>, vector<4x128xf32>
    %c464 = arith.constant 464 : index
    %c0_81 = arith.constant 0 : index
    %210 = vector.load %arg3[%c464, %c0_81] : memref<520x128xf32, #tpu.memory_space<vmem>>, vector<4x128xf32>
    %c472 = arith.constant 472 : index
    %c0_82 = arith.constant 0 : index
    %211 = vector.load %arg3[%c472, %c0_82] : memref<520x128xf32, #tpu.memory_space<vmem>>, vector<1x32xf32>
    %cst_83 = arith.constant dense<0.000000e+00> : vector<16x128xf32>
    %212 = tpu.matmul %207, %208, %cst_83 {dimension_numbers = #tpu.dot_dimension_numbers<[1], [0], [0], [1], [0, 0, 1, 1], [], []>} : vector<16x32xf32>, vector<32x128xf32>, vector<16x128xf32> -> vector<16x128xf32>
    "tpu.trace_start"() <{level = 10 : i32, message = "nk,hk->nh"}> : () -> ()
    %cst_84 = arith.constant dense<0.000000e+00> : vector<16x4xf32>
    %213 = tpu.matmul %212, %210, %cst_84 {dimension_numbers = #tpu.dot_dimension_numbers<[1], [1], [0], [0], [0, 0, 1, 0], [], []>} : vector<16x128xf32>, vector<4x128xf32>, vector<16x4xf32> -> vector<16x4xf32>
    "tpu.trace_stop"() : () -> ()
    "tpu.trace_start"() <{level = 10 : i32, message = "hk,nk->hn"}> : () -> ()
    %cst_85 = arith.constant dense<0.000000e+00> : vector<4x16xf32>
    %214 = tpu.matmul %209, %212, %cst_85 {dimension_numbers = #tpu.dot_dimension_numbers<[1], [1], [0], [0], [0, 0, 1, 0], [], []>} : vector<4x128xf32>, vector<16x128xf32>, vector<4x16xf32> -> vector<4x16xf32>
    "tpu.trace_stop"() : () -> ()
    %215 = vector.extract_strided_slice %213 {offsets = [0, 0], sizes = [16, 1], strides = [1, 1]} : vector<16x4xf32> to vector<16x1xf32>
    %216 = vector.extract_strided_slice %214 {offsets = [0, 0], sizes = [1, 16], strides = [1, 1]} : vector<4x16xf32> to vector<1x16xf32>
    %217 = vector.broadcast %215 : vector<16x1xf32> to vector<16x16xf32>
    %218 = vector.broadcast %216 : vector<1x16xf32> to vector<16x16xf32>
    %219 = arith.addf %217, %218 : vector<16x16xf32>
    %cst_86 = arith.constant 0.000000e+00 : f32
    %220 = vector.broadcast %cst_86 : f32 to vector<16x16xf32>
    %221 = arith.cmpf oge, %219, %220 : vector<16x16xf32>
    %cst_87 = arith.constant 2.000000e-01 : f32
    %222 = vector.broadcast %cst_87 : f32 to vector<16x16xf32>
    %223 = arith.mulf %222, %219 : vector<16x16xf32>
    %224 = arith.select %221, %219, %223 : vector<16x16xi1>, vector<16x16xf32>
    %225 = arith.addf %224, %2 : vector<16x16xf32>
    %cst_88 = arith.constant dense<0xFF800000> : vector<16xf32>
    %226 = vector.multi_reduction <maximumf>, %225, %cst_88 [1] : vector<16x16xf32> to vector<16xf32>
    %227 = vector.shape_cast %226 : vector<16xf32> to vector<16x1xf32>
    %228 = vector.broadcast %227 : vector<16x1xf32> to vector<16x16xf32>
    %229 = arith.subf %225, %228 : vector<16x16xf32>
    %230 = math.exp %229 : vector<16x16xf32>
    %cst_89 = arith.constant dense<0.000000e+00> : vector<16xf32>
    %231 = vector.multi_reduction <add>, %230, %cst_89 [1] : vector<16x16xf32> to vector<16xf32>
    %232 = vector.shape_cast %231 : vector<16xf32> to vector<16x1xf32>
    %233 = tpu.reciprocal %232 {approx = true} : vector<16x1xf32> -> vector<16x1xf32>
    %234 = vector.broadcast %233 : vector<16x1xf32> to vector<16x16xf32>
    %235 = arith.mulf %230, %234 : vector<16x16xf32>
    %236 = vector.extract_strided_slice %212 {offsets = [0, 0], sizes = [16, 32], strides = [1, 1]} : vector<16x128xf32> to vector<16x32xf32>
    %cst_90 = arith.constant dense<0.000000e+00> : vector<16x32xf32>
    %237 = tpu.matmul %235, %236, %cst_90 {dimension_numbers = #tpu.dot_dimension_numbers<[1], [0], [0], [1], [0, 0, 1, 1], [], []>} : vector<16x16xf32>, vector<16x32xf32>, vector<16x32xf32> -> vector<16x32xf32>
    %238 = vector.extract_strided_slice %213 {offsets = [0, 1], sizes = [16, 1], strides = [1, 1]} : vector<16x4xf32> to vector<16x1xf32>
    %239 = vector.extract_strided_slice %214 {offsets = [1, 0], sizes = [1, 16], strides = [1, 1]} : vector<4x16xf32> to vector<1x16xf32>
    %240 = vector.broadcast %238 : vector<16x1xf32> to vector<16x16xf32>
    %241 = vector.broadcast %239 : vector<1x16xf32> to vector<16x16xf32>
    %242 = arith.addf %240, %241 : vector<16x16xf32>
    %cst_91 = arith.constant 0.000000e+00 : f32
    %243 = vector.broadcast %cst_91 : f32 to vector<16x16xf32>
    %244 = arith.cmpf oge, %242, %243 : vector<16x16xf32>
    %cst_92 = arith.constant 2.000000e-01 : f32
    %245 = vector.broadcast %cst_92 : f32 to vector<16x16xf32>
    %246 = arith.mulf %245, %242 : vector<16x16xf32>
    %247 = arith.select %244, %242, %246 : vector<16x16xi1>, vector<16x16xf32>
    %248 = arith.addf %247, %2 : vector<16x16xf32>
    %cst_93 = arith.constant dense<0xFF800000> : vector<16xf32>
    %249 = vector.multi_reduction <maximumf>, %248, %cst_93 [1] : vector<16x16xf32> to vector<16xf32>
    %250 = vector.shape_cast %249 : vector<16xf32> to vector<16x1xf32>
    %251 = vector.broadcast %250 : vector<16x1xf32> to vector<16x16xf32>
    %252 = arith.subf %248, %251 : vector<16x16xf32>
    %253 = math.exp %252 : vector<16x16xf32>
    %cst_94 = arith.constant dense<0.000000e+00> : vector<16xf32>
    %254 = vector.multi_reduction <add>, %253, %cst_94 [1] : vector<16x16xf32> to vector<16xf32>
    %255 = vector.shape_cast %254 : vector<16xf32> to vector<16x1xf32>
    %256 = tpu.reciprocal %255 {approx = true} : vector<16x1xf32> -> vector<16x1xf32>
    %257 = vector.broadcast %256 : vector<16x1xf32> to vector<16x16xf32>
    %258 = arith.mulf %253, %257 : vector<16x16xf32>
    %259 = vector.extract_strided_slice %212 {offsets = [0, 32], sizes = [16, 32], strides = [1, 1]} : vector<16x128xf32> to vector<16x32xf32>
    %cst_95 = arith.constant dense<0.000000e+00> : vector<16x32xf32>
    %260 = tpu.matmul %258, %259, %cst_95 {dimension_numbers = #tpu.dot_dimension_numbers<[1], [0], [0], [1], [0, 0, 1, 1], [], []>} : vector<16x16xf32>, vector<16x32xf32>, vector<16x32xf32> -> vector<16x32xf32>
    %261 = arith.addf %237, %260 : vector<16x32xf32>
    %262 = vector.extract_strided_slice %213 {offsets = [0, 2], sizes = [16, 1], strides = [1, 1]} : vector<16x4xf32> to vector<16x1xf32>
    %263 = vector.extract_strided_slice %214 {offsets = [2, 0], sizes = [1, 16], strides = [1, 1]} : vector<4x16xf32> to vector<1x16xf32>
    %264 = vector.broadcast %262 : vector<16x1xf32> to vector<16x16xf32>
    %265 = vector.broadcast %263 : vector<1x16xf32> to vector<16x16xf32>
    %266 = arith.addf %264, %265 : vector<16x16xf32>
    %cst_96 = arith.constant 0.000000e+00 : f32
    %267 = vector.broadcast %cst_96 : f32 to vector<16x16xf32>
    %268 = arith.cmpf oge, %266, %267 : vector<16x16xf32>
    %cst_97 = arith.constant 2.000000e-01 : f32
    %269 = vector.broadcast %cst_97 : f32 to vector<16x16xf32>
    %270 = arith.mulf %269, %266 : vector<16x16xf32>
    %271 = arith.select %268, %266, %270 : vector<16x16xi1>, vector<16x16xf32>
    %272 = arith.addf %271, %2 : vector<16x16xf32>
    %cst_98 = arith.constant dense<0xFF800000> : vector<16xf32>
    %273 = vector.multi_reduction <maximumf>, %272, %cst_98 [1] : vector<16x16xf32> to vector<16xf32>
    %274 = vector.shape_cast %273 : vector<16xf32> to vector<16x1xf32>
    %275 = vector.broadcast %274 : vector<16x1xf32> to vector<16x16xf32>
    %276 = arith.subf %272, %275 : vector<16x16xf32>
    %277 = math.exp %276 : vector<16x16xf32>
    %cst_99 = arith.constant dense<0.000000e+00> : vector<16xf32>
    %278 = vector.multi_reduction <add>, %277, %cst_99 [1] : vector<16x16xf32> to vector<16xf32>
    %279 = vector.shape_cast %278 : vector<16xf32> to vector<16x1xf32>
    %280 = tpu.reciprocal %279 {approx = true} : vector<16x1xf32> -> vector<16x1xf32>
    %281 = vector.broadcast %280 : vector<16x1xf32> to vector<16x16xf32>
    %282 = arith.mulf %277, %281 : vector<16x16xf32>
    %283 = vector.extract_strided_slice %212 {offsets = [0, 64], sizes = [16, 32], strides = [1, 1]} : vector<16x128xf32> to vector<16x32xf32>
    %cst_100 = arith.constant dense<0.000000e+00> : vector<16x32xf32>
    %284 = tpu.matmul %282, %283, %cst_100 {dimension_numbers = #tpu.dot_dimension_numbers<[1], [0], [0], [1], [0, 0, 1, 1], [], []>} : vector<16x16xf32>, vector<16x32xf32>, vector<16x32xf32> -> vector<16x32xf32>
    %285 = arith.addf %261, %284 : vector<16x32xf32>
    %286 = vector.extract_strided_slice %213 {offsets = [0, 3], sizes = [16, 1], strides = [1, 1]} : vector<16x4xf32> to vector<16x1xf32>
    %287 = vector.extract_strided_slice %214 {offsets = [3, 0], sizes = [1, 16], strides = [1, 1]} : vector<4x16xf32> to vector<1x16xf32>
    %288 = vector.broadcast %286 : vector<16x1xf32> to vector<16x16xf32>
    %289 = vector.broadcast %287 : vector<1x16xf32> to vector<16x16xf32>
    %290 = arith.addf %288, %289 : vector<16x16xf32>
    %cst_101 = arith.constant 0.000000e+00 : f32
    %291 = vector.broadcast %cst_101 : f32 to vector<16x16xf32>
    %292 = arith.cmpf oge, %290, %291 : vector<16x16xf32>
    %cst_102 = arith.constant 2.000000e-01 : f32
    %293 = vector.broadcast %cst_102 : f32 to vector<16x16xf32>
    %294 = arith.mulf %293, %290 : vector<16x16xf32>
    %295 = arith.select %292, %290, %294 : vector<16x16xi1>, vector<16x16xf32>
    %296 = arith.addf %295, %2 : vector<16x16xf32>
    %cst_103 = arith.constant dense<0xFF800000> : vector<16xf32>
    %297 = vector.multi_reduction <maximumf>, %296, %cst_103 [1] : vector<16x16xf32> to vector<16xf32>
    %298 = vector.shape_cast %297 : vector<16xf32> to vector<16x1xf32>
    %299 = vector.broadcast %298 : vector<16x1xf32> to vector<16x16xf32>
    %300 = arith.subf %296, %299 : vector<16x16xf32>
    %301 = math.exp %300 : vector<16x16xf32>
    %cst_104 = arith.constant dense<0.000000e+00> : vector<16xf32>
    %302 = vector.multi_reduction <add>, %301, %cst_104 [1] : vector<16x16xf32> to vector<16xf32>
    %303 = vector.shape_cast %302 : vector<16xf32> to vector<16x1xf32>
    %304 = tpu.reciprocal %303 {approx = true} : vector<16x1xf32> -> vector<16x1xf32>
    %305 = vector.broadcast %304 : vector<16x1xf32> to vector<16x16xf32>
    %306 = arith.mulf %301, %305 : vector<16x16xf32>
    %307 = vector.extract_strided_slice %212 {offsets = [0, 96], sizes = [16, 32], strides = [1, 1]} : vector<16x128xf32> to vector<16x32xf32>
    %cst_105 = arith.constant dense<0.000000e+00> : vector<16x32xf32>
    %308 = tpu.matmul %306, %307, %cst_105 {dimension_numbers = #tpu.dot_dimension_numbers<[1], [0], [0], [1], [0, 0, 1, 1], [], []>} : vector<16x16xf32>, vector<16x32xf32>, vector<16x32xf32> -> vector<16x32xf32>
    %309 = arith.addf %285, %308 : vector<16x32xf32>
    %cst_106 = arith.constant 2.500000e-01 : f32
    %310 = vector.broadcast %cst_106 : f32 to vector<16x32xf32>
    %311 = arith.mulf %309, %310 : vector<16x32xf32>
    %312 = vector.broadcast %211 : vector<1x32xf32> to vector<16x32xf32>
    %313 = arith.addf %311, %312 : vector<16x32xf32>
    %314 = arith.addf %313, %207 : vector<16x32xf32>
    %cst_107 = arith.constant 0.000000e+00 : f32
    %315 = vector.broadcast %cst_107 : f32 to vector<16x32xf32>
    %316 = arith.maximumf %314, %315 : vector<16x32xf32>
    %c264 = arith.constant 264 : index
    %c0_108 = arith.constant 0 : index
    %317 = vector.load %arg3[%c264, %c0_108] : memref<520x128xf32, #tpu.memory_space<vmem>>, vector<32x128xf32>
    %cst_109 = arith.constant dense<0.000000e+00> : vector<16x128xf32>
    %318 = tpu.matmul %316, %317, %cst_109 {dimension_numbers = #tpu.dot_dimension_numbers<[1], [0], [0], [1], [0, 0, 1, 1], [], []>} : vector<16x32xf32>, vector<32x128xf32>, vector<16x128xf32> -> vector<16x128xf32>
    %c480 = arith.constant 480 : index
    %c0_110 = arith.constant 0 : index
    %319 = vector.load %arg3[%c480, %c0_110] : memref<520x128xf32, #tpu.memory_space<vmem>>, vector<1x128xf32>
    %320 = vector.broadcast %319 : vector<1x128xf32> to vector<16x128xf32>
    %321 = arith.addf %318, %320 : vector<16x128xf32>
    %c0_111 = arith.constant 0 : index
    %c0_112 = arith.constant 0 : index
    %322 = vector.load %arg4[%c0_111, %c0_112] : memref<24x128xf32, #tpu.memory_space<vmem>>, vector<16x128xf32>
    tpu.vector_store %arg4[%c0_111, %c0_112], %321 {strides = array<i32>} : memref<24x128xf32, #tpu.memory_space<vmem>>, vector<16x128xf32>,
    %c80 = arith.constant 80 : index
    %c0_113 = arith.constant 0 : index
    %323 = vector.load %arg2[%c80, %c0_113] : memref<88x128xf32, #tpu.memory_space<vmem>>, vector<8x16xf32>
    %cst_114 = arith.constant dense<0.000000e+00> : vector<8x32xf32>
    %324 = tpu.matmul %323, %316, %cst_114 {dimension_numbers = #tpu.dot_dimension_numbers<[1], [0], [0], [1], [0, 0, 1, 1], [], []>} : vector<8x16xf32>, vector<16x32xf32>, vector<8x32xf32> -> vector<8x32xf32>
    %c296 = arith.constant 296 : index
    %c0_115 = arith.constant 0 : index
    %325 = vector.load %arg3[%c296, %c0_115] : memref<520x128xf32, #tpu.memory_space<vmem>>, vector<32x32xf32>
    %cst_116 = arith.constant dense<0.000000e+00> : vector<8x32xf32>
    %326 = tpu.matmul %324, %325, %cst_116 {dimension_numbers = #tpu.dot_dimension_numbers<[1], [0], [0], [1], [0, 0, 1, 1], [], []>} : vector<8x32xf32>, vector<32x32xf32>, vector<8x32xf32> -> vector<8x32xf32>
    %c488 = arith.constant 488 : index
    %c0_117 = arith.constant 0 : index
    %327 = vector.load %arg3[%c488, %c0_117] : memref<520x128xf32, #tpu.memory_space<vmem>>, vector<1x32xf32>
    %328 = vector.broadcast %327 : vector<1x32xf32> to vector<8x32xf32>
    %329 = arith.addf %326, %328 : vector<8x32xf32>
    %c496 = arith.constant 496 : index
    %c0_118 = arith.constant 0 : index
    %330 = vector.load %arg3[%c496, %c0_118] : memref<520x128xf32, #tpu.memory_space<vmem>>, vector<1x32xf32>
    %c504 = arith.constant 504 : index
    %c0_119 = arith.constant 0 : index
    %331 = vector.load %arg3[%c504, %c0_119] : memref<520x128xf32, #tpu.memory_space<vmem>>, vector<1x32xf32>
    %cst_120 = arith.constant dense<0.000000e+00> : vector<8xf32>
    %332 = vector.multi_reduction <add>, %329, %cst_120 [1] : vector<8x32xf32> to vector<8xf32>
    %333 = vector.shape_cast %332 : vector<8xf32> to vector<8x1xf32>
    %cst_121 = arith.constant 3.200000e+01 : f32
    %334 = vector.broadcast %cst_121 : f32 to vector<8x1xf32>
    %335 = arith.divf %333, %334 : vector<8x1xf32>
    %336 = vector.broadcast %335 : vector<8x1xf32> to vector<8x32xf32>
    %337 = arith.subf %329, %336 : vector<8x32xf32>
    %338 = arith.mulf %337, %337 : vector<8x32xf32>
    %cst_122 = arith.constant dense<0.000000e+00> : vector<8xf32>
    %339 = vector.multi_reduction <add>, %338, %cst_122 [1] : vector<8x32xf32> to vector<8xf32>
    %340 = vector.shape_cast %339 : vector<8xf32> to vector<8x1xf32>
    %cst_123 = arith.constant 3.200000e+01 : f32
    %341 = vector.broadcast %cst_123 : f32 to vector<8x1xf32>
    %342 = arith.divf %340, %341 : vector<8x1xf32>
    %343 = vector.broadcast %335 : vector<8x1xf32> to vector<8x32xf32>
    %344 = arith.subf %329, %343 : vector<8x32xf32>
    %cst_124 = arith.constant 9.99999974E-6 : f32
    %345 = vector.broadcast %cst_124 : f32 to vector<8x1xf32>
    %346 = arith.addf %342, %345 : vector<8x1xf32>
    %347 = math.rsqrt %346 : vector<8x1xf32>
    %348 = vector.broadcast %347 : vector<8x1xf32> to vector<8x32xf32>
    %349 = arith.mulf %344, %348 : vector<8x32xf32>
    %350 = vector.broadcast %330 : vector<1x32xf32> to vector<8x32xf32>
    %351 = arith.mulf %349, %350 : vector<8x32xf32>
    %352 = vector.broadcast %331 : vector<1x32xf32> to vector<8x32xf32>
    %353 = arith.addf %351, %352 : vector<8x32xf32>
    %cst_125 = arith.constant 0.000000e+00 : f32
    %354 = vector.broadcast %cst_125 : f32 to vector<8x32xf32>
    %355 = arith.maximumf %353, %354 : vector<8x32xf32>
    %c328 = arith.constant 328 : index
    %c0_126 = arith.constant 0 : index
    %356 = vector.load %arg3[%c328, %c0_126] : memref<520x128xf32, #tpu.memory_space<vmem>>, vector<32x128xf32>
    %cst_127 = arith.constant dense<0.000000e+00> : vector<8x128xf32>
    %357 = tpu.matmul %355, %356, %cst_127 {dimension_numbers = #tpu.dot_dimension_numbers<[1], [0], [0], [1], [0, 0, 1, 1], [], []>} : vector<8x32xf32>, vector<32x128xf32>, vector<8x128xf32> -> vector<8x128xf32>
    %c512 = arith.constant 512 : index
    %c0_128 = arith.constant 0 : index
    %358 = vector.load %arg3[%c512, %c0_128] : memref<520x128xf32, #tpu.memory_space<vmem>>, vector<1x128xf32>
    %359 = vector.broadcast %358 : vector<1x128xf32> to vector<8x128xf32>
    %360 = arith.addf %357, %359 : vector<8x128xf32>
    %c16 = arith.constant 16 : index
    %c0_129 = arith.constant 0 : index
    %361 = vector.load %arg4[%c16, %c0_129] : memref<24x128xf32, #tpu.memory_space<vmem>>, vector<8x128xf32>
    tpu.vector_store %arg4[%c16, %c0_129], %360 {strides = array<i32>} : memref<24x128xf32, #tpu.memory_space<vmem>>, vector<8x128xf32>,
    return
  }
}

</mosaic_0001>

<llo_original>
// kernel: multihead_gsgat_forward.1
$region0: #{multihead_gsgat_forward.1}
  #allocation0 [shape = 'u32[]', space=smem, size = 0x4, offset = 0x4, fixed_abs, tag = 'smem constant byte address 0x4 - core index']
  #allocation1 [shape = 'u32[144,128]{1,0:T(1,128)}', space=vmem, size = 0x12000, scoped, tag = 'internal scratch']
  %s0 = inlined_call_operand.vmem [shape: f32[16,8], index: 0, kind: input, shape index: {}]
  %s1 = inlined_call_operand.vmem [shape: f32[32,4], index: 1, kind: input, shape index: {}]
  %s2 = inlined_call_operand.hbm [shape: f32[88,128], index: 2, kind: input, shape index: {}]
  %s3 = inlined_call_operand.hbm [shape: f32[520,128], index: 3, kind: input, shape index: {}]
  %s4 = inlined_call_operand.vmem [shape: f32[24,128], index: 4, kind: output, shape index: {}]
  %s5 = sld [smem:[#allocation0]]
  $region34: #{multihead_gsgat_forward.1} parent=0
    _
  %s7 = ssub.s32 1, %s5
  %s8 = scalar_select 0, %s7, %s5
  $region1: #{multihead_gsgat_forward.1} parent=0
    #allocation2 [shape = 'u8[45056]{0}', space=vmem, size = 0xb000, scoped, tag = 'input window, operand 2, single buffered']
    #allocation3 [shape = 's32[1]{0}', space=sflag, size = 0x4, scoped, tag = 'scoped memory for multihead_gsgat_forward.1']
    #allocation4 [shape = 'u8[266240]{0}', space=vmem, size = 0x41000, scoped, tag = 'input window, operand 3, single buffered']
    #allocation5 [shape = 's32[1]{0}', space=sflag, size = 0x4, scoped, tag = 'scoped memory for multihead_gsgat_forward.1']
    %9 = vsyncpa [#allocation3], 0
    %10 = vsyncpa [#allocation5], 0
    // Predicated region
    $region2: #{multihead_gsgat_forward.1} parent=1 // pred_check
      _
    $region3: #{multihead_gsgat_forward.1} parent=1 // pred_check_branch
      %12 = sbr.rel (0) target = $region5
    $region4: #{multihead_gsgat_forward.1} parent=1 // pred_region
      _
    $region5: #{multihead_gsgat_forward.1} parent=1 // pred_fallthru
      _
    // Predicated region
    $region6: #{multihead_gsgat_forward.1} parent=1 // pred_check
      _
    $region7: #{multihead_gsgat_forward.1} parent=1 // pred_check_branch
      %14 = sbr.rel (0) target = $region9
    $region8: #{multihead_gsgat_forward.1} parent=1 // pred_region
      _
    $region9: #{multihead_gsgat_forward.1} parent=1 // pred_fallthru
      _
    // Predicated region
    $region10: #{multihead_gsgat_forward.1} parent=1 // pred_check
      _
    $region11: #{multihead_gsgat_forward.1} parent=1 // pred_check_branch
      %16 = sbr.rel (0) target = $region13
    $region12: #{multihead_gsgat_forward.1} parent=1 // pred_region
      %s18 = ssub.s32 1408, 1408
      %19 = vsyncadd [#allocation3], %s18
      %s20 = sshll.u32 [#allocation2], 4
      %s21 = int_to_ptr.vmem [resolvable:$true] %s20
      %26 = dma.hbm_to_vmem [thread:$0]  %s2, 1408, %s21, [#allocation3], 128, 128, 8
    $region13: #{multihead_gsgat_forward.1} parent=1 // pred_fallthru
      _
    // Predicated region
    $region14: #{multihead_gsgat_forward.1} parent=1 // pred_check
      _
    $region15: #{multihead_gsgat_forward.1} parent=1 // pred_check_branch
      %28 = sbr.rel (0) target = $region17
    $region16: #{multihead_gsgat_forward.1} parent=1 // pred_region
      %s30 = ssub.s32 8320, 8320
      %31 = vsyncadd [#allocation5], %s30
      %s32 = sshll.u32 [#allocation4], 4
      %s33 = int_to_ptr.vmem [resolvable:$true] %s32
      %38 = dma.hbm_to_vmem [thread:$0]  %s3, 8320, %s33, [#allocation5], 128, 128, 8
    $region17: #{multihead_gsgat_forward.1} parent=1 // pred_fallthru
      _
    // Predicated region
    $region18: #{multihead_gsgat_forward.1} parent=1 // pred_check
      _
    $region19: #{multihead_gsgat_forward.1} parent=1 // pred_check_branch
      %40 = sbr.rel (0) target = $region21
    $region20: #{multihead_gsgat_forward.1} parent=1 // pred_region
      %41 = dma.done [#allocation3], 1408
    $region21: #{multihead_gsgat_forward.1} parent=1 // pred_fallthru
      _
    // Predicated region
    $region22: #{multihead_gsgat_forward.1} parent=1 // pred_check
      _
    $region23: #{multihead_gsgat_forward.1} parent=1 // pred_check_branch
      %43 = sbr.rel (0) target = $region25
    $region24: #{multihead_gsgat_forward.1} parent=1 // pred_region
      %44 = dma.done [#allocation5], 8320
    $region25: #{multihead_gsgat_forward.1} parent=1 // pred_fallthru
      _
    %v45 = vld [vmem:[%s0] sm:$0xff]
    %v46 = vld [vmem:[%s0 + $0x8] sm:$0xff]
    %v47 = vld [vmem:[#allocation2 + $0x30] sm:$0xff]
    %v48 = vld [vmem:[#allocation2 + $0x38] sm:$0xff]
    %v49 = vld [vmem:[#allocation2 + $0x40] sm:$0xff]
    %v50 = vld [vmem:[#allocation2 + $0x48] sm:$0xff]
    %v51 = vld [vmem:[%s1] sm:$0xff]
    %v52 = vld [vmem:[%s1 + $0x8] sm:$0xff]
    %v53 = vld [vmem:[%s1 + $0x10] sm:$0xff]
    %v54 = vld [vmem:[%s1 + $0x18] sm:$0xff]
    %v55 = vld [vmem:[#allocation4] sm:$0xf]
    %v56 = vld [vmem:[#allocation4 + $0x168] sm:$0x1]
    %v57 = vlaneseq
    %v58 = vshrl.u32 %v57, 7
    %v59 = vsub.s32 0, %v58
    %v60 = vrot.slane %v56, %v59
    %vm61 = vcmask 31744
    %v63 = vsel %vm61, %v51, 0
    %v66 = vsel %vm61, %v52, 0
    %v69 = vsel %vm61, %v53, 0
    %v72 = vsel %vm61, %v54, 0
    %vm74 = vcmask 1043456
    %v76 = vsel %vm74, %v55, 0
    %78 = vmatprep.subr.mxu0 0.0
    %79 = vmatpush1.msra.mxu0 0.0
    %80 = vmatprep.subr.mxu0 0.0
    %81 = vmatpush1.msra.mxu0 0.0
    %82 = vmatprep.subr.mxu0 0.0
    %83 = vmatpush1.msra.mxu0 0.0
    %84 = vmatprep.subr.mxu0 0.0
    %85 = vmatpush1.msra.mxu0 0.0
    %86 = vmatprep.subr.mxu0 0.0
    %87 = vmatpush1.msra.mxu0 0.0
    %88 = vmatprep.subr.mxu0 0.0
    %89 = vmatpush1.msra.mxu0 0.0
    %90 = vmatprep.subr.mxu0 0.0
    %91 = vmatpush1.msra.mxu0 0.0
    %92 = vmatprep.subr.mxu0 0.0
    %93 = vmatpush1.msra.mxu0 0.0
    %94 = vmatprep.subr.mxu0 0.0
    %95 = vmatpush1.msra.mxu0 0.0
    %96 = vmatprep.subr.mxu0 0.0
    %97 = vmatpush1.msra.mxu0 0.0
    %98 = vmatprep.subr.mxu0 0.0
    %99 = vmatpush1.msra.mxu0 0.0
    %100 = vmatprep.subr.mxu0 0.0
    %101 = vmatpush1.msra.mxu0 0.0
    %102 = vmatprep.subr.mxu0 0.0
    %103 = vmatpush1.msra.mxu0 0.0
    %104 = vmatprep.subr.mxu0 0.0
    %105 = vmatpush1.msra.mxu0 0.0
    %106 = vmatprep.subr.mxu0 0.0
    %107 = vmatpush1.msra.mxu0 0.0
    %108 = vmatprep.subr.mxu0 0.0
    %109 = vmatpush1.msra.mxu0 %v76
    %110 = vmatprep.subr.mxu0 0.0
    %111 = vmatpush2.msra.mxu0 0.0
    %112 = vmatprep.subr.mxu0 0.0
    %113 = vmatpush2.msra.mxu0 0.0
    %114 = vmatprep.subr.mxu0 0.0
    %115 = vmatpush2.msra.mxu0 0.0
    %116 = vmatprep.subr.mxu0 0.0
    %117 = vmatpush2.msra.mxu0 0.0
    %118 = vmatprep.subr.mxu0 0.0
    %119 = vmatpush2.msra.mxu0 0.0
    %120 = vmatprep.subr.mxu0 0.0
    %121 = vmatpush2.msra.mxu0 0.0
    %122 = vmatprep.subr.mxu0 0.0
    %123 = vmatpush2.msra.mxu0 0.0
    %124 = vmatprep.subr.mxu0 0.0
    %125 = vmatpush2.msra.mxu0 0.0
    %126 = vmatprep.subr.mxu0 0.0
    %127 = vmatpush2.msra.mxu0 0.0
    %128 = vmatprep.subr.mxu0 0.0
    %129 = vmatpush2.msra.mxu0 0.0
    %130 = vmatprep.subr.mxu0 0.0
    %131 = vmatpush2.msra.mxu0 0.0
    %132 = vmatprep.subr.mxu0 0.0
    %133 = vmatpush2.msra.mxu0 0.0
    %134 = vmatprep.subr.mxu0 0.0
    %135 = vmatpush2.msra.mxu0 0.0
    %136 = vmatprep.subr.mxu0 0.0
    %137 = vmatpush2.msra.mxu0 0.0
    %138 = vmatprep.subr.mxu0 0.0
    %139 = vmatpush2.msra.mxu0 0.0
    %140 = vmatprep.subr.mxu0 0.0
    %141 = vmatpush2.msra.mxu0 0.0
    %142 = vmatprep.mubr.f32.mxu0 0.0
    %143 = vmatmul.mubr.f32.gmra.mxu0 %v63
    %v144 = vpop.f32.mrf.mxu0
    %v145 = vadd.f32 %v60, %v144
    %v146 = vpop.f32.mrf.mxu0
    %147 = vmatprep.mubr.f32.mxu0 0.0
    %148 = vmatmul.mubr.f32.gmra.mxu0 %v66
    %v149 = vpop.f32.mrf.mxu0
    %v150 = vadd.f32 %v60, %v149
    %v151 = vpop.f32.mrf.mxu0
    %152 = vmatprep.mubr.f32.mxu0 0.0
    %153 = vmatmul.mubr.f32.gmra.mxu0 %v69
    %v154 = vpop.f32.mrf.mxu0
    %v155 = vadd.f32 %v60, %v154
    %v156 = vpop.f32.mrf.mxu0
    %157 = vmatprep.mubr.f32.mxu0 0.0
    %158 = vmatmul.mubr.f32.gmra.mxu0 %v72
    %v159 = vpop.f32.mrf.mxu0
    %v160 = vadd.f32 %v60, %v159
    %v161 = vpop.f32.mrf.mxu0
    %162 = vdwg.mxu0
    %v163 = vmax.f32 %v145, 0.0
    %v164 = vmax.f32 %v150, 0.0
    %v165 = vmax.f32 %v155, 0.0
    %v166 = vmax.f32 %v160, 0.0
    %v167 = vld [vmem:[#allocation4 + $0x8] sm:$0xff]
    %v168 = vld [vmem:[#allocation4 + $0x10] sm:$0xff]
    %v169 = vld [vmem:[#allocation4 + $0x18] sm:$0xff]
    %v170 = vld [vmem:[#allocation4 + $0x20] sm:$0xff]
    %v171 = vld [vmem:[#allocation4 + $0x170] sm:$0x1]
    %v172 = vlaneseq
    %v173 = vshrl.u32 %v172, 7
    %v174 = vsub.s32 0, %v173
    %v175 = vrot.slane %v171, %v174
    %vm176 = vcmask 261120
    %v178 = vsel %vm176, %v163, 0
    %v181 = vsel %vm176, %v164, 0
    %v184 = vsel %vm176, %v165, 0
    %v187 = vsel %vm176, %v166, 0
    %189 = vmatprep.subr.mxu0 0.0
    %190 = vmatpush1.msra.mxu0 0.0
    %191 = vmatprep.subr.mxu0 0.0
    %192 = vmatpush1.msra.mxu0 0.0
    %193 = vmatprep.subr.mxu0 0.0
    %194 = vmatpush1.msra.mxu0 0.0
    %195 = vmatprep.subr.mxu0 0.0
    %196 = vmatpush1.msra.mxu0 0.0
    %197 = vmatprep.subr.mxu0 0.0
    %198 = vmatpush1.msra.mxu0 0.0
    %199 = vmatprep.subr.mxu0 0.0
    %200 = vmatpush1.msra.mxu0 0.0
    %201 = vmatprep.subr.mxu0 0.0
    %202 = vmatpush1.msra.mxu0 0.0
    %203 = vmatprep.subr.mxu0 0.0
    %204 = vmatpush1.msra.mxu0 0.0
    %205 = vmatprep.subr.mxu0 0.0
    %206 = vmatpush1.msra.mxu0 0.0
    %207 = vmatprep.subr.mxu0 0.0
    %208 = vmatpush1.msra.mxu0 0.0
    %209 = vmatprep.subr.mxu0 0.0
    %210 = vmatpush1.msra.mxu0 0.0
    %211 = vmatprep.subr.mxu0 0.0
    %212 = vmatpush1.msra.mxu0 0.0
    %213 = vmatprep.subr.mxu0 0.0
    %214 = vmatpush1.msra.mxu0 %v170
    %215 = vmatprep.subr.mxu0 0.0
    %216 = vmatpush1.msra.mxu0 %v169
    %217 = vmatprep.subr.mxu0 0.0
    %218 = vmatpush1.msra.mxu0 %v168
    %219 = vmatprep.subr.mxu0 0.0
    %220 = vmatpush1.msra.mxu0 %v167
    %221 = vmatprep.subr.mxu0 0.0
    %222 = vmatpush2.msra.mxu0 0.0
    %223 = vmatprep.subr.mxu0 0.0
    %224 = vmatpush2.msra.mxu0 0.0
    %225 = vmatprep.subr.mxu0 0.0
    %226 = vmatpush2.msra.mxu0 0.0
    %227 = vmatprep.subr.mxu0 0.0
    %228 = vmatpush2.msra.mxu0 0.0
    %229 = vmatprep.subr.mxu0 0.0
    %230 = vmatpush2.msra.mxu0 0.0
    %231 = vmatprep.subr.mxu0 0.0
    %232 = vmatpush2.msra.mxu0 0.0
    %233 = vmatprep.subr.mxu0 0.0
    %234 = vmatpush2.msra.mxu0 0.0
    %235 = vmatprep.subr.mxu0 0.0
    %236 = vmatpush2.msra.mxu0 0.0
    %237 = vmatprep.subr.mxu0 0.0
    %238 = vmatpush2.msra.mxu0 0.0
    %239 = vmatprep.subr.mxu0 0.0
    %240 = vmatpush2.msra.mxu0 0.0
    %241 = vmatprep.subr.mxu0 0.0
    %242 = vmatpush2.msra.mxu0 0.0
    %243 = vmatprep.subr.mxu0 0.0
    %244 = vmatpush2.msra.mxu0 0.0
    %245 = vmatprep.subr.mxu0 0.0
    %246 = vmatpush2.msra.mxu0 0.0
    %247 = vmatprep.subr.mxu0 0.0
    %248 = vmatpush2.msra.mxu0 0.0
    %249 = vmatprep.subr.mxu0 0.0
    %250 = vmatpush2.msra.mxu0 0.0
    %251 = vmatprep.subr.mxu0 0.0
    %252 = vmatpush2.msra.mxu0 0.0
    %253 = vmatprep.mubr.f32.mxu0 0.0
    %254 = vmatmul.mubr.f32.gmra.mxu0 %v178
    %v255 = vpop.f32.mrf.mxu0
    %v256 = vadd.f32 %v175, %v255
    %v257 = vpop.f32.mrf.mxu0
    %258 = vmatprep.mubr.f32.mxu0 0.0
    %259 = vmatmul.mubr.f32.gmra.mxu0 %v181
    %v260 = vpop.f32.mrf.mxu0
    %v261 = vadd.f32 %v175, %v260
    %v262 = vpop.f32.mrf.mxu0
    %263 = vmatprep.mubr.f32.mxu0 0.0
    %264 = vmatmul.mubr.f32.gmra.mxu0 %v184
    %v265 = vpop.f32.mrf.mxu0
    %v266 = vadd.f32 %v175, %v265
    %v267 = vpop.f32.mrf.mxu0
    %268 = vmatprep.mubr.f32.mxu0 0.0
    %269 = vmatmul.mubr.f32.gmra.mxu0 %v187
    %v270 = vpop.f32.mrf.mxu0
    %v271 = vadd.f32 %v175, %v270
    %v272 = vpop.f32.mrf.mxu0
    %273 = vdwg.mxu0
    %v274 = vld [vmem:[#allocation2] sm:$0xff]
    %v275 = vld [vmem:[#allocation2 + $0x8] sm:$0xff]
    %v276 = vld [vmem:[#allocation2 + $0x10] sm:$0xff]
    %v277 = vld [vmem:[#allocation2 + $0x18] sm:$0xff]
    %vm278 = vcmask 130048
    %v280 = vsel %vm278, %v274, 0
    %v283 = vsel %vm278, %v275, 0
    %v286 = vsel %vm278, %v276, 0
    %v289 = vsel %vm278, %v277, 0
    %291 = vmatprep.subr.mxu0 0.0
    %292 = vmatpush1.msra.mxu0 0.0
    %293 = vmatprep.subr.mxu0 0.0
    %294 = vmatpush1.msra.mxu0 0.0
    %295 = vmatprep.subr.mxu0 0.0
    %296 = vmatpush1.msra.mxu0 0.0
    %297 = vmatprep.subr.mxu0 0.0
    %298 = vmatpush1.msra.mxu0 0.0
    %299 = vmatprep.subr.mxu0 0.0
    %300 = vmatpush1.msra.mxu0 0.0
    %301 = vmatprep.subr.mxu0 0.0
    %302 = vmatpush1.msra.mxu0 0.0
    %303 = vmatprep.subr.mxu0 0.0
    %304 = vmatpush1.msra.mxu0 0.0
    %305 = vmatprep.subr.mxu0 0.0
    %306 = vmatpush1.msra.mxu0 0.0
    %307 = vmatprep.subr.mxu0 0.0
    %308 = vmatpush1.msra.mxu0 0.0
    %309 = vmatprep.subr.mxu0 0.0
    %310 = vmatpush1.msra.mxu0 0.0
    %311 = vmatprep.subr.mxu0 0.0
    %312 = vmatpush1.msra.mxu0 0.0
    %313 = vmatprep.subr.mxu0 0.0
    %314 = vmatpush1.msra.mxu0 0.0
    %315 = vmatprep.subr.mxu0 0.0
    %316 = vmatpush1.msra.mxu0 0.0
    %317 = vmatprep.subr.mxu0 0.0
    %318 = vmatpush1.msra.mxu0 0.0
    %319 = vmatprep.subr.mxu0 0.0
    %320 = vmatpush1.msra.mxu0 %v46
    %321 = vmatprep.subr.mxu0 0.0
    %322 = vmatpush1.msra.mxu0 %v45
    %323 = vmatprep.subr.mxu0 0.0
    %324 = vmatpush2.msra.mxu0 0.0
    %325 = vmatprep.subr.mxu0 0.0
    %326 = vmatpush2.msra.mxu0 0.0
    %327 = vmatprep.subr.mxu0 0.0
    %328 = vmatpush2.msra.mxu0 0.0
    %329 = vmatprep.subr.mxu0 0.0
    %330 = vmatpush2.msra.mxu0 0.0
    %331 = vmatprep.subr.mxu0 0.0
    %332 = vmatpush2.msra.mxu0 0.0
    %333 = vmatprep.subr.mxu0 0.0
    %334 = vmatpush2.msra.mxu0 0.0
    %335 = vmatprep.subr.mxu0 0.0
    %336 = vmatpush2.msra.mxu0 0.0
    %337 = vmatprep.subr.mxu0 0.0
    %338 = vmatpush2.msra.mxu0 0.0
    %339 = vmatprep.subr.mxu0 0.0
    %340 = vmatpush2.msra.mxu0 0.0
    %341 = vmatprep.subr.mxu0 0.0
    %342 = vmatpush2.msra.mxu0 0.0
    %343 = vmatprep.subr.mxu0 0.0
    %344 = vmatpush2.msra.mxu0 0.0
    %345 = vmatprep.subr.mxu0 0.0
    %346 = vmatpush2.msra.mxu0 0.0
    %347 = vmatprep.subr.mxu0 0.0
    %348 = vmatpush2.msra.mxu0 0.0
    %349 = vmatprep.subr.mxu0 0.0
    %350 = vmatpush2.msra.mxu0 0.0
    %351 = vmatprep.subr.mxu0 0.0
    %352 = vmatpush2.msra.mxu0 0.0
    %353 = vmatprep.subr.mxu0 0.0
    %354 = vmatpush2.msra.mxu0 0.0
    %355 = vmatprep.mubr.f32.mxu0 0.0
    %356 = vmatmul.mubr.f32.gmra.mxu0 %v280
    %v357 = vpop.f32.mrf.mxu0
    %v358 = vadd.f32 0.0, %v357
    %v359 = vpop.f32.mrf.mxu0
    %360 = vmatprep.mubr.f32.mxu0 0.0
    %361 = vmatmul.mubr.f32.gmra.mxu0 %v283
    %v362 = vpop.f32.mrf.mxu0
    %v363 = vadd.f32 0.0, %v362
    %v364 = vpop.f32.mrf.mxu0
    %365 = vmatprep.mubr.f32.mxu0 0.0
    %366 = vmatmul.mubr.f32.gmra.mxu0 %v286
    %v367 = vpop.f32.mrf.mxu0
    %v368 = vadd.f32 0.0, %v367
    %v369 = vpop.f32.mrf.mxu0
    %370 = vmatprep.mubr.f32.mxu0 0.0
    %371 = vmatmul.mubr.f32.gmra.mxu0 %v289
    %v372 = vpop.f32.mrf.mxu0
    %v373 = vadd.f32 0.0, %v372
    %v374 = vpop.f32.mrf.mxu0
    %375 = vdwg.mxu0
    %v376 = vld [vmem:[#allocation4 + $0x30] sm:$0xff]
    %vm377 = vcmask 64512
    %v379 = vsel %vm377, %v358, 0
    %v382 = vsel %vm377, %v363, 0
    %v385 = vsel %vm377, %v368, 0
    %v388 = vsel %vm377, %v373, 0
    %390 = vmatprep.subr.mxu0 0.0
    %391 = vmatpush1.msra.mxu0 0.0
    %392 = vmatprep.subr.mxu0 0.0
    %393 = vmatpush1.msra.mxu0 0.0
    %394 = vmatprep.subr.mxu0 0.0
    %395 = vmatpush1.msra.mxu0 0.0
    %396 = vmatprep.subr.mxu0 0.0
    %397 = vmatpush1.msra.mxu0 0.0
    %398 = vmatprep.subr.mxu0 0.0
    %399 = vmatpush1.msra.mxu0 0.0
    %400 = vmatprep.subr.mxu0 0.0
    %401 = vmatpush1.msra.mxu0 0.0
    %402 = vmatprep.subr.mxu0 0.0
    %403 = vmatpush1.msra.mxu0 0.0
    %404 = vmatprep.subr.mxu0 0.0
    %405 = vmatpush1.msra.mxu0 0.0
    %406 = vmatprep.subr.mxu0 0.0
    %407 = vmatpush1.msra.mxu0 0.0
    %408 = vmatprep.subr.mxu0 0.0
    %409 = vmatpush1.msra.mxu0 0.0
    %410 = vmatprep.subr.mxu0 0.0
    %411 = vmatpush1.msra.mxu0 0.0
    %412 = vmatprep.subr.mxu0 0.0
    %413 = vmatpush1.msra.mxu0 0.0
    %414 = vmatprep.subr.mxu0 0.0
    %415 = vmatpush1.msra.mxu0 0.0
    %416 = vmatprep.subr.mxu0 0.0
    %417 = vmatpush1.msra.mxu0 0.0
    %418 = vmatprep.subr.mxu0 0.0
    %419 = vmatpush1.msra.mxu0 0.0
    %420 = vmatprep.subr.mxu0 0.0
    %421 = vmatpush1.msra.mxu0 %v376
    %422 = vmatprep.subr.mxu0 0.0
    %423 = vmatpush2.msra.mxu0 0.0
    %424 = vmatprep.subr.mxu0 0.0
    %425 = vmatpush2.msra.mxu0 0.0
    %426 = vmatprep.subr.mxu0 0.0
    %427 = vmatpush2.msra.mxu0 0.0
    %428 = vmatprep.subr.mxu0 0.0
    %429 = vmatpush2.msra.mxu0 0.0
    %430 = vmatprep.subr.mxu0 0.0
    %431 = vmatpush2.msra.mxu0 0.0
    %432 = vmatprep.subr.mxu0 0.0
    %433 = vmatpush2.msra.mxu0 0.0
    %434 = vmatprep.subr.mxu0 0.0
    %435 = vmatpush2.msra.mxu0 0.0
    %436 = vmatprep.subr.mxu0 0.0
    %437 = vmatpush2.msra.mxu0 0.0
    %438 = vmatprep.subr.mxu0 0.0
    %439 = vmatpush2.msra.mxu0 0.0
    %440 = vmatprep.subr.mxu0 0.0
    %441 = vmatpush2.msra.mxu0 0.0
    %442 = vmatprep.subr.mxu0 0.0
    %443 = vmatpush2.msra.mxu0 0.0
    %444 = vmatprep.subr.mxu0 0.0
    %445 = vmatpush2.msra.mxu0 0.0
    %446 = vmatprep.subr.mxu0 0.0
    %447 = vmatpush2.msra.mxu0 0.0
    %448 = vmatprep.subr.mxu0 0.0
    %449 = vmatpush2.msra.mxu0 0.0
    %450 = vmatprep.subr.mxu0 0.0
    %451 = vmatpush2.msra.mxu0 0.0
    %452 = vmatprep.subr.mxu0 0.0
    %453 = vmatpush2.msra.mxu0 0.0
    %454 = vmatprep.mubr.f32.mxu0 0.0
    %455 = vmatmul.mubr.f32.gmra.mxu0 %v379
    %v456 = vpop.f32.mrf.mxu0
    %v457 = vadd.f32 0.0, %v456
    %v458 = vpop.f32.mrf.mxu0
    %459 = vmatprep.mubr.f32.mxu0 0.0
    %460 = vmatmul.mubr.f32.gmra.mxu0 %v382
    %v461 = vpop.f32.mrf.mxu0
    %v462 = vadd.f32 0.0, %v461
    %v463 = vpop.f32.mrf.mxu0
    %464 = vmatprep.mubr.f32.mxu0 0.0
    %465 = vmatmul.mubr.f32.gmra.mxu0 %v385
    %v466 = vpop.f32.mrf.mxu0
    %v467 = vadd.f32 0.0, %v466
    %v468 = vpop.f32.mrf.mxu0
    %469 = vmatprep.mubr.f32.mxu0 0.0
    %470 = vmatmul.mubr.f32.gmra.mxu0 %v388
    %v471 = vpop.f32.mrf.mxu0
    %v472 = vadd.f32 0.0, %v471
    %v473 = vpop.f32.mrf.mxu0
    %474 = vdwg.mxu0
    %v475 = vmul.f32 %v457, %v256
    %v476 = vmul.f32 %v462, %v261
    %v477 = vmul.f32 %v467, %v266
    %v478 = vmul.f32 %v472, %v271
    %v479 = vld [vmem:[#allocation4 + $0x38] sm:$0xff]
    %v480 = vld [vmem:[#allocation4 + $0x40] sm:$0xff]
    %v481 = vld [vmem:[#allocation4 + $0x48] sm:$0xff]
    %v482 = vld [vmem:[#allocation4 + $0x50] sm:$0xff]
    %v483 = vld [vmem:[#allocation4 + $0x58] sm:$0xff]
    %v484 = vld [vmem:[#allocation4 + $0x60] sm:$0xff]
    %v485 = vld [vmem:[#allocation4 + $0x68] sm:$0xff]
    %v486 = vld [vmem:[#allocation4 + $0x70] sm:$0xff]
    %vm487 = vcmask 523264
    %v489 = vsel %vm487, %v475, 0
    %v492 = vsel %vm487, %v476, 0
    %v495 = vsel %vm487, %v477, 0
    %v498 = vsel %vm487, %v478, 0
    %500 = vmatprep.subr.mxu0 0.0
    %501 = vmatpush1.msra.mxu0 0.0
    %502 = vmatprep.subr.mxu0 0.0
    %503 = vmatpush1.msra.mxu0 0.0
    %504 = vmatprep.subr.mxu0 0.0
    %505 = vmatpush1.msra.mxu0 0.0
    %506 = vmatprep.subr.mxu0 0.0
    %507 = vmatpush1.msra.mxu0 0.0
    %508 = vmatprep.subr.mxu0 0.0
    %509 = vmatpush1.msra.mxu0 0.0
    %510 = vmatprep.subr.mxu0 0.0
    %511 = vmatpush1.msra.mxu0 0.0
    %512 = vmatprep.subr.mxu0 0.0
    %513 = vmatpush1.msra.mxu0 0.0
    %514 = vmatprep.subr.mxu0 0.0
    %515 = vmatpush1.msra.mxu0 0.0
    %516 = vmatprep.subr.mxu0 0.0
    %517 = vmatpush1.msra.mxu0 %v486
    %518 = vmatprep.subr.mxu0 0.0
    %519 = vmatpush1.msra.mxu0 %v485
    %520 = vmatprep.subr.mxu0 0.0
    %521 = vmatpush1.msra.mxu0 %v484
    %522 = vmatprep.subr.mxu0 0.0
    %523 = vmatpush1.msra.mxu0 %v483
    %524 = vmatprep.subr.mxu0 0.0
    %525 = vmatpush1.msra.mxu0 %v482
    %526 = vmatprep.subr.mxu0 0.0
    %527 = vmatpush1.msra.mxu0 %v481
    %528 = vmatprep.subr.mxu0 0.0
    %529 = vmatpush1.msra.mxu0 %v480
    %530 = vmatprep.subr.mxu0 0.0
    %531 = vmatpush1.msra.mxu0 %v479
    %532 = vmatprep.subr.mxu0 0.0
    %533 = vmatpush2.msra.mxu0 0.0
    %534 = vmatprep.subr.mxu0 0.0
    %535 = vmatpush2.msra.mxu0 0.0
    %536 = vmatprep.subr.mxu0 0.0
    %537 = vmatpush2.msra.mxu0 0.0
    %538 = vmatprep.subr.mxu0 0.0
    %539 = vmatpush2.msra.mxu0 0.0
    %540 = vmatprep.subr.mxu0 0.0
    %541 = vmatpush2.msra.mxu0 0.0
    %542 = vmatprep.subr.mxu0 0.0
    %543 = vmatpush2.msra.mxu0 0.0
    %544 = vmatprep.subr.mxu0 0.0
    %545 = vmatpush2.msra.mxu0 0.0
    %546 = vmatprep.subr.mxu0 0.0
    %547 = vmatpush2.msra.mxu0 0.0
    %548 = vmatprep.subr.mxu0 0.0
    %549 = vmatpush2.msra.mxu0 0.0
    %550 = vmatprep.subr.mxu0 0.0
    %551 = vmatpush2.msra.mxu0 0.0
    %552 = vmatprep.subr.mxu0 0.0
    %553 = vmatpush2.msra.mxu0 0.0
    %554 = vmatprep.subr.mxu0 0.0
    %555 = vmatpush2.msra.mxu0 0.0
    %556 = vmatprep.subr.mxu0 0.0
    %557 = vmatpush2.msra.mxu0 0.0
    %558 = vmatprep.subr.mxu0 0.0
    %559 = vmatpush2.msra.mxu0 0.0
    %560 = vmatprep.subr.mxu0 0.0
    %561 = vmatpush2.msra.mxu0 0.0
    %562 = vmatprep.subr.mxu0 0.0
    %563 = vmatpush2.msra.mxu0 0.0
    %564 = vmatprep.mubr.f32.mxu0 0.0
    %565 = vmatmul.mubr.f32.gmra.mxu0 %v489
    %v566 = vpop.f32.mrf.mxu0
    %v567 = vadd.f32 0.0, %v566
    %v568 = vpop.f32.mrf.mxu0
    %569 = vmatprep.mubr.f32.mxu0 0.0
    %570 = vmatmul.mubr.f32.gmra.mxu0 %v492
    %v571 = vpop.f32.mrf.mxu0
    %v572 = vadd.f32 0.0, %v571
    %v573 = vpop.f32.mrf.mxu0
    %574 = vmatprep.mubr.f32.mxu0 0.0
    %575 = vmatmul.mubr.f32.gmra.mxu0 %v495
    %v576 = vpop.f32.mrf.mxu0
    %v577 = vadd.f32 0.0, %v576
    %v578 = vpop.f32.mrf.mxu0
    %579 = vmatprep.mubr.f32.mxu0 0.0
    %580 = vmatmul.mubr.f32.gmra.mxu0 %v498
    %v581 = vpop.f32.mrf.mxu0
    %v582 = vadd.f32 0.0, %v581
    %v583 = vpop.f32.mrf.mxu0
    %584 = vdwg.mxu0
    %v585 = vld [vmem:[#allocation2 + $0x20] sm:$0xff]
    %v586 = vld [vmem:[#allocation2 + $0x28] sm:$0xff]
    %v587 = vld [vmem:[#allocation4 + $0x28] sm:$0xff]
    %v589 = vsel %vm377, %v45, 0
    %v592 = vsel %vm377, %v46, 0
    %594 = vmatprep.subr.mxu0 0.0
    %595 = vmatpush1.msra.mxu0 0.0
    %596 = vmatprep.subr.mxu0 0.0
    %597 = vmatpush1.msra.mxu0 0.0
    %598 = vmatprep.subr.mxu0 0.0
    %599 = vmatpush1.msra.mxu0 0.0
    %600 = vmatprep.subr.mxu0 0.0
    %601 = vmatpush1.msra.mxu0 0.0
    %602 = vmatprep.subr.mxu0 0.0
    %603 = vmatpush1.msra.mxu0 0.0
    %604 = vmatprep.subr.mxu0 0.0
    %605 = vmatpush1.msra.mxu0 0.0
    %606 = vmatprep.subr.mxu0 0.0
    %607 = vmatpush1.msra.mxu0 0.0
    %608 = vmatprep.subr.mxu0 0.0
    %609 = vmatpush1.msra.mxu0 0.0
    %610 = vmatprep.subr.mxu0 0.0
    %611 = vmatpush1.msra.mxu0 0.0
    %612 = vmatprep.subr.mxu0 0.0
    %613 = vmatpush1.msra.mxu0 0.0
    %614 = vmatprep.subr.mxu0 0.0
    %615 = vmatpush1.msra.mxu0 0.0
    %616 = vmatprep.subr.mxu0 0.0
    %617 = vmatpush1.msra.mxu0 0.0
    %618 = vmatprep.subr.mxu0 0.0
    %619 = vmatpush1.msra.mxu0 0.0
    %620 = vmatprep.subr.mxu0 0.0
    %621 = vmatpush1.msra.mxu0 0.0
    %622 = vmatprep.subr.mxu0 0.0
    %623 = vmatpush1.msra.mxu0 0.0
    %624 = vmatprep.subr.mxu0 0.0
    %625 = vmatpush1.msra.mxu0 %v587
    %626 = vmatprep.subr.mxu0 0.0
    %627 = vmatpush2.msra.mxu0 0.0
    %628 = vmatprep.subr.mxu0 0.0
    %629 = vmatpush2.msra.mxu0 0.0
    %630 = vmatprep.subr.mxu0 0.0
    %631 = vmatpush2.msra.mxu0 0.0
    %632 = vmatprep.subr.mxu0 0.0
    %633 = vmatpush2.msra.mxu0 0.0
    %634 = vmatprep.subr.mxu0 0.0
    %635 = vmatpush2.msra.mxu0 0.0
    %636 = vmatprep.subr.mxu0 0.0
    %637 = vmatpush2.msra.mxu0 0.0
    %638 = vmatprep.subr.mxu0 0.0
    %639 = vmatpush2.msra.mxu0 0.0
    %640 = vmatprep.subr.mxu0 0.0
    %641 = vmatpush2.msra.mxu0 0.0
    %642 = vmatprep.subr.mxu0 0.0
    %643 = vmatpush2.msra.mxu0 0.0
    %644 = vmatprep.subr.mxu0 0.0
    %645 = vmatpush2.msra.mxu0 0.0
    %646 = vmatprep.subr.mxu0 0.0
    %647 = vmatpush2.msra.mxu0 0.0
    %648 = vmatprep.subr.mxu0 0.0
    %649 = vmatpush2.msra.mxu0 0.0
    %650 = vmatprep.subr.mxu0 0.0
    %651 = vmatpush2.msra.mxu0 0.0
    %652 = vmatprep.subr.mxu0 0.0
    %653 = vmatpush2.msra.mxu0 0.0
    %654 = vmatprep.subr.mxu0 0.0
    %655 = vmatpush2.msra.mxu0 0.0
    %656 = vmatprep.subr.mxu0 0.0
    %657 = vmatpush2.msra.mxu0 0.0
    %658 = vmatprep.mubr.f32.mxu0 0.0
    %659 = vmatmul.mubr.f32.gmra.mxu0 %v589
    %v660 = vpop.f32.mrf.mxu0
    %v661 = vadd.f32 0.0, %v660
    %v662 = vpop.f32.mrf.mxu0
    %663 = vmatprep.mubr.f32.mxu0 0.0
    %664 = vmatmul.mubr.f32.gmra.mxu0 %v592
    %v665 = vpop.f32.mrf.mxu0
    %v666 = vadd.f32 0.0, %v665
    %v667 = vpop.f32.mrf.mxu0
    %668 = vdwg.mxu0
    %v670 = vsel %vm176, %v585, 0
    %v673 = vsel %vm176, %v586, 0
    %675 = vmatprep.subr.mxu0 0.0
    %676 = vmatpush1.msra.mxu0 0.0
    %677 = vmatprep.subr.mxu0 0.0
    %678 = vmatpush1.msra.mxu0 0.0
    %679 = vmatprep.subr.mxu0 0.0
    %680 = vmatpush1.msra.mxu0 0.0
    %681 = vmatprep.subr.mxu0 0.0
    %682 = vmatpush1.msra.mxu0 0.0
    %683 = vmatprep.subr.mxu0 0.0
    %684 = vmatpush1.msra.mxu0 0.0
    %685 = vmatprep.subr.mxu0 0.0
    %686 = vmatpush1.msra.mxu0 0.0
    %687 = vmatprep.subr.mxu0 0.0
    %688 = vmatpush1.msra.mxu0 0.0
    %689 = vmatprep.subr.mxu0 0.0
    %690 = vmatpush1.msra.mxu0 0.0
    %691 = vmatprep.subr.mxu0 0.0
    %692 = vmatpush1.msra.mxu0 0.0
    %693 = vmatprep.subr.mxu0 0.0
    %694 = vmatpush1.msra.mxu0 0.0
    %695 = vmatprep.subr.mxu0 0.0
    %696 = vmatpush1.msra.mxu0 0.0
    %697 = vmatprep.subr.mxu0 0.0
    %698 = vmatpush1.msra.mxu0 0.0
    %699 = vmatprep.subr.mxu0 0.0
    %700 = vmatpush1.msra.mxu0 %v582
    %701 = vmatprep.subr.mxu0 0.0
    %702 = vmatpush1.msra.mxu0 %v577
    %703 = vmatprep.subr.mxu0 0.0
    %704 = vmatpush1.msra.mxu0 %v572
    %705 = vmatprep.subr.mxu0 0.0
    %706 = vmatpush1.msra.mxu0 %v567
    %707 = vmatprep.subr.mxu0 0.0
    %708 = vmatpush2.msra.mxu0 0.0
    %709 = vmatprep.subr.mxu0 0.0
    %710 = vmatpush2.msra.mxu0 0.0
    %711 = vmatprep.subr.mxu0 0.0
    %712 = vmatpush2.msra.mxu0 0.0
    %713 = vmatprep.subr.mxu0 0.0
    %714 = vmatpush2.msra.mxu0 0.0
    %715 = vmatprep.subr.mxu0 0.0
    %716 = vmatpush2.msra.mxu0 0.0
    %717 = vmatprep.subr.mxu0 0.0
    %718 = vmatpush2.msra.mxu0 0.0
    %719 = vmatprep.subr.mxu0 0.0
    %720 = vmatpush2.msra.mxu0 0.0
    %721 = vmatprep.subr.mxu0 0.0
    %722 = vmatpush2.msra.mxu0 0.0
    %723 = vmatprep.subr.mxu0 0.0
    %724 = vmatpush2.msra.mxu0 0.0
    %725 = vmatprep.subr.mxu0 0.0
    %726 = vmatpush2.msra.mxu0 0.0
    %727 = vmatprep.subr.mxu0 0.0
    %728 = vmatpush2.msra.mxu0 0.0
    %729 = vmatprep.subr.mxu0 0.0
    %730 = vmatpush2.msra.mxu0 0.0
    %731 = vmatprep.subr.mxu0 0.0
    %732 = vmatpush2.msra.mxu0 0.0
    %733 = vmatprep.subr.mxu0 0.0
    %734 = vmatpush2.msra.mxu0 0.0
    %735 = vmatprep.subr.mxu0 0.0
    %736 = vmatpush2.msra.mxu0 0.0
    %737 = vmatprep.subr.mxu0 0.0
    %738 = vmatpush2.msra.mxu0 0.0
    %739 = vmatprep.mubr.f32.mxu0 0.0
    %740 = vmatmul.mubr.f32.gmra.mxu0 %v670
    %v741 = vpop.f32.mrf.mxu0
    %v742 = vadd.f32 %v661, %v741
    %v743 = vpop.f32.mrf.mxu0
    %744 = vmatprep.mubr.f32.mxu0 0.0
    %745 = vmatmul.mubr.f32.gmra.mxu0 %v673
    %v746 = vpop.f32.mrf.mxu0
    %v747 = vadd.f32 %v666, %v746
    %v748 = vpop.f32.mrf.mxu0
    %749 = vdwg.mxu0
    %v750 = vld [vmem:[#allocation4 + $0x178] sm:$0x1]
    %v751 = vlaneseq
    %v752 = vshrl.u32 %v751, 7
    %v753 = vsub.s32 0, %v752
    %v754 = vrot.slane %v750, %v753
    %v755 = vadd.f32 %v742, %v754
    %v756 = vadd.f32 %v747, %v754
    %v757 = vmax.f32 %v755, 0.0
    %v758 = vmax.f32 %v756, 0.0
    %v759 = vld [vmem:[#allocation4 + $0x78] sm:$0xff]
    %v760 = vld [vmem:[#allocation4 + $0x80] sm:$0xff]
    %v761 = vld [vmem:[#allocation4 + $0x180] sm:$0x1]
    %v763 = vsel %vm278, %v47, 0
    %v766 = vsel %vm278, %v48, 0
    %768 = vmatprep.subr.mxu0 0.0
    %769 = vmatpush1.msra.mxu0 0.0
    %770 = vmatprep.subr.mxu0 0.0
    %771 = vmatpush1.msra.mxu0 0.0
    %772 = vmatprep.subr.mxu0 0.0
    %773 = vmatpush1.msra.mxu0 0.0
    %774 = vmatprep.subr.mxu0 0.0
    %775 = vmatpush1.msra.mxu0 0.0
    %776 = vmatprep.subr.mxu0 0.0
    %777 = vmatpush1.msra.mxu0 0.0
    %778 = vmatprep.subr.mxu0 0.0
    %779 = vmatpush1.msra.mxu0 0.0
    %780 = vmatprep.subr.mxu0 0.0
    %781 = vmatpush1.msra.mxu0 0.0
    %782 = vmatprep.subr.mxu0 0.0
    %783 = vmatpush1.msra.mxu0 0.0
    %784 = vmatprep.subr.mxu0 0.0
    %785 = vmatpush1.msra.mxu0 0.0
    %786 = vmatprep.subr.mxu0 0.0
    %787 = vmatpush1.msra.mxu0 0.0
    %788 = vmatprep.subr.mxu0 0.0
    %789 = vmatpush1.msra.mxu0 0.0
    %790 = vmatprep.subr.mxu0 0.0
    %791 = vmatpush1.msra.mxu0 0.0
    %792 = vmatprep.subr.mxu0 0.0
    %793 = vmatpush1.msra.mxu0 0.0
    %794 = vmatprep.subr.mxu0 0.0
    %795 = vmatpush1.msra.mxu0 0.0
    %796 = vmatprep.subr.mxu0 0.0
    %797 = vmatpush1.msra.mxu0 %v758
    %798 = vmatprep.subr.mxu0 0.0
    %799 = vmatpush1.msra.mxu0 %v757
    %800 = vmatprep.subr.mxu0 0.0
    %801 = vmatpush2.msra.mxu0 0.0
    %802 = vmatprep.subr.mxu0 0.0
    %803 = vmatpush2.msra.mxu0 0.0
    %804 = vmatprep.subr.mxu0 0.0
    %805 = vmatpush2.msra.mxu0 0.0
    %806 = vmatprep.subr.mxu0 0.0
    %807 = vmatpush2.msra.mxu0 0.0
    %808 = vmatprep.subr.mxu0 0.0
    %809 = vmatpush2.msra.mxu0 0.0
    %810 = vmatprep.subr.mxu0 0.0
    %811 = vmatpush2.msra.mxu0 0.0
    %812 = vmatprep.subr.mxu0 0.0
    %813 = vmatpush2.msra.mxu0 0.0
    %814 = vmatprep.subr.mxu0 0.0
    %815 = vmatpush2.msra.mxu0 0.0
    %816 = vmatprep.subr.mxu0 0.0
    %817 = vmatpush2.msra.mxu0 0.0
    %818 = vmatprep.subr.mxu0 0.0
    %819 = vmatpush2.msra.mxu0 0.0
    %820 = vmatprep.subr.mxu0 0.0
    %821 = vmatpush2.msra.mxu0 0.0
    %822 = vmatprep.subr.mxu0 0.0
    %823 = vmatpush2.msra.mxu0 0.0
    %824 = vmatprep.subr.mxu0 0.0
    %825 = vmatpush2.msra.mxu0 0.0
    %826 = vmatprep.subr.mxu0 0.0
    %827 = vmatpush2.msra.mxu0 0.0
    %828 = vmatprep.subr.mxu0 0.0
    %829 = vmatpush2.msra.mxu0 0.0
    %830 = vmatprep.subr.mxu0 0.0
    %831 = vmatpush2.msra.mxu0 0.0
    %832 = vmatprep.mubr.f32.mxu0 0.0
    %833 = vmatmul.mubr.f32.gmra.mxu0 %v763
    %v834 = vpop.f32.mrf.mxu0
    %v835 = vadd.f32 0.0, %v834
    %v836 = vpop.f32.mrf.mxu0
    %837 = vmatprep.mubr.f32.mxu0 0.0
    %838 = vmatmul.mubr.f32.gmra.mxu0 %v766
    %v839 = vpop.f32.mrf.mxu0
    %v840 = vadd.f32 0.0, %v839
    %v841 = vpop.f32.mrf.mxu0
    %842 = vdwg.mxu0
    %845 = vrot.lane.b32.xlu0 %v757, 8
    %v846 = vpop.permute.xlu0 %845
    %847 = vrot.lane.b32.xlu0 %v758, 8
    %v848 = vpop.permute.xlu0 %847
    %v851 = vsel %vm377, %v835, %v846
    %v852 = vsel %vm377, %v840, %v848
    %v853 = vlaneseq
    %v854 = vshrl.u32 %v853, 7
    %v855 = vsub.s32 0, %v854
    %v856 = vrot.slane %v761, %v855
    %v858 = vsel %vm278, %v851, 0
    %v861 = vsel %vm278, %v852, 0
    %863 = vmatprep.subr.mxu0 0.0
    %864 = vmatpush1.msra.mxu0 0.0
    %865 = vmatprep.subr.mxu0 0.0
    %866 = vmatpush1.msra.mxu0 0.0
    %867 = vmatprep.subr.mxu0 0.0
    %868 = vmatpush1.msra.mxu0 0.0
    %869 = vmatprep.subr.mxu0 0.0
    %870 = vmatpush1.msra.mxu0 0.0
    %871 = vmatprep.subr.mxu0 0.0
    %872 = vmatpush1.msra.mxu0 0.0
    %873 = vmatprep.subr.mxu0 0.0
    %874 = vmatpush1.msra.mxu0 0.0
    %875 = vmatprep.subr.mxu0 0.0
    %876 = vmatpush1.msra.mxu0 0.0
    %877 = vmatprep.subr.mxu0 0.0
    %878 = vmatpush1.msra.mxu0 0.0
    %879 = vmatprep.subr.mxu0 0.0
    %880 = vmatpush1.msra.mxu0 0.0
    %881 = vmatprep.subr.mxu0 0.0
    %882 = vmatpush1.msra.mxu0 0.0
    %883 = vmatprep.subr.mxu0 0.0
    %884 = vmatpush1.msra.mxu0 0.0
    %885 = vmatprep.subr.mxu0 0.0
    %886 = vmatpush1.msra.mxu0 0.0
    %887 = vmatprep.subr.mxu0 0.0
    %888 = vmatpush1.msra.mxu0 0.0
    %889 = vmatprep.subr.mxu0 0.0
    %890 = vmatpush1.msra.mxu0 0.0
    %891 = vmatprep.subr.mxu0 0.0
    %892 = vmatpush1.msra.mxu0 %v760
    %893 = vmatprep.subr.mxu0 0.0
    %894 = vmatpush1.msra.mxu0 %v759
    %895 = vmatprep.subr.mxu0 0.0
    %896 = vmatpush2.msra.mxu0 0.0
    %897 = vmatprep.subr.mxu0 0.0
    %898 = vmatpush2.msra.mxu0 0.0
    %899 = vmatprep.subr.mxu0 0.0
    %900 = vmatpush2.msra.mxu0 0.0
    %901 = vmatprep.subr.mxu0 0.0
    %902 = vmatpush2.msra.mxu0 0.0
    %903 = vmatprep.subr.mxu0 0.0
    %904 = vmatpush2.msra.mxu0 0.0
    %905 = vmatprep.subr.mxu0 0.0
    %906 = vmatpush2.msra.mxu0 0.0
    %907 = vmatprep.subr.mxu0 0.0
    %908 = vmatpush2.msra.mxu0 0.0
    %909 = vmatprep.subr.mxu0 0.0
    %910 = vmatpush2.msra.mxu0 0.0
    %911 = vmatprep.subr.mxu0 0.0
    %912 = vmatpush2.msra.mxu0 0.0
    %913 = vmatprep.subr.mxu0 0.0
    %914 = vmatpush2.msra.mxu0 0.0
    %915 = vmatprep.subr.mxu0 0.0
    %916 = vmatpush2.msra.mxu0 0.0
    %917 = vmatprep.subr.mxu0 0.0
    %918 = vmatpush2.msra.mxu0 0.0
    %919 = vmatprep.subr.mxu0 0.0
    %920 = vmatpush2.msra.mxu0 0.0
    %921 = vmatprep.subr.mxu0 0.0
    %922 = vmatpush2.msra.mxu0 0.0
    %923 = vmatprep.subr.mxu0 0.0
    %924 = vmatpush2.msra.mxu0 0.0
    %925 = vmatprep.subr.mxu0 0.0
    %926 = vmatpush2.msra.mxu0 0.0
    %927 = vmatprep.mubr.f32.mxu0 0.0
    %928 = vmatmul.mubr.f32.gmra.mxu0 %v858
    %v929 = vpop.f32.mrf.mxu0
    %v930 = vadd.f32 %v856, %v929
    %v931 = vpop.f32.mrf.mxu0
    %932 = vmatprep.mubr.f32.mxu0 0.0
    %933 = vmatmul.mubr.f32.gmra.mxu0 %v861
    %v934 = vpop.f32.mrf.mxu0
    %v935 = vadd.f32 %v856, %v934
    %v936 = vpop.f32.mrf.mxu0
    %937 = vdwg.mxu0
    %v938 = vmax.f32 %v930, 0.0
    %v939 = vmax.f32 %v935, 0.0
    %v940 = vld [vmem:[#allocation4 + $0x190] sm:$0x1]
    %v941 = vld [vmem:[#allocation4 + $0x198] sm:$0x1]
    %v942 = vsel %vm176, %v938, 0.0
    %943 = vadd.xlane.f32.xlu0 %v942
    %v944 = vpop.xlane.xlu0 %943
    %v945 = vsel %vm176, %v939, 0.0
    %946 = vadd.xlane.f32.xlu0 %v945
    %v947 = vpop.xlane.xlu0 %946
    %v948 = vrcp.pop 32.0
    %v949 = vmul.f32 %v944, %v948
    %v950 = vmul.f32 %v947, %v948
    %v951 = vsub.f32 %v938, %v949
    %v952 = vsub.f32 %v939, %v950
    %v953 = vmul.f32 %v951, %v951
    %v954 = vmul.f32 %v952, %v952
    %v955 = vsel %vm176, %v953, 0.0
    %956 = vadd.xlane.f32.xlu0 %v955
    %v957 = vpop.xlane.xlu0 %956
    %v958 = vsel %vm176, %v954, 0.0
    %959 = vadd.xlane.f32.xlu0 %v958
    %v960 = vpop.xlane.xlu0 %959
    %v961 = vmul.f32 %v957, %v948
    %v962 = vmul.f32 %v960, %v948
    %v963 = vadd.f32 %v961, 1e-05
    %v964 = vadd.f32 %v962, 1e-05
    %v965 = vrsqrt.pop %v963
    %v966 = vrsqrt.pop %v964
    %v967 = vmul.f32 %v951, %v965
    %v968 = vmul.f32 %v952, %v966
    %v969 = vlaneseq
    %v970 = vshrl.u32 %v969, 7
    %v971 = vsub.s32 0, %v970
    %v972 = vrot.slane %v940, %v971
    %v973 = vmul.f32 %v967, %v972
    %v974 = vmul.f32 %v968, %v972
    %v975 = vlaneseq
    %v976 = vshrl.u32 %v975, 7
    %v977 = vsub.s32 0, %v976
    %v978 = vrot.slane %v941, %v977
    %v979 = vadd.f32 %v973, %v978
    %v980 = vadd.f32 %v974, %v978
    %v981 = vld [vmem:[#allocation4 + $0x88] sm:$0xff]
    %v982 = vld [vmem:[#allocation4 + $0x90] sm:$0xff]
    %v983 = vld [vmem:[#allocation4 + $0x98] sm:$0xff]
    %v984 = vld [vmem:[#allocation4 + $0xa0] sm:$0xff]
    %v985 = vld [vmem:[#allocation4 + $0xa8] sm:$0xff]
    %v986 = vld [vmem:[#allocation4 + $0xb0] sm:$0xff]
    %v987 = vld [vmem:[#allocation4 + $0xb8] sm:$0xff]
    %v988 = vld [vmem:[#allocation4 + $0xc0] sm:$0xff]
    %v989 = vld [vmem:[#allocation4 + $0x188] sm:$0x1]
    %990 = vmatprep.subr.mxu0 0.0
    %991 = vmatpush1.msra.mxu0 0.0
    %992 = vmatprep.subr.mxu0 0.0
    %993 = vmatpush1.msra.mxu0 0.0
    %994 = vmatprep.subr.mxu0 0.0
    %995 = vmatpush1.msra.mxu0 0.0
    %996 = vmatprep.subr.mxu0 0.0
    %997 = vmatpush1.msra.mxu0 0.0
    %998 = vmatprep.subr.mxu0 0.0
    %999 = vmatpush1.msra.mxu0 0.0
    %1000 = vmatprep.subr.mxu0 0.0
    %1001 = vmatpush1.msra.mxu0 0.0
    %1002 = vmatprep.subr.mxu0 0.0
    %1003 = vmatpush1.msra.mxu0 0.0
    %1004 = vmatprep.subr.mxu0 0.0
    %1005 = vmatpush1.msra.mxu0 0.0
    %1006 = vmatprep.subr.mxu0 0.0
    %1007 = vmatpush1.msra.mxu0 0.0
    %1008 = vmatprep.subr.mxu0 0.0
    %1009 = vmatpush1.msra.mxu0 0.0
    %1010 = vmatprep.subr.mxu0 0.0
    %1011 = vmatpush1.msra.mxu0 0.0
    %1012 = vmatprep.subr.mxu0 0.0
    %1013 = vmatpush1.msra.mxu0 0.0
    %1014 = vmatprep.subr.mxu0 0.0
    %1015 = vmatpush1.msra.mxu0 0.0
    %1016 = vmatprep.subr.mxu0 0.0
    %1017 = vmatpush1.msra.mxu0 0.0
    %1018 = vmatprep.subr.mxu0 0.0
    %1019 = vmatpush1.msra.mxu0 %v980
    %1020 = vmatprep.subr.mxu0 0.0
    %1021 = vmatpush1.msra.mxu0 %v979
    %1022 = vmatprep.subr.mxu0 0.0
    %1023 = vmatpush2.msra.mxu0 0.0
    %1024 = vmatprep.subr.mxu0 0.0
    %1025 = vmatpush2.msra.mxu0 0.0
    %1026 = vmatprep.subr.mxu0 0.0
    %1027 = vmatpush2.msra.mxu0 0.0
    %1028 = vmatprep.subr.mxu0 0.0
    %1029 = vmatpush2.msra.mxu0 0.0
    %1030 = vmatprep.subr.mxu0 0.0
    %1031 = vmatpush2.msra.mxu0 0.0
    %1032 = vmatprep.subr.mxu0 0.0
    %1033 = vmatpush2.msra.mxu0 0.0
    %1034 = vmatprep.subr.mxu0 0.0
    %1035 = vmatpush2.msra.mxu0 0.0
    %1036 = vmatprep.subr.mxu0 0.0
    %1037 = vmatpush2.msra.mxu0 0.0
    %1038 = vmatprep.subr.mxu0 0.0
    %1039 = vmatpush2.msra.mxu0 0.0
    %1040 = vmatprep.subr.mxu0 0.0
    %1041 = vmatpush2.msra.mxu0 0.0
    %1042 = vmatprep.subr.mxu0 0.0
    %1043 = vmatpush2.msra.mxu0 0.0
    %1044 = vmatprep.subr.mxu0 0.0
    %1045 = vmatpush2.msra.mxu0 0.0
    %1046 = vmatprep.subr.mxu0 0.0
    %1047 = vmatpush2.msra.mxu0 0.0
    %1048 = vmatprep.subr.mxu0 0.0
    %1049 = vmatpush2.msra.mxu0 0.0
    %1050 = vmatprep.subr.mxu0 0.0
    %1051 = vmatpush2.msra.mxu0 0.0
    %1052 = vmatprep.subr.mxu0 0.0
    %1053 = vmatpush2.msra.mxu0 0.0
    %1054 = vmatprep.mubr.f32.mxu0 0.0
    %1055 = vmatmul.mubr.f32.gmra.mxu0 %v763
    %v1056 = vpop.f32.mrf.mxu0
    %v1057 = vadd.f32 0.0, %v1056
    %v1058 = vpop.f32.mrf.mxu0
    %1059 = vmatprep.mubr.f32.mxu0 0.0
    %1060 = vmatmul.mubr.f32.gmra.mxu0 %v766
    %v1061 = vpop.f32.mrf.mxu0
    %v1062 = vadd.f32 0.0, %v1061
    %v1063 = vpop.f32.mrf.mxu0
    %1064 = vdwg.mxu0
    %1067 = vrot.lane.b32.xlu0 %v979, 32
    %v1068 = vpop.permute.xlu0 %1067
    %1069 = vrot.lane.b32.xlu0 %v980, 32
    %v1070 = vpop.permute.xlu0 %1069
    %v1073 = vsel %vm176, %v1057, %v1068
    %v1074 = vsel %vm176, %v1062, %v1070
    %v1075 = vlaneseq
    %v1076 = vshrl.u32 %v1075, 7
    %v1077 = vsub.s32 0, %v1076
    %v1078 = vrot.slane %v989, %v1077
    %v1080 = vsel %vm487, %v1073, 0
    %v1083 = vsel %vm487, %v1074, 0
    %1085 = vmatprep.subr.mxu0 0.0
    %1086 = vmatpush1.msra.mxu0 0.0
    %1087 = vmatprep.subr.mxu0 0.0
    %1088 = vmatpush1.msra.mxu0 0.0
    %1089 = vmatprep.subr.mxu0 0.0
    %1090 = vmatpush1.msra.mxu0 0.0
    %1091 = vmatprep.subr.mxu0 0.0
    %1092 = vmatpush1.msra.mxu0 0.0
    %1093 = vmatprep.subr.mxu0 0.0
    %1094 = vmatpush1.msra.mxu0 0.0
    %1095 = vmatprep.subr.mxu0 0.0
    %1096 = vmatpush1.msra.mxu0 0.0
    %1097 = vmatprep.subr.mxu0 0.0
    %1098 = vmatpush1.msra.mxu0 0.0
    %1099 = vmatprep.subr.mxu0 0.0
    %1100 = vmatpush1.msra.mxu0 0.0
    %1101 = vmatprep.subr.mxu0 0.0
    %1102 = vmatpush1.msra.mxu0 %v988
    %1103 = vmatprep.subr.mxu0 0.0
    %1104 = vmatpush1.msra.mxu0 %v987
    %1105 = vmatprep.subr.mxu0 0.0
    %1106 = vmatpush1.msra.mxu0 %v986
    %1107 = vmatprep.subr.mxu0 0.0
    %1108 = vmatpush1.msra.mxu0 %v985
    %1109 = vmatprep.subr.mxu0 0.0
    %1110 = vmatpush1.msra.mxu0 %v984
    %1111 = vmatprep.subr.mxu0 0.0
    %1112 = vmatpush1.msra.mxu0 %v983
    %1113 = vmatprep.subr.mxu0 0.0
    %1114 = vmatpush1.msra.mxu0 %v982
    %1115 = vmatprep.subr.mxu0 0.0
    %1116 = vmatpush1.msra.mxu0 %v981
    %1117 = vmatprep.subr.mxu0 0.0
    %1118 = vmatpush2.msra.mxu0 0.0
    %1119 = vmatprep.subr.mxu0 0.0
    %1120 = vmatpush2.msra.mxu0 0.0
    %1121 = vmatprep.subr.mxu0 0.0
    %1122 = vmatpush2.msra.mxu0 0.0
    %1123 = vmatprep.subr.mxu0 0.0
    %1124 = vmatpush2.msra.mxu0 0.0
    %1125 = vmatprep.subr.mxu0 0.0
    %1126 = vmatpush2.msra.mxu0 0.0
    %1127 = vmatprep.subr.mxu0 0.0
    %1128 = vmatpush2.msra.mxu0 0.0
    %1129 = vmatprep.subr.mxu0 0.0
    %1130 = vmatpush2.msra.mxu0 0.0
    %1131 = vmatprep.subr.mxu0 0.0
    %1132 = vmatpush2.msra.mxu0 0.0
    %1133 = vmatprep.subr.mxu0 0.0
    %1134 = vmatpush2.msra.mxu0 0.0
    %1135 = vmatprep.subr.mxu0 0.0
    %1136 = vmatpush2.msra.mxu0 0.0
    %1137 = vmatprep.subr.mxu0 0.0
    %1138 = vmatpush2.msra.mxu0 0.0
    %1139 = vmatprep.subr.mxu0 0.0
    %1140 = vmatpush2.msra.mxu0 0.0
    %1141 = vmatprep.subr.mxu0 0.0
    %1142 = vmatpush2.msra.mxu0 0.0
    %1143 = vmatprep.subr.mxu0 0.0
    %1144 = vmatpush2.msra.mxu0 0.0
    %1145 = vmatprep.subr.mxu0 0.0
    %1146 = vmatpush2.msra.mxu0 0.0
    %1147 = vmatprep.subr.mxu0 0.0
    %1148 = vmatpush2.msra.mxu0 0.0
    %1149 = vmatprep.mubr.f32.mxu0 0.0
    %1150 = vmatmul.mubr.f32.gmra.mxu0 %v1080
    %v1151 = vpop.f32.mrf.mxu0
    %v1152 = vadd.f32 %v1078, %v1151
    %v1153 = vpop.f32.mrf.mxu0
    %1154 = vmatprep.mubr.f32.mxu0 0.0
    %1155 = vmatmul.mubr.f32.gmra.mxu0 %v1083
    %v1156 = vpop.f32.mrf.mxu0
    %v1157 = vadd.f32 %v1078, %v1156
    %v1158 = vpop.f32.mrf.mxu0
    %1159 = vdwg.mxu0
    %v1160 = vadd.f32 %v1152, %v979
    %v1161 = vadd.f32 %v1157, %v980
    %v1162 = vmax.f32 %v1160, 0.0
    %v1163 = vmax.f32 %v1161, 0.0
    %v1164 = vld [vmem:[#allocation4 + $0x1a0] sm:$0x1]
    %v1165 = vld [vmem:[#allocation4 + $0x1a8] sm:$0x1]
    %v1166 = vsel %vm176, %v1162, 0.0
    %1167 = vadd.xlane.f32.xlu0 %v1166
    %v1168 = vpop.xlane.xlu0 %1167
    %v1169 = vsel %vm176, %v1163, 0.0
    %1170 = vadd.xlane.f32.xlu0 %v1169
    %v1171 = vpop.xlane.xlu0 %1170
    %v1172 = vmul.f32 %v1168, %v948
    %v1173 = vmul.f32 %v1171, %v948
    %v1174 = vsub.f32 %v1162, %v1172
    %v1175 = vsub.f32 %v1163, %v1173
    %v1176 = vmul.f32 %v1174, %v1174
    %v1177 = vmul.f32 %v1175, %v1175
    %v1178 = vsel %vm176, %v1176, 0.0
    %1179 = vadd.xlane.f32.xlu0 %v1178
    %v1180 = vpop.xlane.xlu0 %1179
    %v1181 = vsel %vm176, %v1177, 0.0
    %1182 = vadd.xlane.f32.xlu0 %v1181
    %v1183 = vpop.xlane.xlu0 %1182
    %v1184 = vmul.f32 %v1180, %v948
    %v1185 = vmul.f32 %v1183, %v948
    %v1186 = vadd.f32 %v1184, 1e-05
    %v1187 = vadd.f32 %v1185, 1e-05
    %v1188 = vrsqrt.pop %v1186
    %v1189 = vrsqrt.pop %v1187
    %v1190 = vmul.f32 %v1174, %v1188
    %v1191 = vmul.f32 %v1175, %v1189
    %v1192 = vlaneseq
    %v1193 = vshrl.u32 %v1192, 7
    %v1194 = vsub.s32 0, %v1193
    %v1195 = vrot.slane %v1164, %v1194
    %v1196 = vmul.f32 %v1190, %v1195
    %v1197 = vmul.f32 %v1191, %v1195
    %v1198 = vlaneseq
    %v1199 = vshrl.u32 %v1198, 7
    %v1200 = vsub.s32 0, %v1199
    %v1201 = vrot.slane %v1165, %v1200
    %v1202 = vadd.f32 %v1196, %v1201
    %v1203 = vadd.f32 %v1197, %v1201
    %v1204 = vld [vmem:[#allocation4 + $0xc8] sm:$0xff]
    %v1205 = vld [vmem:[#allocation4 + $0xd0] sm:$0xff]
    %v1206 = vld [vmem:[#allocation4 + $0xd8] sm:$0xff]
    %v1207 = vld [vmem:[#allocation4 + $0xe0] sm:$0xff]
    %v1208 = vld [vmem:[#allocation4 + $0x1b0] sm:$0xf]
    %v1209 = vld [vmem:[#allocation4 + $0x1b8] sm:$0xf]
    %v1210 = vld [vmem:[#allocation4 + $0x1c0] sm:$0x1]
    %v1212 = vsel %vm176, %v1202, 0
    %v1215 = vsel %vm176, %v1203, 0
    %1217 = vmatprep.subr.mxu0 0.0
    %1218 = vmatpush1.msra.mxu0 0.0
    %1219 = vmatprep.subr.mxu0 0.0
    %1220 = vmatpush1.msra.mxu0 0.0
    %1221 = vmatprep.subr.mxu0 0.0
    %1222 = vmatpush1.msra.mxu0 0.0
    %1223 = vmatprep.subr.mxu0 0.0
    %1224 = vmatpush1.msra.mxu0 0.0
    %1225 = vmatprep.subr.mxu0 0.0
    %1226 = vmatpush1.msra.mxu0 0.0
    %1227 = vmatprep.subr.mxu0 0.0
    %1228 = vmatpush1.msra.mxu0 0.0
    %1229 = vmatprep.subr.mxu0 0.0
    %1230 = vmatpush1.msra.mxu0 0.0
    %1231 = vmatprep.subr.mxu0 0.0
    %1232 = vmatpush1.msra.mxu0 0.0
    %1233 = vmatprep.subr.mxu0 0.0
    %1234 = vmatpush1.msra.mxu0 0.0
    %1235 = vmatprep.subr.mxu0 0.0
    %1236 = vmatpush1.msra.mxu0 0.0
    %1237 = vmatprep.subr.mxu0 0.0
    %1238 = vmatpush1.msra.mxu0 0.0
    %1239 = vmatprep.subr.mxu0 0.0
    %1240 = vmatpush1.msra.mxu0 0.0
    %1241 = vmatprep.subr.mxu0 0.0
    %1242 = vmatpush1.msra.mxu0 %v1207
    %1243 = vmatprep.subr.mxu0 0.0
    %1244 = vmatpush1.msra.mxu0 %v1206
    %1245 = vmatprep.subr.mxu0 0.0
    %1246 = vmatpush1.msra.mxu0 %v1205
    %1247 = vmatprep.subr.mxu0 0.0
    %1248 = vmatpush1.msra.mxu0 %v1204
    %1249 = vmatprep.subr.mxu0 0.0
    %1250 = vmatpush2.msra.mxu0 0.0
    %1251 = vmatprep.subr.mxu0 0.0
    %1252 = vmatpush2.msra.mxu0 0.0
    %1253 = vmatprep.subr.mxu0 0.0
    %1254 = vmatpush2.msra.mxu0 0.0
    %1255 = vmatprep.subr.mxu0 0.0
    %1256 = vmatpush2.msra.mxu0 0.0
    %1257 = vmatprep.subr.mxu0 0.0
    %1258 = vmatpush2.msra.mxu0 0.0
    %1259 = vmatprep.subr.mxu0 0.0
    %1260 = vmatpush2.msra.mxu0 0.0
    %1261 = vmatprep.subr.mxu0 0.0
    %1262 = vmatpush2.msra.mxu0 0.0
    %1263 = vmatprep.subr.mxu0 0.0
    %1264 = vmatpush2.msra.mxu0 0.0
    %1265 = vmatprep.subr.mxu0 0.0
    %1266 = vmatpush2.msra.mxu0 0.0
    %1267 = vmatprep.subr.mxu0 0.0
    %1268 = vmatpush2.msra.mxu0 0.0
    %1269 = vmatprep.subr.mxu0 0.0
    %1270 = vmatpush2.msra.mxu0 0.0
    %1271 = vmatprep.subr.mxu0 0.0
    %1272 = vmatpush2.msra.mxu0 0.0
    %1273 = vmatprep.subr.mxu0 0.0
    %1274 = vmatpush2.msra.mxu0 0.0
    %1275 = vmatprep.subr.mxu0 0.0
    %1276 = vmatpush2.msra.mxu0 0.0
    %1277 = vmatprep.subr.mxu0 0.0
    %1278 = vmatpush2.msra.mxu0 0.0
    %1279 = vmatprep.subr.mxu0 0.0
    %1280 = vmatpush2.msra.mxu0 0.0
    %1281 = vmatprep.mubr.f32.mxu0 0.0
    %1282 = vmatmul.mubr.f32.gmra.mxu0 %v1212
    %v1283 = vpop.f32.mrf.mxu0
    %v1284 = vadd.f32 0.0, %v1283
    %v1285 = vpop.f32.mrf.mxu0
    %1286 = vmatprep.mubr.f32.mxu0 0.0
    %1287 = vmatmul.mubr.f32.gmra.mxu0 %v1215
    %v1288 = vpop.f32.mrf.mxu0
    %v1289 = vadd.f32 0.0, %v1288
    %v1290 = vpop.f32.mrf.mxu0
    %1291 = vdwg.mxu0
    %1292 = vmatprep.subr.mxu0 0.0
    %1293 = vmatpush1.xpose.msra.mxu0 0.0
    %1294 = vmatprep.subr.mxu0 0.0
    %1295 = vmatpush1.xpose.msra.mxu0 0.0
    %1296 = vmatprep.subr.mxu0 0.0
    %1297 = vmatpush1.xpose.msra.mxu0 0.0
    %1298 = vmatprep.subr.mxu0 0.0
    %1299 = vmatpush1.xpose.msra.mxu0 0.0
    %1300 = vmatprep.subr.mxu0 0.0
    %1301 = vmatpush1.xpose.msra.mxu0 0.0
    %1302 = vmatprep.subr.mxu0 0.0
    %1303 = vmatpush1.xpose.msra.mxu0 0.0
    %1304 = vmatprep.subr.mxu0 0.0
    %1305 = vmatpush1.xpose.msra.mxu0 0.0
    %1306 = vmatprep.subr.mxu0 0.0
    %1307 = vmatpush1.xpose.msra.mxu0 0.0
    %1308 = vmatprep.subr.mxu0 0.0
    %1309 = vmatpush1.xpose.msra.mxu0 0.0
    %1310 = vmatprep.subr.mxu0 0.0
    %1311 = vmatpush1.xpose.msra.mxu0 0.0
    %1312 = vmatprep.subr.mxu0 0.0
    %1313 = vmatpush1.xpose.msra.mxu0 0.0
    %1314 = vmatprep.subr.mxu0 0.0
    %1315 = vmatpush1.xpose.msra.mxu0 0.0
    %1316 = vmatprep.subr.mxu0 0.0
    %1317 = vmatpush1.xpose.msra.mxu0 0.0
    %1318 = vmatprep.subr.mxu0 0.0
    %1319 = vmatpush1.xpose.msra.mxu0 0.0
    %1320 = vmatprep.subr.mxu0 0.0
    %1321 = vmatpush1.xpose.msra.mxu0 0.0
    %1322 = vmatprep.subr.mxu0 0.0
    %1323 = vmatpush1.xpose.msra.mxu0 %v1209
    %1324 = vmatprep.subr.mxu0 0.0
    %1325 = vmatpush2.xpose.msra.mxu0 0.0
    %1326 = vmatprep.subr.mxu0 0.0
    %1327 = vmatpush2.xpose.msra.mxu0 0.0
    %1328 = vmatprep.subr.mxu0 0.0
    %1329 = vmatpush2.xpose.msra.mxu0 0.0
    %1330 = vmatprep.subr.mxu0 0.0
    %1331 = vmatpush2.xpose.msra.mxu0 0.0
    %1332 = vmatprep.subr.mxu0 0.0
    %1333 = vmatpush2.xpose.msra.mxu0 0.0
    %1334 = vmatprep.subr.mxu0 0.0
    %1335 = vmatpush2.xpose.msra.mxu0 0.0
    %1336 = vmatprep.subr.mxu0 0.0
    %1337 = vmatpush2.xpose.msra.mxu0 0.0
    %1338 = vmatprep.subr.mxu0 0.0
    %1339 = vmatpush2.xpose.msra.mxu0 0.0
    %1340 = vmatprep.subr.mxu0 0.0
    %1341 = vmatpush2.xpose.msra.mxu0 0.0
    %1342 = vmatprep.subr.mxu0 0.0
    %1343 = vmatpush2.xpose.msra.mxu0 0.0
    %1344 = vmatprep.subr.mxu0 0.0
    %1345 = vmatpush2.xpose.msra.mxu0 0.0
    %1346 = vmatprep.subr.mxu0 0.0
    %1347 = vmatpush2.xpose.msra.mxu0 0.0
    %1348 = vmatprep.subr.mxu0 0.0
    %1349 = vmatpush2.xpose.msra.mxu0 0.0
    %1350 = vmatprep.subr.mxu0 0.0
    %1351 = vmatpush2.xpose.msra.mxu0 0.0
    %1352 = vmatprep.subr.mxu0 0.0
    %1353 = vmatpush2.xpose.msra.mxu0 0.0
    %1354 = vmatprep.subr.mxu0 0.0
    %1355 = vmatpush2.xpose.msra.mxu0 0.0
    %1356 = vmatprep.mubr.f32.mxu0 0.0
    %1357 = vmatmul.mubr.f32.gmra.mxu0 %v1284
    %v1358 = vpop.f32.mrf.mxu0
    %v1359 = vadd.f32 0.0, %v1358
    %v1360 = vpop.f32.mrf.mxu0
    %1361 = vmatprep.mubr.f32.mxu0 0.0
    %1362 = vmatmul.mubr.f32.gmra.mxu0 %v1289
    %v1363 = vpop.f32.mrf.mxu0
    %v1364 = vadd.f32 0.0, %v1363
    %v1365 = vpop.f32.mrf.mxu0
    %1366 = vdwg.mxu0
    %1367 = vmatprep.subr.mxu0 0.0
    %1368 = vmatpush1.xpose.msra.mxu0 0.0
    %1369 = vmatprep.subr.mxu0 0.0
    %1370 = vmatpush1.xpose.msra.mxu0 0.0
    %1371 = vmatprep.subr.mxu0 0.0
    %1372 = vmatpush1.xpose.msra.mxu0 0.0
    %1373 = vmatprep.subr.mxu0 0.0
    %1374 = vmatpush1.xpose.msra.mxu0 0.0
    %1375 = vmatprep.subr.mxu0 0.0
    %1376 = vmatpush1.xpose.msra.mxu0 0.0
    %1377 = vmatprep.subr.mxu0 0.0
    %1378 = vmatpush1.xpose.msra.mxu0 0.0
    %1379 = vmatprep.subr.mxu0 0.0
    %1380 = vmatpush1.xpose.msra.mxu0 0.0
    %1381 = vmatprep.subr.mxu0 0.0
    %1382 = vmatpush1.xpose.msra.mxu0 0.0
    %1383 = vmatprep.subr.mxu0 0.0
    %1384 = vmatpush1.xpose.msra.mxu0 0.0
    %1385 = vmatprep.subr.mxu0 0.0
    %1386 = vmatpush1.xpose.msra.mxu0 0.0
    %1387 = vmatprep.subr.mxu0 0.0
    %1388 = vmatpush1.xpose.msra.mxu0 0.0
    %1389 = vmatprep.subr.mxu0 0.0
    %1390 = vmatpush1.xpose.msra.mxu0 0.0
    %1391 = vmatprep.subr.mxu0 0.0
    %1392 = vmatpush1.xpose.msra.mxu0 0.0
    %1393 = vmatprep.subr.mxu0 0.0
    %1394 = vmatpush1.xpose.msra.mxu0 0.0
    %1395 = vmatprep.subr.mxu0 0.0
    %1396 = vmatpush1.xpose.msra.mxu0 %v1289
    %1397 = vmatprep.subr.mxu0 0.0
    %1398 = vmatpush1.xpose.msra.mxu0 %v1284
    %1399 = vmatprep.subr.mxu0 0.0
    %1400 = vmatpush2.xpose.msra.mxu0 0.0
    %1401 = vmatprep.subr.mxu0 0.0
    %1402 = vmatpush2.xpose.msra.mxu0 0.0
    %1403 = vmatprep.subr.mxu0 0.0
    %1404 = vmatpush2.xpose.msra.mxu0 0.0
    %1405 = vmatprep.subr.mxu0 0.0
    %1406 = vmatpush2.xpose.msra.mxu0 0.0
    %1407 = vmatprep.subr.mxu0 0.0
    %1408 = vmatpush2.xpose.msra.mxu0 0.0
    %1409 = vmatprep.subr.mxu0 0.0
    %1410 = vmatpush2.xpose.msra.mxu0 0.0
    %1411 = vmatprep.subr.mxu0 0.0
    %1412 = vmatpush2.xpose.msra.mxu0 0.0
    %1413 = vmatprep.subr.mxu0 0.0
    %1414 = vmatpush2.xpose.msra.mxu0 0.0
    %1415 = vmatprep.subr.mxu0 0.0
    %1416 = vmatpush2.xpose.msra.mxu0 0.0
    %1417 = vmatprep.subr.mxu0 0.0
    %1418 = vmatpush2.xpose.msra.mxu0 0.0
    %1419 = vmatprep.subr.mxu0 0.0
    %1420 = vmatpush2.xpose.msra.mxu0 0.0
    %1421 = vmatprep.subr.mxu0 0.0
    %1422 = vmatpush2.xpose.msra.mxu0 0.0
    %1423 = vmatprep.subr.mxu0 0.0
    %1424 = vmatpush2.xpose.msra.mxu0 0.0
    %1425 = vmatprep.subr.mxu0 0.0
    %1426 = vmatpush2.xpose.msra.mxu0 0.0
    %1427 = vmatprep.subr.mxu0 0.0
    %1428 = vmatpush2.xpose.msra.mxu0 0.0
    %1429 = vmatprep.subr.mxu0 0.0
    %1430 = vmatpush2.xpose.msra.mxu0 0.0
    %1431 = vmatprep.mubr.f32.mxu0 0.0
    %1432 = vmatmul.mubr.f32.gmra.mxu0 %v1208
    %v1433 = vpop.f32.mrf.mxu0
    %v1434 = vadd.f32 0.0, %v1433
    %v1435 = vpop.f32.mrf.mxu0
    %1436 = vdwg.mxu0
    %1438 = vset.pattern.permute.xlu0 0
    %1439 = vperm.xlu0 %1438, %v1359
    %v1440 = vpop.permute.xlu0 %1439
    %1443 = vset.pattern.permute.xlu0 0
    %1444 = vperm.xlu0 %1443, %v1364
    %v1445 = vpop.permute.xlu0 %1444
    %v1447 = vlaneseq
    %v1448 = vshrl.u32 %v1447, 7
    %v1449 = vsub.s32 0, %v1448
    %v1450 = vrot.slane %v1434, %v1449
    %v1451 = vadd.f32 %v1440, %v1450
    %v1452 = vadd.f32 %v1445, %v1450
    %vm1453 = vcmp.ge.f32.partialorder %v1451, 0.0
    %vm1454 = vcmp.ge.f32.partialorder %v1452, 0.0
    %v1455 = vmul.f32 %v1451, 0.2
    %v1456 = vmul.f32 %v1452, 0.2
    %v1457 = vsel %vm1453, %v1451, %v1455
    %v1458 = vsel %vm1454, %v1452, %v1456
    %v1459 = vadd.f32 %v1457, %v49
    %v1460 = vadd.f32 %v1458, %v50
    %v1461 = vsel %vm278, %v1459, -inf
    %1462 = vmax.xlane.f32.xlu0 %v1461
    %v1463 = vpop.xlane.xlu0 %1462
    %v1464 = vsel %vm278, %v1460, -inf
    %1465 = vmax.xlane.f32.xlu0 %v1464
    %v1466 = vpop.xlane.xlu0 %1465
    %v1467 = vsub.f32 %v1459, %v1463
    %v1468 = vsub.f32 %v1460, %v1466
    %v1469 = vmul.f32 %v1467, 1.442695
    %v1470 = vpow.pop %v1469
    %v1471 = vmul.f32 %v1468, 1.442695
    %v1472 = vpow.pop %v1471
    %v1473 = vsel %vm278, %v1470, 0.0
    %1474 = vadd.xlane.f32.xlu0 %v1473
    %v1475 = vpop.xlane.xlu0 %1474
    %v1476 = vsel %vm278, %v1472, 0.0
    %1477 = vadd.xlane.f32.xlu0 %v1476
    %v1478 = vpop.xlane.xlu0 %1477
    %v1479 = vrcp.pop %v1475
    %v1480 = vrcp.pop %v1478
    %v1481 = vmul.f32 %v1470, %v1479
    %v1482 = vmul.f32 %v1472, %v1480
    %1483 = vset.pattern.permute.xlu0 1
    %1484 = vperm.xlu0 %1483, %v1359
    %v1485 = vpop.permute.xlu0 %1484
    %1487 = vset.pattern.permute.xlu0 1
    %1488 = vperm.xlu0 %1487, %v1364
    %v1489 = vpop.permute.xlu0 %1488
    %v1491 = vlaneseq
    %v1492 = vshrl.u32 %v1491, 7
    %v1493 = vsub.s32 1, %v1492
    %v1494 = vrot.slane %v1434, %v1493
    %v1495 = vadd.f32 %v1485, %v1494
    %v1496 = vadd.f32 %v1489, %v1494
    %vm1497 = vcmp.ge.f32.partialorder %v1495, 0.0
    %vm1498 = vcmp.ge.f32.partialorder %v1496, 0.0
    %v1499 = vmul.f32 %v1495, 0.2
    %v1500 = vmul.f32 %v1496, 0.2
    %v1501 = vsel %vm1497, %v1495, %v1499
    %v1502 = vsel %vm1498, %v1496, %v1500
    %v1503 = vadd.f32 %v1501, %v49
    %v1504 = vadd.f32 %v1502, %v50
    %v1505 = vsel %vm278, %v1503, -inf
    %1506 = vmax.xlane.f32.xlu0 %v1505
    %v1507 = vpop.xlane.xlu0 %1506
    %v1508 = vsel %vm278, %v1504, -inf
    %1509 = vmax.xlane.f32.xlu0 %v1508
    %v1510 = vpop.xlane.xlu0 %1509
    %v1511 = vsub.f32 %v1503, %v1507
    %v1512 = vsub.f32 %v1504, %v1510
    %v1513 = vmul.f32 %v1511, 1.442695
    %v1514 = vpow.pop %v1513
    %v1515 = vmul.f32 %v1512, 1.442695
    %v1516 = vpow.pop %v1515
    %v1517 = vsel %vm278, %v1514, 0.0
    %1518 = vadd.xlane.f32.xlu0 %v1517
    %v1519 = vpop.xlane.xlu0 %1518
    %v1520 = vsel %vm278, %v1516, 0.0
    %1521 = vadd.xlane.f32.xlu0 %v1520
    %v1522 = vpop.xlane.xlu0 %1521
    %v1523 = vrcp.pop %v1519
    %v1524 = vrcp.pop %v1522
    %v1525 = vmul.f32 %v1514, %v1523
    %v1526 = vmul.f32 %v1516, %v1524
    %1529 = vrot.lane.b32.xlu0 %v1284, 96
    %v1530 = vpop.permute.xlu0 %1529
    %1531 = vrot.lane.b32.xlu0 %v1289, 96
    %v1532 = vpop.permute.xlu0 %1531
    %v1536 = vsel %vm278, %v1525, 0
    %v1539 = vsel %vm278, %v1526, 0
    %1541 = vmatprep.subr.mxu0 0.0
    %1542 = vmatpush1.msra.mxu0 0.0
    %1543 = vmatprep.subr.mxu0 0.0
    %1544 = vmatpush1.msra.mxu0 0.0
    %1545 = vmatprep.subr.mxu0 0.0
    %1546 = vmatpush1.msra.mxu0 0.0
    %1547 = vmatprep.subr.mxu0 0.0
    %1548 = vmatpush1.msra.mxu0 0.0
    %1549 = vmatprep.subr.mxu0 0.0
    %1550 = vmatpush1.msra.mxu0 0.0
    %1551 = vmatprep.subr.mxu0 0.0
    %1552 = vmatpush1.msra.mxu0 0.0
    %1553 = vmatprep.subr.mxu0 0.0
    %1554 = vmatpush1.msra.mxu0 0.0
    %1555 = vmatprep.subr.mxu0 0.0
    %1556 = vmatpush1.msra.mxu0 0.0
    %1557 = vmatprep.subr.mxu0 0.0
    %1558 = vmatpush1.msra.mxu0 0.0
    %1559 = vmatprep.subr.mxu0 0.0
    %1560 = vmatpush1.msra.mxu0 0.0
    %1561 = vmatprep.subr.mxu0 0.0
    %1562 = vmatpush1.msra.mxu0 0.0
    %1563 = vmatprep.subr.mxu0 0.0
    %1564 = vmatpush1.msra.mxu0 0.0
    %1565 = vmatprep.subr.mxu0 0.0
    %1566 = vmatpush1.msra.mxu0 0.0
    %1567 = vmatprep.subr.mxu0 0.0
    %1568 = vmatpush1.msra.mxu0 0.0
    %1569 = vmatprep.subr.mxu0 0.0
    %1570 = vmatpush1.msra.mxu0 %v1532
    %1571 = vmatprep.subr.mxu0 0.0
    %1572 = vmatpush1.msra.mxu0 %v1530
    %1573 = vmatprep.subr.mxu0 0.0
    %1574 = vmatpush2.msra.mxu0 0.0
    %1575 = vmatprep.subr.mxu0 0.0
    %1576 = vmatpush2.msra.mxu0 0.0
    %1577 = vmatprep.subr.mxu0 0.0
    %1578 = vmatpush2.msra.mxu0 0.0
    %1579 = vmatprep.subr.mxu0 0.0
    %1580 = vmatpush2.msra.mxu0 0.0
    %1581 = vmatprep.subr.mxu0 0.0
    %1582 = vmatpush2.msra.mxu0 0.0
    %1583 = vmatprep.subr.mxu0 0.0
    %1584 = vmatpush2.msra.mxu0 0.0
    %1585 = vmatprep.subr.mxu0 0.0
    %1586 = vmatpush2.msra.mxu0 0.0
    %1587 = vmatprep.subr.mxu0 0.0
    %1588 = vmatpush2.msra.mxu0 0.0
    %1589 = vmatprep.subr.mxu0 0.0
    %1590 = vmatpush2.msra.mxu0 0.0
    %1591 = vmatprep.subr.mxu0 0.0
    %1592 = vmatpush2.msra.mxu0 0.0
    %1593 = vmatprep.subr.mxu0 0.0
    %1594 = vmatpush2.msra.mxu0 0.0
    %1595 = vmatprep.subr.mxu0 0.0
    %1596 = vmatpush2.msra.mxu0 0.0
    %1597 = vmatprep.subr.mxu0 0.0
    %1598 = vmatpush2.msra.mxu0 0.0
    %1599 = vmatprep.subr.mxu0 0.0
    %1600 = vmatpush2.msra.mxu0 0.0
    %1601 = vmatprep.subr.mxu0 0.0
    %1602 = vmatpush2.msra.mxu0 0.0
    %1603 = vmatprep.subr.mxu0 0.0
    %1604 = vmatpush2.msra.mxu0 0.0
    %1605 = vmatprep.mubr.f32.mxu0 0.0
    %1606 = vmatmul.mubr.f32.gmra.mxu0 %v1536
    %v1607 = vpop.f32.mrf.mxu0
    %v1608 = vadd.f32 0.0, %v1607
    %v1609 = vpop.f32.mrf.mxu0
    %1610 = vmatprep.mubr.f32.mxu0 0.0
    %1611 = vmatmul.mubr.f32.gmra.mxu0 %v1539
    %v1612 = vpop.f32.mrf.mxu0
    %v1613 = vadd.f32 0.0, %v1612
    %v1614 = vpop.f32.mrf.mxu0
    %1615 = vdwg.mxu0
    %v1617 = vsel %vm278, %v1481, 0
    %v1620 = vsel %vm278, %v1482, 0
    %1622 = vmatprep.subr.mxu0 0.0
    %1623 = vmatpush1.msra.mxu0 0.0
    %1624 = vmatprep.subr.mxu0 0.0
    %1625 = vmatpush1.msra.mxu0 0.0
    %1626 = vmatprep.subr.mxu0 0.0
    %1627 = vmatpush1.msra.mxu0 0.0
    %1628 = vmatprep.subr.mxu0 0.0
    %1629 = vmatpush1.msra.mxu0 0.0
    %1630 = vmatprep.subr.mxu0 0.0
    %1631 = vmatpush1.msra.mxu0 0.0
    %1632 = vmatprep.subr.mxu0 0.0
    %1633 = vmatpush1.msra.mxu0 0.0
    %1634 = vmatprep.subr.mxu0 0.0
    %1635 = vmatpush1.msra.mxu0 0.0
    %1636 = vmatprep.subr.mxu0 0.0
    %1637 = vmatpush1.msra.mxu0 0.0
    %1638 = vmatprep.subr.mxu0 0.0
    %1639 = vmatpush1.msra.mxu0 0.0
    %1640 = vmatprep.subr.mxu0 0.0
    %1641 = vmatpush1.msra.mxu0 0.0
    %1642 = vmatprep.subr.mxu0 0.0
    %1643 = vmatpush1.msra.mxu0 0.0
    %1644 = vmatprep.subr.mxu0 0.0
    %1645 = vmatpush1.msra.mxu0 0.0
    %1646 = vmatprep.subr.mxu0 0.0
    %1647 = vmatpush1.msra.mxu0 0.0
    %1648 = vmatprep.subr.mxu0 0.0
    %1649 = vmatpush1.msra.mxu0 0.0
    %1650 = vmatprep.subr.mxu0 0.0
    %1651 = vmatpush1.msra.mxu0 %v1289
    %1652 = vmatprep.subr.mxu0 0.0
    %1653 = vmatpush1.msra.mxu0 %v1284
    %1654 = vmatprep.subr.mxu0 0.0
    %1655 = vmatpush2.msra.mxu0 0.0
    %1656 = vmatprep.subr.mxu0 0.0
    %1657 = vmatpush2.msra.mxu0 0.0
    %1658 = vmatprep.subr.mxu0 0.0
    %1659 = vmatpush2.msra.mxu0 0.0
    %1660 = vmatprep.subr.mxu0 0.0
    %1661 = vmatpush2.msra.mxu0 0.0
    %1662 = vmatprep.subr.mxu0 0.0
    %1663 = vmatpush2.msra.mxu0 0.0
    %1664 = vmatprep.subr.mxu0 0.0
    %1665 = vmatpush2.msra.mxu0 0.0
    %1666 = vmatprep.subr.mxu0 0.0
    %1667 = vmatpush2.msra.mxu0 0.0
    %1668 = vmatprep.subr.mxu0 0.0
    %1669 = vmatpush2.msra.mxu0 0.0
    %1670 = vmatprep.subr.mxu0 0.0
    %1671 = vmatpush2.msra.mxu0 0.0
    %1672 = vmatprep.subr.mxu0 0.0
    %1673 = vmatpush2.msra.mxu0 0.0
    %1674 = vmatprep.subr.mxu0 0.0
    %1675 = vmatpush2.msra.mxu0 0.0
    %1676 = vmatprep.subr.mxu0 0.0
    %1677 = vmatpush2.msra.mxu0 0.0
    %1678 = vmatprep.subr.mxu0 0.0
    %1679 = vmatpush2.msra.mxu0 0.0
    %1680 = vmatprep.subr.mxu0 0.0
    %1681 = vmatpush2.msra.mxu0 0.0
    %1682 = vmatprep.subr.mxu0 0.0
    %1683 = vmatpush2.msra.mxu0 0.0
    %1684 = vmatprep.subr.mxu0 0.0
    %1685 = vmatpush2.msra.mxu0 0.0
    %1686 = vmatprep.mubr.f32.mxu0 0.0
    %1687 = vmatmul.mubr.f32.gmra.mxu0 %v1617
    %v1688 = vpop.f32.mrf.mxu0
    %v1689 = vadd.f32 %v1608, %v1688
    %v1690 = vpop.f32.mrf.mxu0
    %1691 = vmatprep.mubr.f32.mxu0 0.0
    %1692 = vmatmul.mubr.f32.gmra.mxu0 %v1620
    %v1693 = vpop.f32.mrf.mxu0
    %v1694 = vadd.f32 %v1613, %v1693
    %v1695 = vpop.f32.mrf.mxu0
    %1696 = vdwg.mxu0
    %1697 = vset.pattern.permute.xlu0 2
    %1698 = vperm.xlu0 %1697, %v1359
    %v1699 = vpop.permute.xlu0 %1698
    %1701 = vset.pattern.permute.xlu0 2
    %1702 = vperm.xlu0 %1701, %v1364
    %v1703 = vpop.permute.xlu0 %1702
    %v1705 = vlaneseq
    %v1706 = vshrl.u32 %v1705, 7
    %v1707 = vsub.s32 2, %v1706
    %v1708 = vrot.slane %v1434, %v1707
    %v1709 = vadd.f32 %v1699, %v1708
    %v1710 = vadd.f32 %v1703, %v1708
    %vm1711 = vcmp.ge.f32.partialorder %v1709, 0.0
    %vm1712 = vcmp.ge.f32.partialorder %v1710, 0.0
    %v1713 = vmul.f32 %v1709, 0.2
    %v1714 = vmul.f32 %v1710, 0.2
    %v1715 = vsel %vm1711, %v1709, %v1713
    %v1716 = vsel %vm1712, %v1710, %v1714
    %v1717 = vadd.f32 %v1715, %v49
    %v1718 = vadd.f32 %v1716, %v50
    %v1719 = vsel %vm278, %v1717, -inf
    %1720 = vmax.xlane.f32.xlu0 %v1719
    %v1721 = vpop.xlane.xlu0 %1720
    %v1722 = vsel %vm278, %v1718, -inf
    %1723 = vmax.xlane.f32.xlu0 %v1722
    %v1724 = vpop.xlane.xlu0 %1723
    %v1725 = vsub.f32 %v1717, %v1721
    %v1726 = vsub.f32 %v1718, %v1724
    %v1727 = vmul.f32 %v1725, 1.442695
    %v1728 = vpow.pop %v1727
    %v1729 = vmul.f32 %v1726, 1.442695
    %v1730 = vpow.pop %v1729
    %v1731 = vsel %vm278, %v1728, 0.0
    %1732 = vadd.xlane.f32.xlu0 %v1731
    %v1733 = vpop.xlane.xlu0 %1732
    %v1734 = vsel %vm278, %v1730, 0.0
    %1735 = vadd.xlane.f32.xlu0 %v1734
    %v1736 = vpop.xlane.xlu0 %1735
    %v1737 = vrcp.pop %v1733
    %v1738 = vrcp.pop %v1736
    %v1739 = vmul.f32 %v1728, %v1737
    %v1740 = vmul.f32 %v1730, %v1738
    %1741 = vrot.lane.b32.xlu0 %v1284, 64
    %v1742 = vpop.permute.xlu0 %1741
    %1743 = vrot.lane.b32.xlu0 %v1289, 64
    %v1744 = vpop.permute.xlu0 %1743
    %v1748 = vsel %vm278, %v1739, 0
    %v1751 = vsel %vm278, %v1740, 0
    %1753 = vmatprep.subr.mxu0 0.0
    %1754 = vmatpush1.msra.mxu0 0.0
    %1755 = vmatprep.subr.mxu0 0.0
    %1756 = vmatpush1.msra.mxu0 0.0
    %1757 = vmatprep.subr.mxu0 0.0
    %1758 = vmatpush1.msra.mxu0 0.0
    %1759 = vmatprep.subr.mxu0 0.0
    %1760 = vmatpush1.msra.mxu0 0.0
    %1761 = vmatprep.subr.mxu0 0.0
    %1762 = vmatpush1.msra.mxu0 0.0
    %1763 = vmatprep.subr.mxu0 0.0
    %1764 = vmatpush1.msra.mxu0 0.0
    %1765 = vmatprep.subr.mxu0 0.0
    %1766 = vmatpush1.msra.mxu0 0.0
    %1767 = vmatprep.subr.mxu0 0.0
    %1768 = vmatpush1.msra.mxu0 0.0
    %1769 = vmatprep.subr.mxu0 0.0
    %1770 = vmatpush1.msra.mxu0 0.0
    %1771 = vmatprep.subr.mxu0 0.0
    %1772 = vmatpush1.msra.mxu0 0.0
    %1773 = vmatprep.subr.mxu0 0.0
    %1774 = vmatpush1.msra.mxu0 0.0
    %1775 = vmatprep.subr.mxu0 0.0
    %1776 = vmatpush1.msra.mxu0 0.0
    %1777 = vmatprep.subr.mxu0 0.0
    %1778 = vmatpush1.msra.mxu0 0.0
    %1779 = vmatprep.subr.mxu0 0.0
    %1780 = vmatpush1.msra.mxu0 0.0
    %1781 = vmatprep.subr.mxu0 0.0
    %1782 = vmatpush1.msra.mxu0 %v1744
    %1783 = vmatprep.subr.mxu0 0.0
    %1784 = vmatpush1.msra.mxu0 %v1742
    %1785 = vmatprep.subr.mxu0 0.0
    %1786 = vmatpush2.msra.mxu0 0.0
    %1787 = vmatprep.subr.mxu0 0.0
    %1788 = vmatpush2.msra.mxu0 0.0
    %1789 = vmatprep.subr.mxu0 0.0
    %1790 = vmatpush2.msra.mxu0 0.0
    %1791 = vmatprep.subr.mxu0 0.0
    %1792 = vmatpush2.msra.mxu0 0.0
    %1793 = vmatprep.subr.mxu0 0.0
    %1794 = vmatpush2.msra.mxu0 0.0
    %1795 = vmatprep.subr.mxu0 0.0
    %1796 = vmatpush2.msra.mxu0 0.0
    %1797 = vmatprep.subr.mxu0 0.0
    %1798 = vmatpush2.msra.mxu0 0.0
    %1799 = vmatprep.subr.mxu0 0.0
    %1800 = vmatpush2.msra.mxu0 0.0
    %1801 = vmatprep.subr.mxu0 0.0
    %1802 = vmatpush2.msra.mxu0 0.0
    %1803 = vmatprep.subr.mxu0 0.0
    %1804 = vmatpush2.msra.mxu0 0.0
    %1805 = vmatprep.subr.mxu0 0.0
    %1806 = vmatpush2.msra.mxu0 0.0
    %1807 = vmatprep.subr.mxu0 0.0
    %1808 = vmatpush2.msra.mxu0 0.0
    %1809 = vmatprep.subr.mxu0 0.0
    %1810 = vmatpush2.msra.mxu0 0.0
    %1811 = vmatprep.subr.mxu0 0.0
    %1812 = vmatpush2.msra.mxu0 0.0
    %1813 = vmatprep.subr.mxu0 0.0
    %1814 = vmatpush2.msra.mxu0 0.0
    %1815 = vmatprep.subr.mxu0 0.0
    %1816 = vmatpush2.msra.mxu0 0.0
    %1817 = vmatprep.mubr.f32.mxu0 0.0
    %1818 = vmatmul.mubr.f32.gmra.mxu0 %v1748
    %v1819 = vpop.f32.mrf.mxu0
    %v1820 = vadd.f32 0.0, %v1819
    %v1821 = vpop.f32.mrf.mxu0
    %1822 = vmatprep.mubr.f32.mxu0 0.0
    %1823 = vmatmul.mubr.f32.gmra.mxu0 %v1751
    %v1824 = vpop.f32.mrf.mxu0
    %v1825 = vadd.f32 0.0, %v1824
    %v1826 = vpop.f32.mrf.mxu0
    %1827 = vdwg.mxu0
    %v1828 = vadd.f32 %v1689, %v1820
    %v1829 = vadd.f32 %v1694, %v1825
    %1830 = vset.pattern.permute.xlu0 3
    %1831 = vperm.xlu0 %1830, %v1359
    %v1832 = vpop.permute.xlu0 %1831
    %1834 = vset.pattern.permute.xlu0 3
    %1835 = vperm.xlu0 %1834, %v1364
    %v1836 = vpop.permute.xlu0 %1835
    %v1838 = vlaneseq
    %v1839 = vshrl.u32 %v1838, 7
    %v1840 = vsub.s32 3, %v1839
    %v1841 = vrot.slane %v1434, %v1840
    %v1842 = vadd.f32 %v1832, %v1841
    %v1843 = vadd.f32 %v1836, %v1841
    %vm1844 = vcmp.ge.f32.partialorder %v1842, 0.0
    %vm1845 = vcmp.ge.f32.partialorder %v1843, 0.0
    %v1846 = vmul.f32 %v1842, 0.2
    %v1847 = vmul.f32 %v1843, 0.2
    %v1848 = vsel %vm1844, %v1842, %v1846
    %v1849 = vsel %vm1845, %v1843, %v1847
    %v1850 = vadd.f32 %v1848, %v49
    %v1851 = vadd.f32 %v1849, %v50
    %v1852 = vsel %vm278, %v1850, -inf
    %1853 = vmax.xlane.f32.xlu0 %v1852
    %v1854 = vpop.xlane.xlu0 %1853
    %v1855 = vsel %vm278, %v1851, -inf
    %1856 = vmax.xlane.f32.xlu0 %v1855
    %v1857 = vpop.xlane.xlu0 %1856
    %v1858 = vsub.f32 %v1850, %v1854
    %v1859 = vsub.f32 %v1851, %v1857
    %v1860 = vmul.f32 %v1858, 1.442695
    %v1861 = vpow.pop %v1860
    %v1862 = vmul.f32 %v1859, 1.442695
    %v1863 = vpow.pop %v1862
    %v1864 = vsel %vm278, %v1861, 0.0
    %1865 = vadd.xlane.f32.xlu0 %v1864
    %v1866 = vpop.xlane.xlu0 %1865
    %v1867 = vsel %vm278, %v1863, 0.0
    %1868 = vadd.xlane.f32.xlu0 %v1867
    %v1869 = vpop.xlane.xlu0 %1868
    %v1870 = vrcp.pop %v1866
    %v1871 = vrcp.pop %v1869
    %v1872 = vmul.f32 %v1861, %v1870
    %v1873 = vmul.f32 %v1863, %v1871
    %1874 = vrot.lane.b32.xlu0 %v1284, 32
    %v1875 = vpop.permute.xlu0 %1874
    %1876 = vrot.lane.b32.xlu0 %v1289, 32
    %v1877 = vpop.permute.xlu0 %1876
    %v1881 = vsel %vm278, %v1872, 0
    %v1884 = vsel %vm278, %v1873, 0
    %1886 = vmatprep.subr.mxu0 0.0
    %1887 = vmatpush1.msra.mxu0 0.0
    %1888 = vmatprep.subr.mxu0 0.0
    %1889 = vmatpush1.msra.mxu0 0.0
    %1890 = vmatprep.subr.mxu0 0.0
    %1891 = vmatpush1.msra.mxu0 0.0
    %1892 = vmatprep.subr.mxu0 0.0
    %1893 = vmatpush1.msra.mxu0 0.0
    %1894 = vmatprep.subr.mxu0 0.0
    %1895 = vmatpush1.msra.mxu0 0.0
    %1896 = vmatprep.subr.mxu0 0.0
    %1897 = vmatpush1.msra.mxu0 0.0
    %1898 = vmatprep.subr.mxu0 0.0
    %1899 = vmatpush1.msra.mxu0 0.0
    %1900 = vmatprep.subr.mxu0 0.0
    %1901 = vmatpush1.msra.mxu0 0.0
    %1902 = vmatprep.subr.mxu0 0.0
    %1903 = vmatpush1.msra.mxu0 0.0
    %1904 = vmatprep.subr.mxu0 0.0
    %1905 = vmatpush1.msra.mxu0 0.0
    %1906 = vmatprep.subr.mxu0 0.0
    %1907 = vmatpush1.msra.mxu0 0.0
    %1908 = vmatprep.subr.mxu0 0.0
    %1909 = vmatpush1.msra.mxu0 0.0
    %1910 = vmatprep.subr.mxu0 0.0
    %1911 = vmatpush1.msra.mxu0 0.0
    %1912 = vmatprep.subr.mxu0 0.0
    %1913 = vmatpush1.msra.mxu0 0.0
    %1914 = vmatprep.subr.mxu0 0.0
    %1915 = vmatpush1.msra.mxu0 %v1877
    %1916 = vmatprep.subr.mxu0 0.0
    %1917 = vmatpush1.msra.mxu0 %v1875
    %1918 = vmatprep.subr.mxu0 0.0
    %1919 = vmatpush2.msra.mxu0 0.0
    %1920 = vmatprep.subr.mxu0 0.0
    %1921 = vmatpush2.msra.mxu0 0.0
    %1922 = vmatprep.subr.mxu0 0.0
    %1923 = vmatpush2.msra.mxu0 0.0
    %1924 = vmatprep.subr.mxu0 0.0
    %1925 = vmatpush2.msra.mxu0 0.0
    %1926 = vmatprep.subr.mxu0 0.0
    %1927 = vmatpush2.msra.mxu0 0.0
    %1928 = vmatprep.subr.mxu0 0.0
    %1929 = vmatpush2.msra.mxu0 0.0
    %1930 = vmatprep.subr.mxu0 0.0
    %1931 = vmatpush2.msra.mxu0 0.0
    %1932 = vmatprep.subr.mxu0 0.0
    %1933 = vmatpush2.msra.mxu0 0.0
    %1934 = vmatprep.subr.mxu0 0.0
    %1935 = vmatpush2.msra.mxu0 0.0
    %1936 = vmatprep.subr.mxu0 0.0
    %1937 = vmatpush2.msra.mxu0 0.0
    %1938 = vmatprep.subr.mxu0 0.0
    %1939 = vmatpush2.msra.mxu0 0.0
    %1940 = vmatprep.subr.mxu0 0.0
    %1941 = vmatpush2.msra.mxu0 0.0
    %1942 = vmatprep.subr.mxu0 0.0
    %1943 = vmatpush2.msra.mxu0 0.0
    %1944 = vmatprep.subr.mxu0 0.0
    %1945 = vmatpush2.msra.mxu0 0.0
    %1946 = vmatprep.subr.mxu0 0.0
    %1947 = vmatpush2.msra.mxu0 0.0
    %1948 = vmatprep.subr.mxu0 0.0
    %1949 = vmatpush2.msra.mxu0 0.0
    %1950 = vmatprep.mubr.f32.mxu0 0.0
    %1951 = vmatmul.mubr.f32.gmra.mxu0 %v1881
    %v1952 = vpop.f32.mrf.mxu0
    %v1953 = vadd.f32 0.0, %v1952
    %v1954 = vpop.f32.mrf.mxu0
    %1955 = vmatprep.mubr.f32.mxu0 0.0
    %1956 = vmatmul.mubr.f32.gmra.mxu0 %v1884
    %v1957 = vpop.f32.mrf.mxu0
    %v1958 = vadd.f32 0.0, %v1957
    %v1959 = vpop.f32.mrf.mxu0
    %1960 = vdwg.mxu0
    %v1961 = vadd.f32 %v1828, %v1953
    %v1962 = vadd.f32 %v1829, %v1958
    %v1963 = vmul.f32 %v1961, 0.25
    %v1964 = vmul.f32 %v1962, 0.25
    %v1965 = vlaneseq
    %v1966 = vshrl.u32 %v1965, 7
    %v1967 = vsub.s32 0, %v1966
    %v1968 = vrot.slane %v1210, %v1967
    %v1969 = vadd.f32 %v1963, %v1968
    %v1970 = vadd.f32 %v1964, %v1968
    %v1971 = vmax.f32 %v1969, 0.0
    %v1972 = vmax.f32 %v1970, 0.0
    %v1973 = vld [vmem:[#allocation4 + $0xe8] sm:$0xff]
    %v1974 = vld [vmem:[#allocation4 + $0xf0] sm:$0xff]
    %v1975 = vld [vmem:[#allocation4 + $0xf8] sm:$0xff]
    %v1976 = vld [vmem:[#allocation4 + $0x100] sm:$0xff]
    %v1977 = vld [vmem:[#allocation4 + $0x1c8] sm:$0xf]
    %v1978 = vld [vmem:[#allocation4 + $0x1d0] sm:$0xf]
    %v1979 = vld [vmem:[#allocation4 + $0x1d8] sm:$0x1]
    %v1981 = vsel %vm176, %v1971, 0
    %v1984 = vsel %vm176, %v1972, 0
    %1986 = vmatprep.subr.mxu0 0.0
    %1987 = vmatpush1.msra.mxu0 0.0
    %1988 = vmatprep.subr.mxu0 0.0
    %1989 = vmatpush1.msra.mxu0 0.0
    %1990 = vmatprep.subr.mxu0 0.0
    %1991 = vmatpush1.msra.mxu0 0.0
    %1992 = vmatprep.subr.mxu0 0.0
    %1993 = vmatpush1.msra.mxu0 0.0
    %1994 = vmatprep.subr.mxu0 0.0
    %1995 = vmatpush1.msra.mxu0 0.0
    %1996 = vmatprep.subr.mxu0 0.0
    %1997 = vmatpush1.msra.mxu0 0.0
    %1998 = vmatprep.subr.mxu0 0.0
    %1999 = vmatpush1.msra.mxu0 0.0
    %2000 = vmatprep.subr.mxu0 0.0
    %2001 = vmatpush1.msra.mxu0 0.0
    %2002 = vmatprep.subr.mxu0 0.0
    %2003 = vmatpush1.msra.mxu0 0.0
    %2004 = vmatprep.subr.mxu0 0.0
    %2005 = vmatpush1.msra.mxu0 0.0
    %2006 = vmatprep.subr.mxu0 0.0
    %2007 = vmatpush1.msra.mxu0 0.0
    %2008 = vmatprep.subr.mxu0 0.0
    %2009 = vmatpush1.msra.mxu0 0.0
    %2010 = vmatprep.subr.mxu0 0.0
    %2011 = vmatpush1.msra.mxu0 %v1976
    %2012 = vmatprep.subr.mxu0 0.0
    %2013 = vmatpush1.msra.mxu0 %v1975
    %2014 = vmatprep.subr.mxu0 0.0
    %2015 = vmatpush1.msra.mxu0 %v1974
    %2016 = vmatprep.subr.mxu0 0.0
    %2017 = vmatpush1.msra.mxu0 %v1973
    %2018 = vmatprep.subr.mxu0 0.0
    %2019 = vmatpush2.msra.mxu0 0.0
    %2020 = vmatprep.subr.mxu0 0.0
    %2021 = vmatpush2.msra.mxu0 0.0
    %2022 = vmatprep.subr.mxu0 0.0
    %2023 = vmatpush2.msra.mxu0 0.0
    %2024 = vmatprep.subr.mxu0 0.0
    %2025 = vmatpush2.msra.mxu0 0.0
    %2026 = vmatprep.subr.mxu0 0.0
    %2027 = vmatpush2.msra.mxu0 0.0
    %2028 = vmatprep.subr.mxu0 0.0
    %2029 = vmatpush2.msra.mxu0 0.0
    %2030 = vmatprep.subr.mxu0 0.0
    %2031 = vmatpush2.msra.mxu0 0.0
    %2032 = vmatprep.subr.mxu0 0.0
    %2033 = vmatpush2.msra.mxu0 0.0
    %2034 = vmatprep.subr.mxu0 0.0
    %2035 = vmatpush2.msra.mxu0 0.0
    %2036 = vmatprep.subr.mxu0 0.0
    %2037 = vmatpush2.msra.mxu0 0.0
    %2038 = vmatprep.subr.mxu0 0.0
    %2039 = vmatpush2.msra.mxu0 0.0
    %2040 = vmatprep.subr.mxu0 0.0
    %2041 = vmatpush2.msra.mxu0 0.0
    %2042 = vmatprep.subr.mxu0 0.0
    %2043 = vmatpush2.msra.mxu0 0.0
    %2044 = vmatprep.subr.mxu0 0.0
    %2045 = vmatpush2.msra.mxu0 0.0
    %2046 = vmatprep.subr.mxu0 0.0
    %2047 = vmatpush2.msra.mxu0 0.0
    %2048 = vmatprep.subr.mxu0 0.0
    %2049 = vmatpush2.msra.mxu0 0.0
    %2050 = vmatprep.mubr.f32.mxu0 0.0
    %2051 = vmatmul.mubr.f32.gmra.mxu0 %v1981
    %v2052 = vpop.f32.mrf.mxu0
    %v2053 = vadd.f32 0.0, %v2052
    %v2054 = vpop.f32.mrf.mxu0
    %2055 = vmatprep.mubr.f32.mxu0 0.0
    %2056 = vmatmul.mubr.f32.gmra.mxu0 %v1984
    %v2057 = vpop.f32.mrf.mxu0
    %v2058 = vadd.f32 0.0, %v2057
    %v2059 = vpop.f32.mrf.mxu0
    %2060 = vdwg.mxu0
    %2061 = vmatprep.subr.mxu0 0.0
    %2062 = vmatpush1.xpose.msra.mxu0 0.0
    %2063 = vmatprep.subr.mxu0 0.0
    %2064 = vmatpush1.xpose.msra.mxu0 0.0
    %2065 = vmatprep.subr.mxu0 0.0
    %2066 = vmatpush1.xpose.msra.mxu0 0.0
    %2067 = vmatprep.subr.mxu0 0.0
    %2068 = vmatpush1.xpose.msra.mxu0 0.0
    %2069 = vmatprep.subr.mxu0 0.0
    %2070 = vmatpush1.xpose.msra.mxu0 0.0
    %2071 = vmatprep.subr.mxu0 0.0
    %2072 = vmatpush1.xpose.msra.mxu0 0.0
    %2073 = vmatprep.subr.mxu0 0.0
    %2074 = vmatpush1.xpose.msra.mxu0 0.0
    %2075 = vmatprep.subr.mxu0 0.0
    %2076 = vmatpush1.xpose.msra.mxu0 0.0
    %2077 = vmatprep.subr.mxu0 0.0
    %2078 = vmatpush1.xpose.msra.mxu0 0.0
    %2079 = vmatprep.subr.mxu0 0.0
    %2080 = vmatpush1.xpose.msra.mxu0 0.0
    %2081 = vmatprep.subr.mxu0 0.0
    %2082 = vmatpush1.xpose.msra.mxu0 0.0
    %2083 = vmatprep.subr.mxu0 0.0
    %2084 = vmatpush1.xpose.msra.mxu0 0.0
    %2085 = vmatprep.subr.mxu0 0.0
    %2086 = vmatpush1.xpose.msra.mxu0 0.0
    %2087 = vmatprep.subr.mxu0 0.0
    %2088 = vmatpush1.xpose.msra.mxu0 0.0
    %2089 = vmatprep.subr.mxu0 0.0
    %2090 = vmatpush1.xpose.msra.mxu0 0.0
    %2091 = vmatprep.subr.mxu0 0.0
    %2092 = vmatpush1.xpose.msra.mxu0 %v1978
    %2093 = vmatprep.subr.mxu0 0.0
    %2094 = vmatpush2.xpose.msra.mxu0 0.0
    %2095 = vmatprep.subr.mxu0 0.0
    %2096 = vmatpush2.xpose.msra.mxu0 0.0
    %2097 = vmatprep.subr.mxu0 0.0
    %2098 = vmatpush2.xpose.msra.mxu0 0.0
    %2099 = vmatprep.subr.mxu0 0.0
    %2100 = vmatpush2.xpose.msra.mxu0 0.0
    %2101 = vmatprep.subr.mxu0 0.0
    %2102 = vmatpush2.xpose.msra.mxu0 0.0
    %2103 = vmatprep.subr.mxu0 0.0
    %2104 = vmatpush2.xpose.msra.mxu0 0.0
    %2105 = vmatprep.subr.mxu0 0.0
    %2106 = vmatpush2.xpose.msra.mxu0 0.0
    %2107 = vmatprep.subr.mxu0 0.0
    %2108 = vmatpush2.xpose.msra.mxu0 0.0
    %2109 = vmatprep.subr.mxu0 0.0
    %2110 = vmatpush2.xpose.msra.mxu0 0.0
    %2111 = vmatprep.subr.mxu0 0.0
    %2112 = vmatpush2.xpose.msra.mxu0 0.0
    %2113 = vmatprep.subr.mxu0 0.0
    %2114 = vmatpush2.xpose.msra.mxu0 0.0
    %2115 = vmatprep.subr.mxu0 0.0
    %2116 = vmatpush2.xpose.msra.mxu0 0.0
    %2117 = vmatprep.subr.mxu0 0.0
    %2118 = vmatpush2.xpose.msra.mxu0 0.0
    %2119 = vmatprep.subr.mxu0 0.0
    %2120 = vmatpush2.xpose.msra.mxu0 0.0
    %2121 = vmatprep.subr.mxu0 0.0
    %2122 = vmatpush2.xpose.msra.mxu0 0.0
    %2123 = vmatprep.subr.mxu0 0.0
    %2124 = vmatpush2.xpose.msra.mxu0 0.0
    %2125 = vmatprep.mubr.f32.mxu0 0.0
    %2126 = vmatmul.mubr.f32.gmra.mxu0 %v2053
    %v2127 = vpop.f32.mrf.mxu0
    %v2128 = vadd.f32 0.0, %v2127
    %v2129 = vpop.f32.mrf.mxu0
    %2130 = vmatprep.mubr.f32.mxu0 0.0
    %2131 = vmatmul.mubr.f32.gmra.mxu0 %v2058
    %v2132 = vpop.f32.mrf.mxu0
    %v2133 = vadd.f32 0.0, %v2132
    %v2134 = vpop.f32.mrf.mxu0
    %2135 = vdwg.mxu0
    %2136 = vmatprep.subr.mxu0 0.0
    %2137 = vmatpush1.xpose.msra.mxu0 0.0
    %2138 = vmatprep.subr.mxu0 0.0
    %2139 = vmatpush1.xpose.msra.mxu0 0.0
    %2140 = vmatprep.subr.mxu0 0.0
    %2141 = vmatpush1.xpose.msra.mxu0 0.0
    %2142 = vmatprep.subr.mxu0 0.0
    %2143 = vmatpush1.xpose.msra.mxu0 0.0
    %2144 = vmatprep.subr.mxu0 0.0
    %2145 = vmatpush1.xpose.msra.mxu0 0.0
    %2146 = vmatprep.subr.mxu0 0.0
    %2147 = vmatpush1.xpose.msra.mxu0 0.0
    %2148 = vmatprep.subr.mxu0 0.0
    %2149 = vmatpush1.xpose.msra.mxu0 0.0
    %2150 = vmatprep.subr.mxu0 0.0
    %2151 = vmatpush1.xpose.msra.mxu0 0.0
    %2152 = vmatprep.subr.mxu0 0.0
    %2153 = vmatpush1.xpose.msra.mxu0 0.0
    %2154 = vmatprep.subr.mxu0 0.0
    %2155 = vmatpush1.xpose.msra.mxu0 0.0
    %2156 = vmatprep.subr.mxu0 0.0
    %2157 = vmatpush1.xpose.msra.mxu0 0.0
    %2158 = vmatprep.subr.mxu0 0.0
    %2159 = vmatpush1.xpose.msra.mxu0 0.0
    %2160 = vmatprep.subr.mxu0 0.0
    %2161 = vmatpush1.xpose.msra.mxu0 0.0
    %2162 = vmatprep.subr.mxu0 0.0
    %2163 = vmatpush1.xpose.msra.mxu0 0.0
    %2164 = vmatprep.subr.mxu0 0.0
    %2165 = vmatpush1.xpose.msra.mxu0 %v2058
    %2166 = vmatprep.subr.mxu0 0.0
    %2167 = vmatpush1.xpose.msra.mxu0 %v2053
    %2168 = vmatprep.subr.mxu0 0.0
    %2169 = vmatpush2.xpose.msra.mxu0 0.0
    %2170 = vmatprep.subr.mxu0 0.0
    %2171 = vmatpush2.xpose.msra.mxu0 0.0
    %2172 = vmatprep.subr.mxu0 0.0
    %2173 = vmatpush2.xpose.msra.mxu0 0.0
    %2174 = vmatprep.subr.mxu0 0.0
    %2175 = vmatpush2.xpose.msra.mxu0 0.0
    %2176 = vmatprep.subr.mxu0 0.0
    %2177 = vmatpush2.xpose.msra.mxu0 0.0
    %2178 = vmatprep.subr.mxu0 0.0
    %2179 = vmatpush2.xpose.msra.mxu0 0.0
    %2180 = vmatprep.subr.mxu0 0.0
    %2181 = vmatpush2.xpose.msra.mxu0 0.0
    %2182 = vmatprep.subr.mxu0 0.0
    %2183 = vmatpush2.xpose.msra.mxu0 0.0
    %2184 = vmatprep.subr.mxu0 0.0
    %2185 = vmatpush2.xpose.msra.mxu0 0.0
    %2186 = vmatprep.subr.mxu0 0.0
    %2187 = vmatpush2.xpose.msra.mxu0 0.0
    %2188 = vmatprep.subr.mxu0 0.0
    %2189 = vmatpush2.xpose.msra.mxu0 0.0
    %2190 = vmatprep.subr.mxu0 0.0
    %2191 = vmatpush2.xpose.msra.mxu0 0.0
    %2192 = vmatprep.subr.mxu0 0.0
    %2193 = vmatpush2.xpose.msra.mxu0 0.0
    %2194 = vmatprep.subr.mxu0 0.0
    %2195 = vmatpush2.xpose.msra.mxu0 0.0
    %2196 = vmatprep.subr.mxu0 0.0
    %2197 = vmatpush2.xpose.msra.mxu0 0.0
    %2198 = vmatprep.subr.mxu0 0.0
    %2199 = vmatpush2.xpose.msra.mxu0 0.0
    %2200 = vmatprep.mubr.f32.mxu0 0.0
    %2201 = vmatmul.mubr.f32.gmra.mxu0 %v1977
    %v2202 = vpop.f32.mrf.mxu0
    %v2203 = vadd.f32 0.0, %v2202
    %v2204 = vpop.f32.mrf.mxu0
    %2205 = vdwg.mxu0
    %2207 = vset.pattern.permute.xlu0 0
    %2208 = vperm.xlu0 %2207, %v2128
    %v2209 = vpop.permute.xlu0 %2208
    %2212 = vset.pattern.permute.xlu0 0
    %2213 = vperm.xlu0 %2212, %v2133
    %v2214 = vpop.permute.xlu0 %2213
    %v2216 = vlaneseq
    %v2217 = vshrl.u32 %v2216, 7
    %v2218 = vsub.s32 0, %v2217
    %v2219 = vrot.slane %v2203, %v2218
    %v2220 = vadd.f32 %v2209, %v2219
    %v2221 = vadd.f32 %v2214, %v2219
    %vm2222 = vcmp.ge.f32.partialorder %v2220, 0.0
    %vm2223 = vcmp.ge.f32.partialorder %v2221, 0.0
    %v2224 = vmul.f32 %v2220, 0.2
    %v2225 = vmul.f32 %v2221, 0.2
    %v2226 = vsel %vm2222, %v2220, %v2224
    %v2227 = vsel %vm2223, %v2221, %v2225
    %v2228 = vadd.f32 %v2226, %v49
    %v2229 = vadd.f32 %v2227, %v50
    %v2230 = vsel %vm278, %v2228, -inf
    %2231 = vmax.xlane.f32.xlu0 %v2230
    %v2232 = vpop.xlane.xlu0 %2231
    %v2233 = vsel %vm278, %v2229, -inf
    %2234 = vmax.xlane.f32.xlu0 %v2233
    %v2235 = vpop.xlane.xlu0 %2234
    %v2236 = vsub.f32 %v2228, %v2232
    %v2237 = vsub.f32 %v2229, %v2235
    %v2238 = vmul.f32 %v2236, 1.442695
    %v2239 = vpow.pop %v2238
    %v2240 = vmul.f32 %v2237, 1.442695
    %v2241 = vpow.pop %v2240
    %v2242 = vsel %vm278, %v2239, 0.0
    %2243 = vadd.xlane.f32.xlu0 %v2242
    %v2244 = vpop.xlane.xlu0 %2243
    %v2245 = vsel %vm278, %v2241, 0.0
    %2246 = vadd.xlane.f32.xlu0 %v2245
    %v2247 = vpop.xlane.xlu0 %2246
    %v2248 = vrcp.pop %v2244
    %v2249 = vrcp.pop %v2247
    %v2250 = vmul.f32 %v2239, %v2248
    %v2251 = vmul.f32 %v2241, %v2249
    %2252 = vset.pattern.permute.xlu0 1
    %2253 = vperm.xlu0 %2252, %v2128
    %v2254 = vpop.permute.xlu0 %2253
    %2256 = vset.pattern.permute.xlu0 1
    %2257 = vperm.xlu0 %2256, %v2133
    %v2258 = vpop.permute.xlu0 %2257
    %v2260 = vlaneseq
    %v2261 = vshrl.u32 %v2260, 7
    %v2262 = vsub.s32 1, %v2261
    %v2263 = vrot.slane %v2203, %v2262
    %v2264 = vadd.f32 %v2254, %v2263
    %v2265 = vadd.f32 %v2258, %v2263
    %vm2266 = vcmp.ge.f32.partialorder %v2264, 0.0
    %vm2267 = vcmp.ge.f32.partialorder %v2265, 0.0
    %v2268 = vmul.f32 %v2264, 0.2
    %v2269 = vmul.f32 %v2265, 0.2
    %v2270 = vsel %vm2266, %v2264, %v2268
    %v2271 = vsel %vm2267, %v2265, %v2269
    %v2272 = vadd.f32 %v2270, %v49
    %v2273 = vadd.f32 %v2271, %v50
    %v2274 = vsel %vm278, %v2272, -inf
    %2275 = vmax.xlane.f32.xlu0 %v2274
    %v2276 = vpop.xlane.xlu0 %2275
    %v2277 = vsel %vm278, %v2273, -inf
    %2278 = vmax.xlane.f32.xlu0 %v2277
    %v2279 = vpop.xlane.xlu0 %2278
    %v2280 = vsub.f32 %v2272, %v2276
    %v2281 = vsub.f32 %v2273, %v2279
    %v2282 = vmul.f32 %v2280, 1.442695
    %v2283 = vpow.pop %v2282
    %v2284 = vmul.f32 %v2281, 1.442695
    %v2285 = vpow.pop %v2284
    %v2286 = vsel %vm278, %v2283, 0.0
    %2287 = vadd.xlane.f32.xlu0 %v2286
    %v2288 = vpop.xlane.xlu0 %2287
    %v2289 = vsel %vm278, %v2285, 0.0
    %2290 = vadd.xlane.f32.xlu0 %v2289
    %v2291 = vpop.xlane.xlu0 %2290
    %v2292 = vrcp.pop %v2288
    %v2293 = vrcp.pop %v2291
    %v2294 = vmul.f32 %v2283, %v2292
    %v2295 = vmul.f32 %v2285, %v2293
    %2298 = vrot.lane.b32.xlu0 %v2053, 96
    %v2299 = vpop.permute.xlu0 %2298
    %2300 = vrot.lane.b32.xlu0 %v2058, 96
    %v2301 = vpop.permute.xlu0 %2300
    %v2305 = vsel %vm278, %v2294, 0
    %v2308 = vsel %vm278, %v2295, 0
    %2310 = vmatprep.subr.mxu0 0.0
    %2311 = vmatpush1.msra.mxu0 0.0
    %2312 = vmatprep.subr.mxu0 0.0
    %2313 = vmatpush1.msra.mxu0 0.0
    %2314 = vmatprep.subr.mxu0 0.0
    %2315 = vmatpush1.msra.mxu0 0.0
    %2316 = vmatprep.subr.mxu0 0.0
    %2317 = vmatpush1.msra.mxu0 0.0
    %2318 = vmatprep.subr.mxu0 0.0
    %2319 = vmatpush1.msra.mxu0 0.0
    %2320 = vmatprep.subr.mxu0 0.0
    %2321 = vmatpush1.msra.mxu0 0.0
    %2322 = vmatprep.subr.mxu0 0.0
    %2323 = vmatpush1.msra.mxu0 0.0
    %2324 = vmatprep.subr.mxu0 0.0
    %2325 = vmatpush1.msra.mxu0 0.0
    %2326 = vmatprep.subr.mxu0 0.0
    %2327 = vmatpush1.msra.mxu0 0.0
    %2328 = vmatprep.subr.mxu0 0.0
    %2329 = vmatpush1.msra.mxu0 0.0
    %2330 = vmatprep.subr.mxu0 0.0
    %2331 = vmatpush1.msra.mxu0 0.0
    %2332 = vmatprep.subr.mxu0 0.0
    %2333 = vmatpush1.msra.mxu0 0.0
    %2334 = vmatprep.subr.mxu0 0.0
    %2335 = vmatpush1.msra.mxu0 0.0
    %2336 = vmatprep.subr.mxu0 0.0
    %2337 = vmatpush1.msra.mxu0 0.0
    %2338 = vmatprep.subr.mxu0 0.0
    %2339 = vmatpush1.msra.mxu0 %v2301
    %2340 = vmatprep.subr.mxu0 0.0
    %2341 = vmatpush1.msra.mxu0 %v2299
    %2342 = vmatprep.subr.mxu0 0.0
    %2343 = vmatpush2.msra.mxu0 0.0
    %2344 = vmatprep.subr.mxu0 0.0
    %2345 = vmatpush2.msra.mxu0 0.0
    %2346 = vmatprep.subr.mxu0 0.0
    %2347 = vmatpush2.msra.mxu0 0.0
    %2348 = vmatprep.subr.mxu0 0.0
    %2349 = vmatpush2.msra.mxu0 0.0
    %2350 = vmatprep.subr.mxu0 0.0
    %2351 = vmatpush2.msra.mxu0 0.0
    %2352 = vmatprep.subr.mxu0 0.0
    %2353 = vmatpush2.msra.mxu0 0.0
    %2354 = vmatprep.subr.mxu0 0.0
    %2355 = vmatpush2.msra.mxu0 0.0
    %2356 = vmatprep.subr.mxu0 0.0
    %2357 = vmatpush2.msra.mxu0 0.0
    %2358 = vmatprep.subr.mxu0 0.0
    %2359 = vmatpush2.msra.mxu0 0.0
    %2360 = vmatprep.subr.mxu0 0.0
    %2361 = vmatpush2.msra.mxu0 0.0
    %2362 = vmatprep.subr.mxu0 0.0
    %2363 = vmatpush2.msra.mxu0 0.0
    %2364 = vmatprep.subr.mxu0 0.0
    %2365 = vmatpush2.msra.mxu0 0.0
    %2366 = vmatprep.subr.mxu0 0.0
    %2367 = vmatpush2.msra.mxu0 0.0
    %2368 = vmatprep.subr.mxu0 0.0
    %2369 = vmatpush2.msra.mxu0 0.0
    %2370 = vmatprep.subr.mxu0 0.0
    %2371 = vmatpush2.msra.mxu0 0.0
    %2372 = vmatprep.subr.mxu0 0.0
    %2373 = vmatpush2.msra.mxu0 0.0
    %2374 = vmatprep.mubr.f32.mxu0 0.0
    %2375 = vmatmul.mubr.f32.gmra.mxu0 %v2305
    %v2376 = vpop.f32.mrf.mxu0
    %v2377 = vadd.f32 0.0, %v2376
    %v2378 = vpop.f32.mrf.mxu0
    %2379 = vmatprep.mubr.f32.mxu0 0.0
    %2380 = vmatmul.mubr.f32.gmra.mxu0 %v2308
    %v2381 = vpop.f32.mrf.mxu0
    %v2382 = vadd.f32 0.0, %v2381
    %v2383 = vpop.f32.mrf.mxu0
    %2384 = vdwg.mxu0
    %v2386 = vsel %vm278, %v2250, 0
    %v2389 = vsel %vm278, %v2251, 0
    %2391 = vmatprep.subr.mxu0 0.0
    %2392 = vmatpush1.msra.mxu0 0.0
    %2393 = vmatprep.subr.mxu0 0.0
    %2394 = vmatpush1.msra.mxu0 0.0
    %2395 = vmatprep.subr.mxu0 0.0
    %2396 = vmatpush1.msra.mxu0 0.0
    %2397 = vmatprep.subr.mxu0 0.0
    %2398 = vmatpush1.msra.mxu0 0.0
    %2399 = vmatprep.subr.mxu0 0.0
    %2400 = vmatpush1.msra.mxu0 0.0
    %2401 = vmatprep.subr.mxu0 0.0
    %2402 = vmatpush1.msra.mxu0 0.0
    %2403 = vmatprep.subr.mxu0 0.0
    %2404 = vmatpush1.msra.mxu0 0.0
    %2405 = vmatprep.subr.mxu0 0.0
    %2406 = vmatpush1.msra.mxu0 0.0
    %2407 = vmatprep.subr.mxu0 0.0
    %2408 = vmatpush1.msra.mxu0 0.0
    %2409 = vmatprep.subr.mxu0 0.0
    %2410 = vmatpush1.msra.mxu0 0.0
    %2411 = vmatprep.subr.mxu0 0.0
    %2412 = vmatpush1.msra.mxu0 0.0
    %2413 = vmatprep.subr.mxu0 0.0
    %2414 = vmatpush1.msra.mxu0 0.0
    %2415 = vmatprep.subr.mxu0 0.0
    %2416 = vmatpush1.msra.mxu0 0.0
    %2417 = vmatprep.subr.mxu0 0.0
    %2418 = vmatpush1.msra.mxu0 0.0
    %2419 = vmatprep.subr.mxu0 0.0
    %2420 = vmatpush1.msra.mxu0 %v2058
    %2421 = vmatprep.subr.mxu0 0.0
    %2422 = vmatpush1.msra.mxu0 %v2053
    %2423 = vmatprep.subr.mxu0 0.0
    %2424 = vmatpush2.msra.mxu0 0.0
    %2425 = vmatprep.subr.mxu0 0.0
    %2426 = vmatpush2.msra.mxu0 0.0
    %2427 = vmatprep.subr.mxu0 0.0
    %2428 = vmatpush2.msra.mxu0 0.0
    %2429 = vmatprep.subr.mxu0 0.0
    %2430 = vmatpush2.msra.mxu0 0.0
    %2431 = vmatprep.subr.mxu0 0.0
    %2432 = vmatpush2.msra.mxu0 0.0
    %2433 = vmatprep.subr.mxu0 0.0
    %2434 = vmatpush2.msra.mxu0 0.0
    %2435 = vmatprep.subr.mxu0 0.0
    %2436 = vmatpush2.msra.mxu0 0.0
    %2437 = vmatprep.subr.mxu0 0.0
    %2438 = vmatpush2.msra.mxu0 0.0
    %2439 = vmatprep.subr.mxu0 0.0
    %2440 = vmatpush2.msra.mxu0 0.0
    %2441 = vmatprep.subr.mxu0 0.0
    %2442 = vmatpush2.msra.mxu0 0.0
    %2443 = vmatprep.subr.mxu0 0.0
    %2444 = vmatpush2.msra.mxu0 0.0
    %2445 = vmatprep.subr.mxu0 0.0
    %2446 = vmatpush2.msra.mxu0 0.0
    %2447 = vmatprep.subr.mxu0 0.0
    %2448 = vmatpush2.msra.mxu0 0.0
    %2449 = vmatprep.subr.mxu0 0.0
    %2450 = vmatpush2.msra.mxu0 0.0
    %2451 = vmatprep.subr.mxu0 0.0
    %2452 = vmatpush2.msra.mxu0 0.0
    %2453 = vmatprep.subr.mxu0 0.0
    %2454 = vmatpush2.msra.mxu0 0.0
    %2455 = vmatprep.mubr.f32.mxu0 0.0
    %2456 = vmatmul.mubr.f32.gmra.mxu0 %v2386
    %v2457 = vpop.f32.mrf.mxu0
    %v2458 = vadd.f32 %v2377, %v2457
    %v2459 = vpop.f32.mrf.mxu0
    %2460 = vmatprep.mubr.f32.mxu0 0.0
    %2461 = vmatmul.mubr.f32.gmra.mxu0 %v2389
    %v2462 = vpop.f32.mrf.mxu0
    %v2463 = vadd.f32 %v2382, %v2462
    %v2464 = vpop.f32.mrf.mxu0
    %2465 = vdwg.mxu0
    %2466 = vset.pattern.permute.xlu0 2
    %2467 = vperm.xlu0 %2466, %v2128
    %v2468 = vpop.permute.xlu0 %2467
    %2470 = vset.pattern.permute.xlu0 2
    %2471 = vperm.xlu0 %2470, %v2133
    %v2472 = vpop.permute.xlu0 %2471
    %v2474 = vlaneseq
    %v2475 = vshrl.u32 %v2474, 7
    %v2476 = vsub.s32 2, %v2475
    %v2477 = vrot.slane %v2203, %v2476
    %v2478 = vadd.f32 %v2468, %v2477
    %v2479 = vadd.f32 %v2472, %v2477
    %vm2480 = vcmp.ge.f32.partialorder %v2478, 0.0
    %vm2481 = vcmp.ge.f32.partialorder %v2479, 0.0
    %v2482 = vmul.f32 %v2478, 0.2
    %v2483 = vmul.f32 %v2479, 0.2
    %v2484 = vsel %vm2480, %v2478, %v2482
    %v2485 = vsel %vm2481, %v2479, %v2483
    %v2486 = vadd.f32 %v2484, %v49
    %v2487 = vadd.f32 %v2485, %v50
    %v2488 = vsel %vm278, %v2486, -inf
    %2489 = vmax.xlane.f32.xlu0 %v2488
    %v2490 = vpop.xlane.xlu0 %2489
    %v2491 = vsel %vm278, %v2487, -inf
    %2492 = vmax.xlane.f32.xlu0 %v2491
    %v2493 = vpop.xlane.xlu0 %2492
    %v2494 = vsub.f32 %v2486, %v2490
    %v2495 = vsub.f32 %v2487, %v2493
    %v2496 = vmul.f32 %v2494, 1.442695
    %v2497 = vpow.pop %v2496
    %v2498 = vmul.f32 %v2495, 1.442695
    %v2499 = vpow.pop %v2498
    %v2500 = vsel %vm278, %v2497, 0.0
    %2501 = vadd.xlane.f32.xlu0 %v2500
    %v2502 = vpop.xlane.xlu0 %2501
    %v2503 = vsel %vm278, %v2499, 0.0
    %2504 = vadd.xlane.f32.xlu0 %v2503
    %v2505 = vpop.xlane.xlu0 %2504
    %v2506 = vrcp.pop %v2502
    %v2507 = vrcp.pop %v2505
    %v2508 = vmul.f32 %v2497, %v2506
    %v2509 = vmul.f32 %v2499, %v2507
    %2510 = vrot.lane.b32.xlu0 %v2053, 64
    %v2511 = vpop.permute.xlu0 %2510
    %2512 = vrot.lane.b32.xlu0 %v2058, 64
    %v2513 = vpop.permute.xlu0 %2512
    %v2517 = vsel %vm278, %v2508, 0
    %v2520 = vsel %vm278, %v2509, 0
    %2522 = vmatprep.subr.mxu0 0.0
    %2523 = vmatpush1.msra.mxu0 0.0
    %2524 = vmatprep.subr.mxu0 0.0
    %2525 = vmatpush1.msra.mxu0 0.0
    %2526 = vmatprep.subr.mxu0 0.0
    %2527 = vmatpush1.msra.mxu0 0.0
    %2528 = vmatprep.subr.mxu0 0.0
    %2529 = vmatpush1.msra.mxu0 0.0
    %2530 = vmatprep.subr.mxu0 0.0
    %2531 = vmatpush1.msra.mxu0 0.0
    %2532 = vmatprep.subr.mxu0 0.0
    %2533 = vmatpush1.msra.mxu0 0.0
    %2534 = vmatprep.subr.mxu0 0.0
    %2535 = vmatpush1.msra.mxu0 0.0
    %2536 = vmatprep.subr.mxu0 0.0
    %2537 = vmatpush1.msra.mxu0 0.0
    %2538 = vmatprep.subr.mxu0 0.0
    %2539 = vmatpush1.msra.mxu0 0.0
    %2540 = vmatprep.subr.mxu0 0.0
    %2541 = vmatpush1.msra.mxu0 0.0
    %2542 = vmatprep.subr.mxu0 0.0
    %2543 = vmatpush1.msra.mxu0 0.0
    %2544 = vmatprep.subr.mxu0 0.0
    %2545 = vmatpush1.msra.mxu0 0.0
    %2546 = vmatprep.subr.mxu0 0.0
    %2547 = vmatpush1.msra.mxu0 0.0
    %2548 = vmatprep.subr.mxu0 0.0
    %2549 = vmatpush1.msra.mxu0 0.0
    %2550 = vmatprep.subr.mxu0 0.0
    %2551 = vmatpush1.msra.mxu0 %v2513
    %2552 = vmatprep.subr.mxu0 0.0
    %2553 = vmatpush1.msra.mxu0 %v2511
    %2554 = vmatprep.subr.mxu0 0.0
    %2555 = vmatpush2.msra.mxu0 0.0
    %2556 = vmatprep.subr.mxu0 0.0
    %2557 = vmatpush2.msra.mxu0 0.0
    %2558 = vmatprep.subr.mxu0 0.0
    %2559 = vmatpush2.msra.mxu0 0.0
    %2560 = vmatprep.subr.mxu0 0.0
    %2561 = vmatpush2.msra.mxu0 0.0
    %2562 = vmatprep.subr.mxu0 0.0
    %2563 = vmatpush2.msra.mxu0 0.0
    %2564 = vmatprep.subr.mxu0 0.0
    %2565 = vmatpush2.msra.mxu0 0.0
    %2566 = vmatprep.subr.mxu0 0.0
    %2567 = vmatpush2.msra.mxu0 0.0
    %2568 = vmatprep.subr.mxu0 0.0
    %2569 = vmatpush2.msra.mxu0 0.0
    %2570 = vmatprep.subr.mxu0 0.0
    %2571 = vmatpush2.msra.mxu0 0.0
    %2572 = vmatprep.subr.mxu0 0.0
    %2573 = vmatpush2.msra.mxu0 0.0
    %2574 = vmatprep.subr.mxu0 0.0
    %2575 = vmatpush2.msra.mxu0 0.0
    %2576 = vmatprep.subr.mxu0 0.0
    %2577 = vmatpush2.msra.mxu0 0.0
    %2578 = vmatprep.subr.mxu0 0.0
    %2579 = vmatpush2.msra.mxu0 0.0
    %2580 = vmatprep.subr.mxu0 0.0
    %2581 = vmatpush2.msra.mxu0 0.0
    %2582 = vmatprep.subr.mxu0 0.0
    %2583 = vmatpush2.msra.mxu0 0.0
    %2584 = vmatprep.subr.mxu0 0.0
    %2585 = vmatpush2.msra.mxu0 0.0
    %2586 = vmatprep.mubr.f32.mxu0 0.0
    %2587 = vmatmul.mubr.f32.gmra.mxu0 %v2517
    %v2588 = vpop.f32.mrf.mxu0
    %v2589 = vadd.f32 0.0, %v2588
    %v2590 = vpop.f32.mrf.mxu0
    %2591 = vmatprep.mubr.f32.mxu0 0.0
    %2592 = vmatmul.mubr.f32.gmra.mxu0 %v2520
    %v2593 = vpop.f32.mrf.mxu0
    %v2594 = vadd.f32 0.0, %v2593
    %v2595 = vpop.f32.mrf.mxu0
    %2596 = vdwg.mxu0
    %v2597 = vadd.f32 %v2458, %v2589
    %v2598 = vadd.f32 %v2463, %v2594
    %2599 = vset.pattern.permute.xlu0 3
    %2600 = vperm.xlu0 %2599, %v2128
    %v2601 = vpop.permute.xlu0 %2600
    %2603 = vset.pattern.permute.xlu0 3
    %2604 = vperm.xlu0 %2603, %v2133
    %v2605 = vpop.permute.xlu0 %2604
    %v2607 = vlaneseq
    %v2608 = vshrl.u32 %v2607, 7
    %v2609 = vsub.s32 3, %v2608
    %v2610 = vrot.slane %v2203, %v2609
    %v2611 = vadd.f32 %v2601, %v2610
    %v2612 = vadd.f32 %v2605, %v2610
    %vm2613 = vcmp.ge.f32.partialorder %v2611, 0.0
    %vm2614 = vcmp.ge.f32.partialorder %v2612, 0.0
    %v2615 = vmul.f32 %v2611, 0.2
    %v2616 = vmul.f32 %v2612, 0.2
    %v2617 = vsel %vm2613, %v2611, %v2615
    %v2618 = vsel %vm2614, %v2612, %v2616
    %v2619 = vadd.f32 %v2617, %v49
    %v2620 = vadd.f32 %v2618, %v50
    %v2621 = vsel %vm278, %v2619, -inf
    %2622 = vmax.xlane.f32.xlu0 %v2621
    %v2623 = vpop.xlane.xlu0 %2622
    %v2624 = vsel %vm278, %v2620, -inf
    %2625 = vmax.xlane.f32.xlu0 %v2624
    %v2626 = vpop.xlane.xlu0 %2625
    %v2627 = vsub.f32 %v2619, %v2623
    %v2628 = vsub.f32 %v2620, %v2626
    %v2629 = vmul.f32 %v2627, 1.442695
    %v2630 = vpow.pop %v2629
    %v2631 = vmul.f32 %v2628, 1.442695
    %v2632 = vpow.pop %v2631
    %v2633 = vsel %vm278, %v2630, 0.0
    %2634 = vadd.xlane.f32.xlu0 %v2633
    %v2635 = vpop.xlane.xlu0 %2634
    %v2636 = vsel %vm278, %v2632, 0.0
    %2637 = vadd.xlane.f32.xlu0 %v2636
    %v2638 = vpop.xlane.xlu0 %2637
    %v2639 = vrcp.pop %v2635
    %v2640 = vrcp.pop %v2638
    %v2641 = vmul.f32 %v2630, %v2639
    %v2642 = vmul.f32 %v2632, %v2640
    %2643 = vrot.lane.b32.xlu0 %v2053, 32
    %v2644 = vpop.permute.xlu0 %2643
    %2645 = vrot.lane.b32.xlu0 %v2058, 32
    %v2646 = vpop.permute.xlu0 %2645
    %v2650 = vsel %vm278, %v2641, 0
    %v2653 = vsel %vm278, %v2642, 0
    %2655 = vmatprep.subr.mxu0 0.0
    %2656 = vmatpush1.msra.mxu0 0.0
    %2657 = vmatprep.subr.mxu0 0.0
    %2658 = vmatpush1.msra.mxu0 0.0
    %2659 = vmatprep.subr.mxu0 0.0
    %2660 = vmatpush1.msra.mxu0 0.0
    %2661 = vmatprep.subr.mxu0 0.0
    %2662 = vmatpush1.msra.mxu0 0.0
    %2663 = vmatprep.subr.mxu0 0.0
    %2664 = vmatpush1.msra.mxu0 0.0
    %2665 = vmatprep.subr.mxu0 0.0
    %2666 = vmatpush1.msra.mxu0 0.0
    %2667 = vmatprep.subr.mxu0 0.0
    %2668 = vmatpush1.msra.mxu0 0.0
    %2669 = vmatprep.subr.mxu0 0.0
    %2670 = vmatpush1.msra.mxu0 0.0
    %2671 = vmatprep.subr.mxu0 0.0
    %2672 = vmatpush1.msra.mxu0 0.0
    %2673 = vmatprep.subr.mxu0 0.0
    %2674 = vmatpush1.msra.mxu0 0.0
    %2675 = vmatprep.subr.mxu0 0.0
    %2676 = vmatpush1.msra.mxu0 0.0
    %2677 = vmatprep.subr.mxu0 0.0
    %2678 = vmatpush1.msra.mxu0 0.0
    %2679 = vmatprep.subr.mxu0 0.0
    %2680 = vmatpush1.msra.mxu0 0.0
    %2681 = vmatprep.subr.mxu0 0.0
    %2682 = vmatpush1.msra.mxu0 0.0
    %2683 = vmatprep.subr.mxu0 0.0
    %2684 = vmatpush1.msra.mxu0 %v2646
    %2685 = vmatprep.subr.mxu0 0.0
    %2686 = vmatpush1.msra.mxu0 %v2644
    %2687 = vmatprep.subr.mxu0 0.0
    %2688 = vmatpush2.msra.mxu0 0.0
    %2689 = vmatprep.subr.mxu0 0.0
    %2690 = vmatpush2.msra.mxu0 0.0
    %2691 = vmatprep.subr.mxu0 0.0
    %2692 = vmatpush2.msra.mxu0 0.0
    %2693 = vmatprep.subr.mxu0 0.0
    %2694 = vmatpush2.msra.mxu0 0.0
    %2695 = vmatprep.subr.mxu0 0.0
    %2696 = vmatpush2.msra.mxu0 0.0
    %2697 = vmatprep.subr.mxu0 0.0
    %2698 = vmatpush2.msra.mxu0 0.0
    %2699 = vmatprep.subr.mxu0 0.0
    %2700 = vmatpush2.msra.mxu0 0.0
    %2701 = vmatprep.subr.mxu0 0.0
    %2702 = vmatpush2.msra.mxu0 0.0
    %2703 = vmatprep.subr.mxu0 0.0
    %2704 = vmatpush2.msra.mxu0 0.0
    %2705 = vmatprep.subr.mxu0 0.0
    %2706 = vmatpush2.msra.mxu0 0.0
    %2707 = vmatprep.subr.mxu0 0.0
    %2708 = vmatpush2.msra.mxu0 0.0
    %2709 = vmatprep.subr.mxu0 0.0
    %2710 = vmatpush2.msra.mxu0 0.0
    %2711 = vmatprep.subr.mxu0 0.0
    %2712 = vmatpush2.msra.mxu0 0.0
    %2713 = vmatprep.subr.mxu0 0.0
    %2714 = vmatpush2.msra.mxu0 0.0
    %2715 = vmatprep.subr.mxu0 0.0
    %2716 = vmatpush2.msra.mxu0 0.0
    %2717 = vmatprep.subr.mxu0 0.0
    %2718 = vmatpush2.msra.mxu0 0.0
    %2719 = vmatprep.mubr.f32.mxu0 0.0
    %2720 = vmatmul.mubr.f32.gmra.mxu0 %v2650
    %v2721 = vpop.f32.mrf.mxu0
    %v2722 = vadd.f32 0.0, %v2721
    %v2723 = vpop.f32.mrf.mxu0
    %2724 = vmatprep.mubr.f32.mxu0 0.0
    %2725 = vmatmul.mubr.f32.gmra.mxu0 %v2653
    %v2726 = vpop.f32.mrf.mxu0
    %v2727 = vadd.f32 0.0, %v2726
    %v2728 = vpop.f32.mrf.mxu0
    %2729 = vdwg.mxu0
    %v2730 = vadd.f32 %v2597, %v2722
    %v2731 = vadd.f32 %v2598, %v2727
    %v2732 = vmul.f32 %v2730, 0.25
    %v2733 = vmul.f32 %v2731, 0.25
    %v2734 = vlaneseq
    %v2735 = vshrl.u32 %v2734, 7
    %v2736 = vsub.s32 0, %v2735
    %v2737 = vrot.slane %v1979, %v2736
    %v2738 = vadd.f32 %v2732, %v2737
    %v2739 = vadd.f32 %v2733, %v2737
    %v2740 = vadd.f32 %v2738, %v1971
    %v2741 = vadd.f32 %v2739, %v1972
    %v2742 = vmax.f32 %v2740, 0.0
    %v2743 = vmax.f32 %v2741, 0.0
    %v2744 = vld [vmem:[#allocation4 + $0x108] sm:$0xff]
    %v2745 = vld [vmem:[#allocation4 + $0x110] sm:$0xff]
    %v2746 = vld [vmem:[#allocation4 + $0x118] sm:$0xff]
    %v2747 = vld [vmem:[#allocation4 + $0x120] sm:$0xff]
    %v2748 = vld [vmem:[#allocation4 + $0x1e0] sm:$0x1]
    %v2749 = vlaneseq
    %v2750 = vshrl.u32 %v2749, 7
    %v2751 = vsub.s32 0, %v2750
    %v2752 = vrot.slane %v2748, %v2751
    %v2754 = vsel %vm176, %v2742, 0
    %v2757 = vsel %vm176, %v2743, 0
    %2759 = vmatprep.subr.mxu0 0.0
    %2760 = vmatpush1.msra.mxu0 0.0
    %2761 = vmatprep.subr.mxu0 0.0
    %2762 = vmatpush1.msra.mxu0 0.0
    %2763 = vmatprep.subr.mxu0 0.0
    %2764 = vmatpush1.msra.mxu0 0.0
    %2765 = vmatprep.subr.mxu0 0.0
    %2766 = vmatpush1.msra.mxu0 0.0
    %2767 = vmatprep.subr.mxu0 0.0
    %2768 = vmatpush1.msra.mxu0 0.0
    %2769 = vmatprep.subr.mxu0 0.0
    %2770 = vmatpush1.msra.mxu0 0.0
    %2771 = vmatprep.subr.mxu0 0.0
    %2772 = vmatpush1.msra.mxu0 0.0
    %2773 = vmatprep.subr.mxu0 0.0
    %2774 = vmatpush1.msra.mxu0 0.0
    %2775 = vmatprep.subr.mxu0 0.0
    %2776 = vmatpush1.msra.mxu0 0.0
    %2777 = vmatprep.subr.mxu0 0.0
    %2778 = vmatpush1.msra.mxu0 0.0
    %2779 = vmatprep.subr.mxu0 0.0
    %2780 = vmatpush1.msra.mxu0 0.0
    %2781 = vmatprep.subr.mxu0 0.0
    %2782 = vmatpush1.msra.mxu0 0.0
    %2783 = vmatprep.subr.mxu0 0.0
    %2784 = vmatpush1.msra.mxu0 %v2747
    %2785 = vmatprep.subr.mxu0 0.0
    %2786 = vmatpush1.msra.mxu0 %v2746
    %2787 = vmatprep.subr.mxu0 0.0
    %2788 = vmatpush1.msra.mxu0 %v2745
    %2789 = vmatprep.subr.mxu0 0.0
    %2790 = vmatpush1.msra.mxu0 %v2744
    %2791 = vmatprep.subr.mxu0 0.0
    %2792 = vmatpush2.msra.mxu0 0.0
    %2793 = vmatprep.subr.mxu0 0.0
    %2794 = vmatpush2.msra.mxu0 0.0
    %2795 = vmatprep.subr.mxu0 0.0
    %2796 = vmatpush2.msra.mxu0 0.0
    %2797 = vmatprep.subr.mxu0 0.0
    %2798 = vmatpush2.msra.mxu0 0.0
    %2799 = vmatprep.subr.mxu0 0.0
    %2800 = vmatpush2.msra.mxu0 0.0
    %2801 = vmatprep.subr.mxu0 0.0
    %2802 = vmatpush2.msra.mxu0 0.0
    %2803 = vmatprep.subr.mxu0 0.0
    %2804 = vmatpush2.msra.mxu0 0.0
    %2805 = vmatprep.subr.mxu0 0.0
    %2806 = vmatpush2.msra.mxu0 0.0
    %2807 = vmatprep.subr.mxu0 0.0
    %2808 = vmatpush2.msra.mxu0 0.0
    %2809 = vmatprep.subr.mxu0 0.0
    %2810 = vmatpush2.msra.mxu0 0.0
    %2811 = vmatprep.subr.mxu0 0.0
    %2812 = vmatpush2.msra.mxu0 0.0
    %2813 = vmatprep.subr.mxu0 0.0
    %2814 = vmatpush2.msra.mxu0 0.0
    %2815 = vmatprep.subr.mxu0 0.0
    %2816 = vmatpush2.msra.mxu0 0.0
    %2817 = vmatprep.subr.mxu0 0.0
    %2818 = vmatpush2.msra.mxu0 0.0
    %2819 = vmatprep.subr.mxu0 0.0
    %2820 = vmatpush2.msra.mxu0 0.0
    %2821 = vmatprep.subr.mxu0 0.0
    %2822 = vmatpush2.msra.mxu0 0.0
    %2823 = vmatprep.mubr.f32.mxu0 0.0
    %2824 = vmatmul.mubr.f32.gmra.mxu0 %v2754
    %v2825 = vpop.f32.mrf.mxu0
    %v2826 = vadd.f32 %v2752, %v2825
    %v2827 = vpop.f32.mrf.mxu0
    %2828 = vmatprep.mubr.f32.mxu0 0.0
    %2829 = vmatmul.mubr.f32.gmra.mxu0 %v2757
    %v2830 = vpop.f32.mrf.mxu0
    %v2831 = vadd.f32 %v2752, %v2830
    %v2832 = vpop.f32.mrf.mxu0
    %2833 = vdwg.mxu0
    %2834 = vst [vmem:[%s4] sm:$0xff] %v2826
    %2835 = vst [vmem:[%s4 + $0x8] sm:$0xff] %v2831
    %v2836 = vld [vmem:[#allocation2 + $0x50] sm:$0xff]
    %v2838 = vsel %vm278, %v2836, 0
    %2840 = vmatprep.subr.mxu0 0.0
    %2841 = vmatpush1.msra.mxu0 0.0
    %2842 = vmatprep.subr.mxu0 0.0
    %2843 = vmatpush1.msra.mxu0 0.0
    %2844 = vmatprep.subr.mxu0 0.0
    %2845 = vmatpush1.msra.mxu0 0.0
    %2846 = vmatprep.subr.mxu0 0.0
    %2847 = vmatpush1.msra.mxu0 0.0
    %2848 = vmatprep.subr.mxu0 0.0
    %2849 = vmatpush1.msra.mxu0 0.0
    %2850 = vmatprep.subr.mxu0 0.0
    %2851 = vmatpush1.msra.mxu0 0.0
    %2852 = vmatprep.subr.mxu0 0.0
    %2853 = vmatpush1.msra.mxu0 0.0
    %2854 = vmatprep.subr.mxu0 0.0
    %2855 = vmatpush1.msra.mxu0 0.0
    %2856 = vmatprep.subr.mxu0 0.0
    %2857 = vmatpush1.msra.mxu0 0.0
    %2858 = vmatprep.subr.mxu0 0.0
    %2859 = vmatpush1.msra.mxu0 0.0
    %2860 = vmatprep.subr.mxu0 0.0
    %2861 = vmatpush1.msra.mxu0 0.0
    %2862 = vmatprep.subr.mxu0 0.0
    %2863 = vmatpush1.msra.mxu0 0.0
    %2864 = vmatprep.subr.mxu0 0.0
    %2865 = vmatpush1.msra.mxu0 0.0
    %2866 = vmatprep.subr.mxu0 0.0
    %2867 = vmatpush1.msra.mxu0 0.0
    %2868 = vmatprep.subr.mxu0 0.0
    %2869 = vmatpush1.msra.mxu0 %v2743
    %2870 = vmatprep.subr.mxu0 0.0
    %2871 = vmatpush1.msra.mxu0 %v2742
    %2872 = vmatprep.subr.mxu0 0.0
    %2873 = vmatpush2.msra.mxu0 0.0
    %2874 = vmatprep.subr.mxu0 0.0
    %2875 = vmatpush2.msra.mxu0 0.0
    %2876 = vmatprep.subr.mxu0 0.0
    %2877 = vmatpush2.msra.mxu0 0.0
    %2878 = vmatprep.subr.mxu0 0.0
    %2879 = vmatpush2.msra.mxu0 0.0
    %2880 = vmatprep.subr.mxu0 0.0
    %2881 = vmatpush2.msra.mxu0 0.0
    %2882 = vmatprep.subr.mxu0 0.0
    %2883 = vmatpush2.msra.mxu0 0.0
    %2884 = vmatprep.subr.mxu0 0.0
    %2885 = vmatpush2.msra.mxu0 0.0
    %2886 = vmatprep.subr.mxu0 0.0
    %2887 = vmatpush2.msra.mxu0 0.0
    %2888 = vmatprep.subr.mxu0 0.0
    %2889 = vmatpush2.msra.mxu0 0.0
    %2890 = vmatprep.subr.mxu0 0.0
    %2891 = vmatpush2.msra.mxu0 0.0
    %2892 = vmatprep.subr.mxu0 0.0
    %2893 = vmatpush2.msra.mxu0 0.0
    %2894 = vmatprep.subr.mxu0 0.0
    %2895 = vmatpush2.msra.mxu0 0.0
    %2896 = vmatprep.subr.mxu0 0.0
    %2897 = vmatpush2.msra.mxu0 0.0
    %2898 = vmatprep.subr.mxu0 0.0
    %2899 = vmatpush2.msra.mxu0 0.0
    %2900 = vmatprep.subr.mxu0 0.0
    %2901 = vmatpush2.msra.mxu0 0.0
    %2902 = vmatprep.subr.mxu0 0.0
    %2903 = vmatpush2.msra.mxu0 0.0
    %2904 = vmatprep.mubr.f32.mxu0 0.0
    %2905 = vmatmul.mubr.f32.gmra.mxu0 %v2838
    %v2906 = vpop.f32.mrf.mxu0
    %v2907 = vadd.f32 0.0, %v2906
    %v2908 = vpop.f32.mrf.mxu0
    %2909 = vdwg.mxu0
    %v2910 = vld [vmem:[#allocation4 + $0x128] sm:$0xff]
    %v2911 = vld [vmem:[#allocation4 + $0x130] sm:$0xff]
    %v2912 = vld [vmem:[#allocation4 + $0x138] sm:$0xff]
    %v2913 = vld [vmem:[#allocation4 + $0x140] sm:$0xff]
    %v2914 = vld [vmem:[#allocation4 + $0x1e8] sm:$0x1]
    %v2915 = vlaneseq
    %v2916 = vshrl.u32 %v2915, 7
    %v2917 = vsub.s32 0, %v2916
    %v2918 = vrot.slane %v2914, %v2917
    %v2920 = vsel %vm176, %v2907, 0
    %2922 = vmatprep.subr.mxu0 0.0
    %2923 = vmatpush1.msra.mxu0 0.0
    %2924 = vmatprep.subr.mxu0 0.0
    %2925 = vmatpush1.msra.mxu0 0.0
    %2926 = vmatprep.subr.mxu0 0.0
    %2927 = vmatpush1.msra.mxu0 0.0
    %2928 = vmatprep.subr.mxu0 0.0
    %2929 = vmatpush1.msra.mxu0 0.0
    %2930 = vmatprep.subr.mxu0 0.0
    %2931 = vmatpush1.msra.mxu0 0.0
    %2932 = vmatprep.subr.mxu0 0.0
    %2933 = vmatpush1.msra.mxu0 0.0
    %2934 = vmatprep.subr.mxu0 0.0
    %2935 = vmatpush1.msra.mxu0 0.0
    %2936 = vmatprep.subr.mxu0 0.0
    %2937 = vmatpush1.msra.mxu0 0.0
    %2938 = vmatprep.subr.mxu0 0.0
    %2939 = vmatpush1.msra.mxu0 0.0
    %2940 = vmatprep.subr.mxu0 0.0
    %2941 = vmatpush1.msra.mxu0 0.0
    %2942 = vmatprep.subr.mxu0 0.0
    %2943 = vmatpush1.msra.mxu0 0.0
    %2944 = vmatprep.subr.mxu0 0.0
    %2945 = vmatpush1.msra.mxu0 0.0
    %2946 = vmatprep.subr.mxu0 0.0
    %2947 = vmatpush1.msra.mxu0 %v2913
    %2948 = vmatprep.subr.mxu0 0.0
    %2949 = vmatpush1.msra.mxu0 %v2912
    %2950 = vmatprep.subr.mxu0 0.0
    %2951 = vmatpush1.msra.mxu0 %v2911
    %2952 = vmatprep.subr.mxu0 0.0
    %2953 = vmatpush1.msra.mxu0 %v2910
    %2954 = vmatprep.subr.mxu0 0.0
    %2955 = vmatpush2.msra.mxu0 0.0
    %2956 = vmatprep.subr.mxu0 0.0
    %2957 = vmatpush2.msra.mxu0 0.0
    %2958 = vmatprep.subr.mxu0 0.0
    %2959 = vmatpush2.msra.mxu0 0.0
    %2960 = vmatprep.subr.mxu0 0.0
    %2961 = vmatpush2.msra.mxu0 0.0
    %2962 = vmatprep.subr.mxu0 0.0
    %2963 = vmatpush2.msra.mxu0 0.0
    %2964 = vmatprep.subr.mxu0 0.0
    %2965 = vmatpush2.msra.mxu0 0.0
    %2966 = vmatprep.subr.mxu0 0.0
    %2967 = vmatpush2.msra.mxu0 0.0
    %2968 = vmatprep.subr.mxu0 0.0
    %2969 = vmatpush2.msra.mxu0 0.0
    %2970 = vmatprep.subr.mxu0 0.0
    %2971 = vmatpush2.msra.mxu0 0.0
    %2972 = vmatprep.subr.mxu0 0.0
    %2973 = vmatpush2.msra.mxu0 0.0
    %2974 = vmatprep.subr.mxu0 0.0
    %2975 = vmatpush2.msra.mxu0 0.0
    %2976 = vmatprep.subr.mxu0 0.0
    %2977 = vmatpush2.msra.mxu0 0.0
    %2978 = vmatprep.subr.mxu0 0.0
    %2979 = vmatpush2.msra.mxu0 0.0
    %2980 = vmatprep.subr.mxu0 0.0
    %2981 = vmatpush2.msra.mxu0 0.0
    %2982 = vmatprep.subr.mxu0 0.0
    %2983 = vmatpush2.msra.mxu0 0.0
    %2984 = vmatprep.subr.mxu0 0.0
    %2985 = vmatpush2.msra.mxu0 0.0
    %2986 = vmatprep.mubr.f32.mxu0 0.0
    %2987 = vmatmul.mubr.f32.gmra.mxu0 %v2920
    %v2988 = vpop.f32.mrf.mxu0
    %v2989 = vadd.f32 %v2918, %v2988
    %v2990 = vpop.f32.mrf.mxu0
    %2991 = vdwg.mxu0
    %v2992 = vld [vmem:[#allocation4 + $0x1f0] sm:$0x1]
    %v2993 = vld [vmem:[#allocation4 + $0x1f8] sm:$0x1]
    %v2994 = vsel %vm176, %v2989, 0.0
    %2995 = vadd.xlane.f32.xlu0 %v2994
    %v2996 = vpop.xlane.xlu0 %2995
    %v2997 = vmul.f32 %v2996, %v948
    %v2998 = vsub.f32 %v2989, %v2997
    %v2999 = vmul.f32 %v2998, %v2998
    %v3000 = vsel %vm176, %v2999, 0.0
    %3001 = vadd.xlane.f32.xlu0 %v3000
    %v3002 = vpop.xlane.xlu0 %3001
    %v3003 = vmul.f32 %v3002, %v948
    %v3004 = vadd.f32 %v3003, 1e-05
    %v3005 = vrsqrt.pop %v3004
    %v3006 = vmul.f32 %v2998, %v3005
    %v3007 = vlaneseq
    %v3008 = vshrl.u32 %v3007, 7
    %v3009 = vsub.s32 0, %v3008
    %v3010 = vrot.slane %v2992, %v3009
    %v3011 = vmul.f32 %v3006, %v3010
    %v3012 = vlaneseq
    %v3013 = vshrl.u32 %v3012, 7
    %v3014 = vsub.s32 0, %v3013
    %v3015 = vrot.slane %v2993, %v3014
    %v3016 = vadd.f32 %v3011, %v3015
    %v3017 = vmax.f32 %v3016, 0.0
    %v3018 = vld [vmem:[#allocation4 + $0x148] sm:$0xff]
    %v3019 = vld [vmem:[#allocation4 + $0x150] sm:$0xff]
    %v3020 = vld [vmem:[#allocation4 + $0x158] sm:$0xff]
    %v3021 = vld [vmem:[#allocation4 + $0x160] sm:$0xff]
    %v3022 = vld [vmem:[#allocation4 + $0x200] sm:$0x1]
    %v3023 = vlaneseq
    %v3024 = vshrl.u32 %v3023, 7
    %v3025 = vsub.s32 0, %v3024
    %v3026 = vrot.slane %v3022, %v3025
    %v3028 = vsel %vm176, %v3017, 0
    %3030 = vmatprep.subr.mxu0 0.0
    %3031 = vmatpush1.msra.mxu0 0.0
    %3032 = vmatprep.subr.mxu0 0.0
    %3033 = vmatpush1.msra.mxu0 0.0
    %3034 = vmatprep.subr.mxu0 0.0
    %3035 = vmatpush1.msra.mxu0 0.0
    %3036 = vmatprep.subr.mxu0 0.0
    %3037 = vmatpush1.msra.mxu0 0.0
    %3038 = vmatprep.subr.mxu0 0.0
    %3039 = vmatpush1.msra.mxu0 0.0
    %3040 = vmatprep.subr.mxu0 0.0
    %3041 = vmatpush1.msra.mxu0 0.0
    %3042 = vmatprep.subr.mxu0 0.0
    %3043 = vmatpush1.msra.mxu0 0.0
    %3044 = vmatprep.subr.mxu0 0.0
    %3045 = vmatpush1.msra.mxu0 0.0
    %3046 = vmatprep.subr.mxu0 0.0
    %3047 = vmatpush1.msra.mxu0 0.0
    %3048 = vmatprep.subr.mxu0 0.0
    %3049 = vmatpush1.msra.mxu0 0.0
    %3050 = vmatprep.subr.mxu0 0.0
    %3051 = vmatpush1.msra.mxu0 0.0
    %3052 = vmatprep.subr.mxu0 0.0
    %3053 = vmatpush1.msra.mxu0 0.0
    %3054 = vmatprep.subr.mxu0 0.0
    %3055 = vmatpush1.msra.mxu0 %v3021
    %3056 = vmatprep.subr.mxu0 0.0
    %3057 = vmatpush1.msra.mxu0 %v3020
    %3058 = vmatprep.subr.mxu0 0.0
    %3059 = vmatpush1.msra.mxu0 %v3019
    %3060 = vmatprep.subr.mxu0 0.0
    %3061 = vmatpush1.msra.mxu0 %v3018
    %3062 = vmatprep.subr.mxu0 0.0
    %3063 = vmatpush2.msra.mxu0 0.0
    %3064 = vmatprep.subr.mxu0 0.0
    %3065 = vmatpush2.msra.mxu0 0.0
    %3066 = vmatprep.subr.mxu0 0.0
    %3067 = vmatpush2.msra.mxu0 0.0
    %3068 = vmatprep.subr.mxu0 0.0
    %3069 = vmatpush2.msra.mxu0 0.0
    %3070 = vmatprep.subr.mxu0 0.0
    %3071 = vmatpush2.msra.mxu0 0.0
    %3072 = vmatprep.subr.mxu0 0.0
    %3073 = vmatpush2.msra.mxu0 0.0
    %3074 = vmatprep.subr.mxu0 0.0
    %3075 = vmatpush2.msra.mxu0 0.0
    %3076 = vmatprep.subr.mxu0 0.0
    %3077 = vmatpush2.msra.mxu0 0.0
    %3078 = vmatprep.subr.mxu0 0.0
    %3079 = vmatpush2.msra.mxu0 0.0
    %3080 = vmatprep.subr.mxu0 0.0
    %3081 = vmatpush2.msra.mxu0 0.0
    %3082 = vmatprep.subr.mxu0 0.0
    %3083 = vmatpush2.msra.mxu0 0.0
    %3084 = vmatprep.subr.mxu0 0.0
    %3085 = vmatpush2.msra.mxu0 0.0
    %3086 = vmatprep.subr.mxu0 0.0
    %3087 = vmatpush2.msra.mxu0 0.0
    %3088 = vmatprep.subr.mxu0 0.0
    %3089 = vmatpush2.msra.mxu0 0.0
    %3090 = vmatprep.subr.mxu0 0.0
    %3091 = vmatpush2.msra.mxu0 0.0
    %3092 = vmatprep.subr.mxu0 0.0
    %3093 = vmatpush2.msra.mxu0 0.0
    %3094 = vmatprep.mubr.f32.mxu0 0.0
    %3095 = vmatmul.mubr.f32.gmra.mxu0 %v3028
    %v3096 = vpop.f32.mrf.mxu0
    %v3097 = vadd.f32 %v3026, %v3096
    %v3098 = vpop.f32.mrf.mxu0
    %3099 = vdwg.mxu0
    %3100 = vst [vmem:[%s4 + $0x10] sm:$0xff] %v3097
    // Predicated region
    $region26: #{multihead_gsgat_forward.1} parent=1 // pred_check
      _
    $region27: #{multihead_gsgat_forward.1} parent=1 // pred_check_branch
      %3102 = sbr.rel (0) target = $region29
    $region28: #{multihead_gsgat_forward.1} parent=1 // pred_region
      _
    $region29: #{multihead_gsgat_forward.1} parent=1 // pred_fallthru
      _
    // Predicated region
    $region30: #{multihead_gsgat_forward.1} parent=1 // pred_check
      _
    $region31: #{multihead_gsgat_forward.1} parent=1 // pred_check_branch
      %3104 = sbr.rel (0) target = $region33
    $region32: #{multihead_gsgat_forward.1} parent=1 // pred_region
      _
    $region33: #{multihead_gsgat_forward.1} parent=1 // pred_fallthru
      _
    %3105 = vsyncpa [#allocation3], 1
    %3106 = vsyncpa [#allocation5], 1

</llo_original>
